<compile_context>
chip_gen: v7x
topology: tpu7x:2x2x1
jax: 0.10.0
libtpu: 0.0.40
codegen_flags: <defaults>
</compile_context>

<pallas_src>
import functools

import jax
import jax.numpy as jnp
from jax import lax
from jax.experimental import pallas as pl
from jax.experimental.pallas import tpu as pltpu

VMEM_SPEC = pl.BlockSpec(memory_space=pltpu.MemorySpace.VMEM)


# ----------------------------------------------------------------------------
# The single fused kernel: n_rounds of (LC msg -> C LSTM -> CL msg -> L LSTM),
# then L_prob MLP + softmax-pair and C_vote -> sigmoid -> mean.
# ----------------------------------------------------------------------------
def _neurosat_kernel(A_ref, Linit_ref, Cinit_ref,
                     CWih_ref, CWhh_ref, Cb_ref,
                     LWih_cl_ref, LWih_fl_ref, LWhh_ref, Lb_ref,
                     PW1_ref, Pb1_ref, PW2_ref, Pb2_ref, Pw3_ref, Pb3_ref,
                     CVw_ref, CVb_ref,
                     vvar_ref, vc_ref,
                     *, n_vars, n_clauses, dim, n_rounds):
    n_lits = 2 * n_vars
    bf16 = jnp.bfloat16
    f32 = jnp.float32

    # Everything below stays resident in VMEM / vregs for all rounds
    # (loaded once, outside the round loop).
    A = A_ref[...]                                   # (n_lits, n_clauses) bf16
    CWih = CWih_ref[...]                             # (dim, 4*dim) bf16
    CWhh = CWhh_ref[...]                             # (dim, 4*dim) bf16
    Cb = Cb_ref[...]                                 # (1, 4*dim)   f32
    LWih_cl = LWih_cl_ref[...]                       # (dim, 4*dim) bf16
    LWih_fl = LWih_fl_ref[...]                       # (dim, 4*dim) bf16
    LWhh = LWhh_ref[...]                             # (dim, 4*dim) bf16
    Lb = Lb_ref[...]                                 # (1, 4*dim)   f32

    # Initial states (broadcast once, before the round loop).
    Lh0 = jnp.broadcast_to(Linit_ref[...], (n_lits, dim)).astype(f32)
    Ch0 = jnp.broadcast_to(Cinit_ref[...], (n_clauses, dim)).astype(f32)
    Lc0 = jnp.zeros((n_lits, dim), f32)
    Cc0 = jnp.zeros((n_clauses, dim), f32)

    def round_body(_, carry):
        Lh, Lc, Ch, Cc = carry
        Lh_b = Lh.astype(bf16)

        # LC_msg = L_unpack.T @ L_hidden  (transposed-LHS contraction; no
        # materialized A.T) -> (n_clauses, dim), f32 accumulation on the MXU.
        LC = lax.dot_general(A, Lh_b, (((0,), (0,)), ((), ())),
                             preferred_element_type=f32)

        # C_update: one LSTM cell step (torch gate order i, f, g, o).
        # NOTE: with dim a multiple of 128 these gate slices are lane-aligned;
        # at dim=32 they are tiny, so correctness > layout here.
        gc = (jnp.dot(LC.astype(bf16), CWih, preferred_element_type=f32)
              + jnp.dot(Ch.astype(bf16), CWhh, preferred_element_type=f32)
              + Cb)
        ci = jax.nn.sigmoid(gc[:, 0 * dim:1 * dim])
        cf = jax.nn.sigmoid(gc[:, 1 * dim:2 * dim])
        cg = jnp.tanh(gc[:, 2 * dim:3 * dim])
        co = jax.nn.sigmoid(gc[:, 3 * dim:4 * dim])
        Cc_new = cf * Cc + ci * cg
        Ch_new = co * jnp.tanh(Cc_new)

        # CL_msg = L_unpack @ C_hidden -> (n_lits, dim)
        CL = jnp.dot(A, Ch_new.astype(bf16), preferred_element_type=f32)

        # flip(L_hidden): swap positive/negative literal halves.  Since
        # n_lits == 2*n_vars, a rotate by n_vars along the sublane axis is
        # exactly the half swap (XLU rotate, no masked slice/concat copies).
        flipped = pltpu.roll(Lh, shift=n_vars, axis=0).astype(bf16)

        # L_update: one LSTM cell step.  concat([CL, flipped], axis=1) @ W_ih
        # is decomposed into two accumulating matmuls against the split
        # weight row-blocks (no lane-axis concat / extra VMEM temporary).
        gl = (jnp.dot(CL.astype(bf16), LWih_cl, preferred_element_type=f32)
              + jnp.dot(flipped, LWih_fl, preferred_element_type=f32)
              + jnp.dot(Lh_b, LWhh, preferred_element_type=f32)
              + Lb)
        li = jax.nn.sigmoid(gl[:, 0 * dim:1 * dim])
        lf = jax.nn.sigmoid(gl[:, 1 * dim:2 * dim])
        lg = jnp.tanh(gl[:, 2 * dim:3 * dim])
        lo = jax.nn.sigmoid(gl[:, 3 * dim:4 * dim])
        Lc_new = lf * Lc + li * lg
        Lh_new = lo * jnp.tanh(Lc_new)

        return Lh_new, Lc_new, Ch_new, Cc_new

    # Short, fixed trip count -> fully unroll so the scheduler can overlap
    # MXU pushes of round r+1 with the gate math (VPU/EUP) of round r.
    Lh, _, Ch, _ = lax.fori_loop(0, n_rounds, round_body,
                                 (Lh0, Lc0, Ch0, Cc0), unroll=True)

    # ---- L_prob MLP: Linear->ReLU->Linear->ReLU->Linear(dim,1) ----
    h = jnp.dot(Lh.astype(bf16), PW1_ref[...], preferred_element_type=f32) + Pb1_ref[...]
    h = jnp.maximum(h, 0.0)
    h = jnp.dot(h.astype(bf16), PW2_ref[...], preferred_element_type=f32) + Pb2_ref[...]
    h = jnp.maximum(h, 0.0)
    # Final (dim, 1) layer as VPU multiply + lane reduction (no N=1 matmul).
    vote = jnp.sum(h * Pw3_ref[...], axis=-1, keepdims=True) + Pb3_ref[...]   # (n_lits, 1)

    # softmax over the [vote_pos, vote_neg] pair, column 0:
    #   exp(a)/(exp(a)+exp(b)) == sigmoid(a - b)
    vvar_ref[...] = jax.nn.sigmoid(vote[:n_vars, :] - vote[n_vars:, :])        # (n_vars, 1)

    # ---- C_vote: Linear(dim,1) -> sigmoid -> mean ----
    cv = jax.nn.sigmoid(jnp.sum(Ch * CVw_ref[...], axis=-1, keepdims=True)
                        + CVb_ref[...])                                        # (n_clauses, 1)
    vc_ref[...] = jnp.mean(cv, keepdims=True)                                  # (1, 1)


# ----------------------------------------------------------------------------
# Parameter construction (deterministic, PyTorch-default-like uniform init).
# Master copies are f32; they are cast / split into kernel form in the wrapper.
# ----------------------------------------------------------------------------
def _linear(key, fan_in, fan_out):
    kw, kb = jax.random.split(key)
    lim = 1.0 / (fan_in ** 0.5)
    w = jax.random.uniform(kw, (fan_in, fan_out), jnp.float32, -lim, lim)
    b = jax.random.uniform(kb, (1, fan_out), jnp.float32, -lim, lim)
    return w, b


def _lstm(key, in_dim, hidden):
    k1, k2, k3, k4 = jax.random.split(key, 4)
    lim = 1.0 / (hidden ** 0.5)
    wih = jax.random.uniform(k1, (in_dim, 4 * hidden), jnp.float32, -lim, lim)
    whh = jax.random.uniform(k2, (hidden, 4 * hidden), jnp.float32, -lim, lim)
    b_ih = jax.random.uniform(k3, (1, 4 * hidden), jnp.float32, -lim, lim)
    b_hh = jax.random.uniform(k4, (1, 4 * hidden), jnp.float32, -lim, lim)
    return wih, whh, b_ih + b_hh


def init_params(key, dim):
    ks = jax.random.split(key, 8)
    p = {}
    p["Linit_W"], p["Linit_b"] = _linear(ks[0], 1, dim)            # nn.Linear(1, dim)
    p["Cinit_W"], p["Cinit_b"] = _linear(ks[1], 1, dim)            # nn.Linear(1, dim)
    p["C_Wih"], p["C_Whh"], p["C_b"] = _lstm(ks[2], dim, dim)      # C_update LSTM
    p["L_Wih"], p["L_Whh"], p["L_b"] = _lstm(ks[3], 2 * dim, dim)  # L_update LSTM
    p["P_W1"], p["P_b1"] = _linear(ks[4], dim, dim)                # L_prob MLP
    p["P_W2"], p["P_b2"] = _linear(ks[5], dim, dim)
    p["P_W3"], p["P_b3"] = _linear(ks[6], dim, 1)
    p["CV_W"], p["CV_b"] = _linear(ks[7], dim, 1)                  # C_vote
    return p


# ----------------------------------------------------------------------------
# Full forward: tiny glue in plain JAX, all compute in the single fused kernel.
# ----------------------------------------------------------------------------
def neurosat_forward(L_unpack, params, *, n_vars, dim, n_rounds):
    n_lits, n_clauses = L_unpack.shape
    assert n_lits == 2 * n_vars

    bf16 = jnp.bfloat16
    f32 = jnp.float32

    # init_ts path (nn.Linear(1, dim) applied to a scalar 1) -- trivial glue.
    init_ts = jnp.ones((1, 1), f32)
    L_init = init_ts @ params["Linit_W"] + params["Linit_b"]   # (1, dim)
    C_init = init_ts @ params["Cinit_W"] + params["Cinit_b"]   # (1, dim)

    # Adjacency: exact in bf16 (0/1 values).  No transpose is materialized.
    A = L_unpack.astype(bf16)

    # Split L_update's W_ih (2*dim, 4*dim) into the CL and flipped row blocks.
    LWih = params["L_Wih"]
    LWih_cl = LWih[:dim, :].astype(bf16)
    LWih_fl = LWih[dim:, :].astype(bf16)

    kernel_inputs = (
        A, L_init, C_init,
        params["C_Wih"].astype(bf16), params["C_Whh"].astype(bf16), params["C_b"],
        LWih_cl, LWih_fl, params["L_Whh"].astype(bf16), params["L_b"],
        params["P_W1"].astype(bf16), params["P_b1"],
        params["P_W2"].astype(bf16), params["P_b2"],
        params["P_W3"].T, params["P_b3"],          # (1, dim) row for VPU reduce
        params["CV_W"].T, params["CV_b"],          # (1, dim) row for VPU reduce
    )

    out_shape = (jax.ShapeDtypeStruct((n_vars, 1), f32),   # per-variable SAT prob
                 jax.ShapeDtypeStruct((1, 1), f32))        # clause vote scalar

    # Explicit VMEM budget sized from the actual buffers (the scoped default
    # is only 16 MiB on v5e / 32 MiB on v6e-v7x); cap below v7x's 64 MiB.
    total_bytes = sum(int(x.size) * x.dtype.itemsize for x in kernel_inputs)
    total_bytes += (n_vars + 1) * 4
    vmem_limit = int(min(max(4 * total_bytes + (8 << 20), 16 << 20), 60 << 20))

    kern = functools.partial(_neurosat_kernel, n_vars=n_vars,
                             n_clauses=n_clauses, dim=dim, n_rounds=n_rounds)

    vvar, vc = pl.pallas_call(
        kern,
        out_shape=out_shape,
        in_specs=[VMEM_SPEC] * len(kernel_inputs),
        out_specs=(VMEM_SPEC, VMEM_SPEC),
        compiler_params=pltpu.CompilerParams(vmem_limit_bytes=vmem_limit),
    )(*kernel_inputs)

    return vvar[:, 0], vc[0, 0]


# ----------------------------------------------------------------------------
if __name__ == "__main__":
    key = jax.random.PRNGKey(0)

    # Small synthetic SAT problem.
    n_vars = 8
    n_lits = 2 * n_vars        # 16
    n_clauses = 20
    dim = 32
    n_rounds = 4

    k_param, k_prob = jax.random.split(key)
    params = init_params(k_param, dim)

    # Dense L_unpack adjacency (3 literals per clause), equivalent to
    # torch.sparse.FloatTensor(indices, ones).to_dense().
    lit_idx = jax.random.randint(k_prob, (3, n_clauses), 0, n_lits)
    clause_idx = jnp.broadcast_to(jnp.arange(n_clauses)[None, :], (3, n_clauses))
    L_unpack = jnp.zeros((n_lits, n_clauses), jnp.float32)
    L_unpack = L_unpack.at[lit_idx.reshape(-1), clause_idx.reshape(-1)].set(1.0)

    vote_var, vote_c = neurosat_forward(L_unpack, params,
                                        n_vars=n_vars, dim=dim, n_rounds=n_rounds)
    jax.block_until_ready((vote_var, vote_c))

    assert vote_var.shape == (n_vars,)
    assert vote_c.shape == ()
    assert bool(jnp.all(jnp.isfinite(vote_var))) and bool(jnp.isfinite(vote_c))
    assert bool(jnp.all((vote_var >= 0.0) & (vote_var <= 1.0)))
    assert 0.0 <= float(vote_c) <= 1.0
    print("KERNEL_OK")
</pallas_src>

<mosaic_0001>
module attributes {stable_mosaic.version = 11 : i64} {
  func.func @_neurosat_kernel(%arg0: memref<16x20xbf16, #tpu.memory_space<vmem>>, %arg1: memref<1x32xf32, #tpu.memory_space<vmem>>, %arg2: memref<1x32xf32, #tpu.memory_space<vmem>>, %arg3: memref<32x128xbf16, #tpu.memory_space<vmem>>, %arg4: memref<32x128xbf16, #tpu.memory_space<vmem>>, %arg5: memref<1x128xf32, #tpu.memory_space<vmem>>, %arg6: memref<32x128xbf16, #tpu.memory_space<vmem>>, %arg7: memref<32x128xbf16, #tpu.memory_space<vmem>>, %arg8: memref<32x128xbf16, #tpu.memory_space<vmem>>, %arg9: memref<1x128xf32, #tpu.memory_space<vmem>>, %arg10: memref<32x32xbf16, #tpu.memory_space<vmem>>, %arg11: memref<1x32xf32, #tpu.memory_space<vmem>>, %arg12: memref<32x32xbf16, #tpu.memory_space<vmem>>, %arg13: memref<1x32xf32, #tpu.memory_space<vmem>>, %arg14: memref<1x32xf32, #tpu.memory_space<vmem>>, %arg15: memref<1x1xf32, #tpu.memory_space<vmem>>, %arg16: memref<1x32xf32, #tpu.memory_space<vmem>>, %arg17: memref<1x1xf32, #tpu.memory_space<vmem>>, %arg18: memref<8x1xf32, #tpu.memory_space<vmem>>, %arg19: memref<1x1xf32, #tpu.memory_space<vmem>>) attributes {dimension_semantics = [], scalar_prefetch = 0 : i64, scratch_operands = 0 : i64, tpu.core_type = #tpu.core_type<tc>} {
    %c0 = arith.constant 0 : index
    %c0_0 = arith.constant 0 : index
    %0 = vector.load %arg0[%c0, %c0_0] : memref<16x20xbf16, #tpu.memory_space<vmem>>, vector<16x20xbf16>
    %c0_1 = arith.constant 0 : index
    %c0_2 = arith.constant 0 : index
    %1 = vector.load %arg3[%c0_1, %c0_2] : memref<32x128xbf16, #tpu.memory_space<vmem>>, vector<32x128xbf16>
    %c0_3 = arith.constant 0 : index
    %c0_4 = arith.constant 0 : index
    %2 = vector.load %arg4[%c0_3, %c0_4] : memref<32x128xbf16, #tpu.memory_space<vmem>>, vector<32x128xbf16>
    %c0_5 = arith.constant 0 : index
    %c0_6 = arith.constant 0 : index
    %3 = vector.load %arg5[%c0_5, %c0_6] : memref<1x128xf32, #tpu.memory_space<vmem>>, vector<1x128xf32>
    %c0_7 = arith.constant 0 : index
    %c0_8 = arith.constant 0 : index
    %4 = vector.load %arg6[%c0_7, %c0_8] : memref<32x128xbf16, #tpu.memory_space<vmem>>, vector<32x128xbf16>
    %c0_9 = arith.constant 0 : index
    %c0_10 = arith.constant 0 : index
    %5 = vector.load %arg7[%c0_9, %c0_10] : memref<32x128xbf16, #tpu.memory_space<vmem>>, vector<32x128xbf16>
    %c0_11 = arith.constant 0 : index
    %c0_12 = arith.constant 0 : index
    %6 = vector.load %arg8[%c0_11, %c0_12] : memref<32x128xbf16, #tpu.memory_space<vmem>>, vector<32x128xbf16>
    %c0_13 = arith.constant 0 : index
    %c0_14 = arith.constant 0 : index
    %7 = vector.load %arg9[%c0_13, %c0_14] : memref<1x128xf32, #tpu.memory_space<vmem>>, vector<1x128xf32>
    %c0_15 = arith.constant 0 : index
    %c0_16 = arith.constant 0 : index
    %8 = vector.load %arg1[%c0_15, %c0_16] : memref<1x32xf32, #tpu.memory_space<vmem>>, vector<1x32xf32>
    %9 = vector.shape_cast %8 : vector<1x32xf32> to vector<1x32xf32>
    %10 = vector.broadcast %9 : vector<1x32xf32> to vector<16x32xf32>
    %c0_17 = arith.constant 0 : index
    %c0_18 = arith.constant 0 : index
    %11 = vector.load %arg2[%c0_17, %c0_18] : memref<1x32xf32, #tpu.memory_space<vmem>>, vector<1x32xf32>
    %12 = vector.shape_cast %11 : vector<1x32xf32> to vector<1x32xf32>
    %13 = vector.broadcast %12 : vector<1x32xf32> to vector<20x32xf32>
    %cst = arith.constant 0.000000e+00 : f32
    %14 = vector.broadcast %cst : f32 to vector<16x32xf32>
    %cst_19 = arith.constant 0.000000e+00 : f32
    %15 = vector.broadcast %cst_19 : f32 to vector<20x32xf32>
    %c0_i32 = arith.constant 0 : i32
    %16 = arith.truncf %10 : vector<16x32xf32> to vector<16x32xbf16>
    %cst_20 = arith.constant dense<0.000000e+00> : vector<20x32xf32>
    %17 = tpu.matmul %0, %16, %cst_20 {dimension_numbers = #tpu.dot_dimension_numbers<[0], [0], [1], [1], [0, 1, 1, 1], [], []>} : vector<16x20xbf16>, vector<16x32xbf16>, vector<20x32xf32> -> vector<20x32xf32>
    %18 = arith.truncf %17 : vector<20x32xf32> to vector<20x32xbf16>
    %cst_21 = arith.constant dense<0.000000e+00> : vector<20x128xf32>
    %19 = tpu.matmul %18, %1, %cst_21 {dimension_numbers = #tpu.dot_dimension_numbers<[1], [0], [0], [1], [0, 0, 1, 1], [], []>} : vector<20x32xbf16>, vector<32x128xbf16>, vector<20x128xf32> -> vector<20x128xf32>
    %20 = arith.truncf %13 : vector<20x32xf32> to vector<20x32xbf16>
    %cst_22 = arith.constant dense<0.000000e+00> : vector<20x128xf32>
    %21 = tpu.matmul %20, %2, %cst_22 {dimension_numbers = #tpu.dot_dimension_numbers<[1], [0], [0], [1], [0, 0, 1, 1], [], []>} : vector<20x32xbf16>, vector<32x128xbf16>, vector<20x128xf32> -> vector<20x128xf32>
    %22 = arith.addf %19, %21 : vector<20x128xf32>
    %23 = vector.broadcast %3 : vector<1x128xf32> to vector<20x128xf32>
    %24 = arith.addf %22, %23 : vector<20x128xf32>
    %25 = vector.extract_strided_slice %24 {offsets = [0, 0], sizes = [20, 32], strides = [1, 1]} : vector<20x128xf32> to vector<20x32xf32>
    %26 = arith.negf %25 : vector<20x32xf32>
    %27 = math.exp %26 : vector<20x32xf32>
    %cst_23 = arith.constant 1.000000e+00 : f32
    %28 = vector.broadcast %cst_23 : f32 to vector<20x32xf32>
    %29 = arith.addf %28, %27 : vector<20x32xf32>
    %30 = arith.divf %28, %29 : vector<20x32xf32>
    %31 = vector.extract_strided_slice %24 {offsets = [0, 32], sizes = [20, 32], strides = [1, 1]} : vector<20x128xf32> to vector<20x32xf32>
    %32 = arith.negf %31 : vector<20x32xf32>
    %33 = math.exp %32 : vector<20x32xf32>
    %cst_24 = arith.constant 1.000000e+00 : f32
    %34 = vector.broadcast %cst_24 : f32 to vector<20x32xf32>
    %35 = arith.addf %34, %33 : vector<20x32xf32>
    %36 = arith.divf %34, %35 : vector<20x32xf32>
    %37 = vector.extract_strided_slice %24 {offsets = [0, 64], sizes = [20, 32], strides = [1, 1]} : vector<20x128xf32> to vector<20x32xf32>
    %38 = math.tanh %37 : vector<20x32xf32>
    %39 = vector.extract_strided_slice %24 {offsets = [0, 96], sizes = [20, 32], strides = [1, 1]} : vector<20x128xf32> to vector<20x32xf32>
    %40 = arith.negf %39 : vector<20x32xf32>
    %41 = math.exp %40 : vector<20x32xf32>
    %cst_25 = arith.constant 1.000000e+00 : f32
    %42 = vector.broadcast %cst_25 : f32 to vector<20x32xf32>
    %43 = arith.addf %42, %41 : vector<20x32xf32>
    %44 = arith.divf %42, %43 : vector<20x32xf32>
    %45 = arith.mulf %36, %15 : vector<20x32xf32>
    %46 = arith.mulf %30, %38 : vector<20x32xf32>
    %47 = arith.addf %45, %46 : vector<20x32xf32>
    %48 = math.tanh %47 : vector<20x32xf32>
    %49 = arith.mulf %44, %48 : vector<20x32xf32>
    %50 = arith.truncf %49 : vector<20x32xf32> to vector<20x32xbf16>
    %cst_26 = arith.constant dense<0.000000e+00> : vector<16x32xf32>
    %51 = tpu.matmul %0, %50, %cst_26 {dimension_numbers = #tpu.dot_dimension_numbers<[1], [0], [0], [1], [0, 0, 1, 1], [], []>} : vector<16x20xbf16>, vector<20x32xbf16>, vector<16x32xf32> -> vector<16x32xf32>
    %c8_i32 = arith.constant 8 : i32
    %52 = tpu.dynamic_rotate %10 by %c8_i32 dim 0 : vector<16x32xf32>, i32 -> vector<16x32xf32>
    %53 = arith.truncf %52 : vector<16x32xf32> to vector<16x32xbf16>
    %54 = arith.truncf %51 : vector<16x32xf32> to vector<16x32xbf16>
    %cst_27 = arith.constant dense<0.000000e+00> : vector<16x128xf32>
    %55 = tpu.matmul %54, %4, %cst_27 {dimension_numbers = #tpu.dot_dimension_numbers<[1], [0], [0], [1], [0, 0, 1, 1], [], []>} : vector<16x32xbf16>, vector<32x128xbf16>, vector<16x128xf32> -> vector<16x128xf32>
    %cst_28 = arith.constant dense<0.000000e+00> : vector<16x128xf32>
    %56 = tpu.matmul %53, %5, %cst_28 {dimension_numbers = #tpu.dot_dimension_numbers<[1], [0], [0], [1], [0, 0, 1, 1], [], []>} : vector<16x32xbf16>, vector<32x128xbf16>, vector<16x128xf32> -> vector<16x128xf32>
    %57 = arith.addf %55, %56 : vector<16x128xf32>
    %cst_29 = arith.constant dense<0.000000e+00> : vector<16x128xf32>
    %58 = tpu.matmul %16, %6, %cst_29 {dimension_numbers = #tpu.dot_dimension_numbers<[1], [0], [0], [1], [0, 0, 1, 1], [], []>} : vector<16x32xbf16>, vector<32x128xbf16>, vector<16x128xf32> -> vector<16x128xf32>
    %59 = arith.addf %57, %58 : vector<16x128xf32>
    %60 = vector.broadcast %7 : vector<1x128xf32> to vector<16x128xf32>
    %61 = arith.addf %59, %60 : vector<16x128xf32>
    %62 = vector.extract_strided_slice %61 {offsets = [0, 0], sizes = [16, 32], strides = [1, 1]} : vector<16x128xf32> to vector<16x32xf32>
    %63 = arith.negf %62 : vector<16x32xf32>
    %64 = math.exp %63 : vector<16x32xf32>
    %cst_30 = arith.constant 1.000000e+00 : f32
    %65 = vector.broadcast %cst_30 : f32 to vector<16x32xf32>
    %66 = arith.addf %65, %64 : vector<16x32xf32>
    %67 = arith.divf %65, %66 : vector<16x32xf32>
    %68 = vector.extract_strided_slice %61 {offsets = [0, 32], sizes = [16, 32], strides = [1, 1]} : vector<16x128xf32> to vector<16x32xf32>
    %69 = arith.negf %68 : vector<16x32xf32>
    %70 = math.exp %69 : vector<16x32xf32>
    %cst_31 = arith.constant 1.000000e+00 : f32
    %71 = vector.broadcast %cst_31 : f32 to vector<16x32xf32>
    %72 = arith.addf %71, %70 : vector<16x32xf32>
    %73 = arith.divf %71, %72 : vector<16x32xf32>
    %74 = vector.extract_strided_slice %61 {offsets = [0, 64], sizes = [16, 32], strides = [1, 1]} : vector<16x128xf32> to vector<16x32xf32>
    %75 = math.tanh %74 : vector<16x32xf32>
    %76 = vector.extract_strided_slice %61 {offsets = [0, 96], sizes = [16, 32], strides = [1, 1]} : vector<16x128xf32> to vector<16x32xf32>
    %77 = arith.negf %76 : vector<16x32xf32>
    %78 = math.exp %77 : vector<16x32xf32>
    %cst_32 = arith.constant 1.000000e+00 : f32
    %79 = vector.broadcast %cst_32 : f32 to vector<16x32xf32>
    %80 = arith.addf %79, %78 : vector<16x32xf32>
    %81 = arith.divf %79, %80 : vector<16x32xf32>
    %82 = arith.mulf %73, %14 : vector<16x32xf32>
    %83 = arith.mulf %67, %75 : vector<16x32xf32>
    %84 = arith.addf %82, %83 : vector<16x32xf32>
    %85 = math.tanh %84 : vector<16x32xf32>
    %86 = arith.mulf %81, %85 : vector<16x32xf32>
    %c1_i32 = arith.constant 1 : i32
    %87 = arith.truncf %86 : vector<16x32xf32> to vector<16x32xbf16>
    %cst_33 = arith.constant dense<0.000000e+00> : vector<20x32xf32>
    %88 = tpu.matmul %0, %87, %cst_33 {dimension_numbers = #tpu.dot_dimension_numbers<[0], [0], [1], [1], [0, 1, 1, 1], [], []>} : vector<16x20xbf16>, vector<16x32xbf16>, vector<20x32xf32> -> vector<20x32xf32>
    %89 = arith.truncf %88 : vector<20x32xf32> to vector<20x32xbf16>
    %cst_34 = arith.constant dense<0.000000e+00> : vector<20x128xf32>
    %90 = tpu.matmul %89, %1, %cst_34 {dimension_numbers = #tpu.dot_dimension_numbers<[1], [0], [0], [1], [0, 0, 1, 1], [], []>} : vector<20x32xbf16>, vector<32x128xbf16>, vector<20x128xf32> -> vector<20x128xf32>
    %91 = arith.truncf %49 : vector<20x32xf32> to vector<20x32xbf16>
    %cst_35 = arith.constant dense<0.000000e+00> : vector<20x128xf32>
    %92 = tpu.matmul %91, %2, %cst_35 {dimension_numbers = #tpu.dot_dimension_numbers<[1], [0], [0], [1], [0, 0, 1, 1], [], []>} : vector<20x32xbf16>, vector<32x128xbf16>, vector<20x128xf32> -> vector<20x128xf32>
    %93 = arith.addf %90, %92 : vector<20x128xf32>
    %94 = vector.broadcast %3 : vector<1x128xf32> to vector<20x128xf32>
    %95 = arith.addf %93, %94 : vector<20x128xf32>
    %96 = vector.extract_strided_slice %95 {offsets = [0, 0], sizes = [20, 32], strides = [1, 1]} : vector<20x128xf32> to vector<20x32xf32>
    %97 = arith.negf %96 : vector<20x32xf32>
    %98 = math.exp %97 : vector<20x32xf32>
    %cst_36 = arith.constant 1.000000e+00 : f32
    %99 = vector.broadcast %cst_36 : f32 to vector<20x32xf32>
    %100 = arith.addf %99, %98 : vector<20x32xf32>
    %101 = arith.divf %99, %100 : vector<20x32xf32>
    %102 = vector.extract_strided_slice %95 {offsets = [0, 32], sizes = [20, 32], strides = [1, 1]} : vector<20x128xf32> to vector<20x32xf32>
    %103 = arith.negf %102 : vector<20x32xf32>
    %104 = math.exp %103 : vector<20x32xf32>
    %cst_37 = arith.constant 1.000000e+00 : f32
    %105 = vector.broadcast %cst_37 : f32 to vector<20x32xf32>
    %106 = arith.addf %105, %104 : vector<20x32xf32>
    %107 = arith.divf %105, %106 : vector<20x32xf32>
    %108 = vector.extract_strided_slice %95 {offsets = [0, 64], sizes = [20, 32], strides = [1, 1]} : vector<20x128xf32> to vector<20x32xf32>
    %109 = math.tanh %108 : vector<20x32xf32>
    %110 = vector.extract_strided_slice %95 {offsets = [0, 96], sizes = [20, 32], strides = [1, 1]} : vector<20x128xf32> to vector<20x32xf32>
    %111 = arith.negf %110 : vector<20x32xf32>
    %112 = math.exp %111 : vector<20x32xf32>
    %cst_38 = arith.constant 1.000000e+00 : f32
    %113 = vector.broadcast %cst_38 : f32 to vector<20x32xf32>
    %114 = arith.addf %113, %112 : vector<20x32xf32>
    %115 = arith.divf %113, %114 : vector<20x32xf32>
    %116 = arith.mulf %107, %47 : vector<20x32xf32>
    %117 = arith.mulf %101, %109 : vector<20x32xf32>
    %118 = arith.addf %116, %117 : vector<20x32xf32>
    %119 = math.tanh %118 : vector<20x32xf32>
    %120 = arith.mulf %115, %119 : vector<20x32xf32>
    %121 = arith.truncf %120 : vector<20x32xf32> to vector<20x32xbf16>
    %cst_39 = arith.constant dense<0.000000e+00> : vector<16x32xf32>
    %122 = tpu.matmul %0, %121, %cst_39 {dimension_numbers = #tpu.dot_dimension_numbers<[1], [0], [0], [1], [0, 0, 1, 1], [], []>} : vector<16x20xbf16>, vector<20x32xbf16>, vector<16x32xf32> -> vector<16x32xf32>
    %c8_i32_40 = arith.constant 8 : i32
    %123 = tpu.dynamic_rotate %86 by %c8_i32_40 dim 0 : vector<16x32xf32>, i32 -> vector<16x32xf32>
    %124 = arith.truncf %123 : vector<16x32xf32> to vector<16x32xbf16>
    %125 = arith.truncf %122 : vector<16x32xf32> to vector<16x32xbf16>
    %cst_41 = arith.constant dense<0.000000e+00> : vector<16x128xf32>
    %126 = tpu.matmul %125, %4, %cst_41 {dimension_numbers = #tpu.dot_dimension_numbers<[1], [0], [0], [1], [0, 0, 1, 1], [], []>} : vector<16x32xbf16>, vector<32x128xbf16>, vector<16x128xf32> -> vector<16x128xf32>
    %cst_42 = arith.constant dense<0.000000e+00> : vector<16x128xf32>
    %127 = tpu.matmul %124, %5, %cst_42 {dimension_numbers = #tpu.dot_dimension_numbers<[1], [0], [0], [1], [0, 0, 1, 1], [], []>} : vector<16x32xbf16>, vector<32x128xbf16>, vector<16x128xf32> -> vector<16x128xf32>
    %128 = arith.addf %126, %127 : vector<16x128xf32>
    %cst_43 = arith.constant dense<0.000000e+00> : vector<16x128xf32>
    %129 = tpu.matmul %87, %6, %cst_43 {dimension_numbers = #tpu.dot_dimension_numbers<[1], [0], [0], [1], [0, 0, 1, 1], [], []>} : vector<16x32xbf16>, vector<32x128xbf16>, vector<16x128xf32> -> vector<16x128xf32>
    %130 = arith.addf %128, %129 : vector<16x128xf32>
    %131 = vector.broadcast %7 : vector<1x128xf32> to vector<16x128xf32>
    %132 = arith.addf %130, %131 : vector<16x128xf32>
    %133 = vector.extract_strided_slice %132 {offsets = [0, 0], sizes = [16, 32], strides = [1, 1]} : vector<16x128xf32> to vector<16x32xf32>
    %134 = arith.negf %133 : vector<16x32xf32>
    %135 = math.exp %134 : vector<16x32xf32>
    %cst_44 = arith.constant 1.000000e+00 : f32
    %136 = vector.broadcast %cst_44 : f32 to vector<16x32xf32>
    %137 = arith.addf %136, %135 : vector<16x32xf32>
    %138 = arith.divf %136, %137 : vector<16x32xf32>
    %139 = vector.extract_strided_slice %132 {offsets = [0, 32], sizes = [16, 32], strides = [1, 1]} : vector<16x128xf32> to vector<16x32xf32>
    %140 = arith.negf %139 : vector<16x32xf32>
    %141 = math.exp %140 : vector<16x32xf32>
    %cst_45 = arith.constant 1.000000e+00 : f32
    %142 = vector.broadcast %cst_45 : f32 to vector<16x32xf32>
    %143 = arith.addf %142, %141 : vector<16x32xf32>
    %144 = arith.divf %142, %143 : vector<16x32xf32>
    %145 = vector.extract_strided_slice %132 {offsets = [0, 64], sizes = [16, 32], strides = [1, 1]} : vector<16x128xf32> to vector<16x32xf32>
    %146 = math.tanh %145 : vector<16x32xf32>
    %147 = vector.extract_strided_slice %132 {offsets = [0, 96], sizes = [16, 32], strides = [1, 1]} : vector<16x128xf32> to vector<16x32xf32>
    %148 = arith.negf %147 : vector<16x32xf32>
    %149 = math.exp %148 : vector<16x32xf32>
    %cst_46 = arith.constant 1.000000e+00 : f32
    %150 = vector.broadcast %cst_46 : f32 to vector<16x32xf32>
    %151 = arith.addf %150, %149 : vector<16x32xf32>
    %152 = arith.divf %150, %151 : vector<16x32xf32>
    %153 = arith.mulf %144, %84 : vector<16x32xf32>
    %154 = arith.mulf %138, %146 : vector<16x32xf32>
    %155 = arith.addf %153, %154 : vector<16x32xf32>
    %156 = math.tanh %155 : vector<16x32xf32>
    %157 = arith.mulf %152, %156 : vector<16x32xf32>
    %c2_i32 = arith.constant 2 : i32
    %158 = arith.truncf %157 : vector<16x32xf32> to vector<16x32xbf16>
    %cst_47 = arith.constant dense<0.000000e+00> : vector<20x32xf32>
    %159 = tpu.matmul %0, %158, %cst_47 {dimension_numbers = #tpu.dot_dimension_numbers<[0], [0], [1], [1], [0, 1, 1, 1], [], []>} : vector<16x20xbf16>, vector<16x32xbf16>, vector<20x32xf32> -> vector<20x32xf32>
    %160 = arith.truncf %159 : vector<20x32xf32> to vector<20x32xbf16>
    %cst_48 = arith.constant dense<0.000000e+00> : vector<20x128xf32>
    %161 = tpu.matmul %160, %1, %cst_48 {dimension_numbers = #tpu.dot_dimension_numbers<[1], [0], [0], [1], [0, 0, 1, 1], [], []>} : vector<20x32xbf16>, vector<32x128xbf16>, vector<20x128xf32> -> vector<20x128xf32>
    %162 = arith.truncf %120 : vector<20x32xf32> to vector<20x32xbf16>
    %cst_49 = arith.constant dense<0.000000e+00> : vector<20x128xf32>
    %163 = tpu.matmul %162, %2, %cst_49 {dimension_numbers = #tpu.dot_dimension_numbers<[1], [0], [0], [1], [0, 0, 1, 1], [], []>} : vector<20x32xbf16>, vector<32x128xbf16>, vector<20x128xf32> -> vector<20x128xf32>
    %164 = arith.addf %161, %163 : vector<20x128xf32>
    %165 = vector.broadcast %3 : vector<1x128xf32> to vector<20x128xf32>
    %166 = arith.addf %164, %165 : vector<20x128xf32>
    %167 = vector.extract_strided_slice %166 {offsets = [0, 0], sizes = [20, 32], strides = [1, 1]} : vector<20x128xf32> to vector<20x32xf32>
    %168 = arith.negf %167 : vector<20x32xf32>
    %169 = math.exp %168 : vector<20x32xf32>
    %cst_50 = arith.constant 1.000000e+00 : f32
    %170 = vector.broadcast %cst_50 : f32 to vector<20x32xf32>
    %171 = arith.addf %170, %169 : vector<20x32xf32>
    %172 = arith.divf %170, %171 : vector<20x32xf32>
    %173 = vector.extract_strided_slice %166 {offsets = [0, 32], sizes = [20, 32], strides = [1, 1]} : vector<20x128xf32> to vector<20x32xf32>
    %174 = arith.negf %173 : vector<20x32xf32>
    %175 = math.exp %174 : vector<20x32xf32>
    %cst_51 = arith.constant 1.000000e+00 : f32
    %176 = vector.broadcast %cst_51 : f32 to vector<20x32xf32>
    %177 = arith.addf %176, %175 : vector<20x32xf32>
    %178 = arith.divf %176, %177 : vector<20x32xf32>
    %179 = vector.extract_strided_slice %166 {offsets = [0, 64], sizes = [20, 32], strides = [1, 1]} : vector<20x128xf32> to vector<20x32xf32>
    %180 = math.tanh %179 : vector<20x32xf32>
    %181 = vector.extract_strided_slice %166 {offsets = [0, 96], sizes = [20, 32], strides = [1, 1]} : vector<20x128xf32> to vector<20x32xf32>
    %182 = arith.negf %181 : vector<20x32xf32>
    %183 = math.exp %182 : vector<20x32xf32>
    %cst_52 = arith.constant 1.000000e+00 : f32
    %184 = vector.broadcast %cst_52 : f32 to vector<20x32xf32>
    %185 = arith.addf %184, %183 : vector<20x32xf32>
    %186 = arith.divf %184, %185 : vector<20x32xf32>
    %187 = arith.mulf %178, %118 : vector<20x32xf32>
    %188 = arith.mulf %172, %180 : vector<20x32xf32>
    %189 = arith.addf %187, %188 : vector<20x32xf32>
    %190 = math.tanh %189 : vector<20x32xf32>
    %191 = arith.mulf %186, %190 : vector<20x32xf32>
    %192 = arith.truncf %191 : vector<20x32xf32> to vector<20x32xbf16>
    %cst_53 = arith.constant dense<0.000000e+00> : vector<16x32xf32>
    %193 = tpu.matmul %0, %192, %cst_53 {dimension_numbers = #tpu.dot_dimension_numbers<[1], [0], [0], [1], [0, 0, 1, 1], [], []>} : vector<16x20xbf16>, vector<20x32xbf16>, vector<16x32xf32> -> vector<16x32xf32>
    %c8_i32_54 = arith.constant 8 : i32
    %194 = tpu.dynamic_rotate %157 by %c8_i32_54 dim 0 : vector<16x32xf32>, i32 -> vector<16x32xf32>
    %195 = arith.truncf %194 : vector<16x32xf32> to vector<16x32xbf16>
    %196 = arith.truncf %193 : vector<16x32xf32> to vector<16x32xbf16>
    %cst_55 = arith.constant dense<0.000000e+00> : vector<16x128xf32>
    %197 = tpu.matmul %196, %4, %cst_55 {dimension_numbers = #tpu.dot_dimension_numbers<[1], [0], [0], [1], [0, 0, 1, 1], [], []>} : vector<16x32xbf16>, vector<32x128xbf16>, vector<16x128xf32> -> vector<16x128xf32>
    %cst_56 = arith.constant dense<0.000000e+00> : vector<16x128xf32>
    %198 = tpu.matmul %195, %5, %cst_56 {dimension_numbers = #tpu.dot_dimension_numbers<[1], [0], [0], [1], [0, 0, 1, 1], [], []>} : vector<16x32xbf16>, vector<32x128xbf16>, vector<16x128xf32> -> vector<16x128xf32>
    %199 = arith.addf %197, %198 : vector<16x128xf32>
    %cst_57 = arith.constant dense<0.000000e+00> : vector<16x128xf32>
    %200 = tpu.matmul %158, %6, %cst_57 {dimension_numbers = #tpu.dot_dimension_numbers<[1], [0], [0], [1], [0, 0, 1, 1], [], []>} : vector<16x32xbf16>, vector<32x128xbf16>, vector<16x128xf32> -> vector<16x128xf32>
    %201 = arith.addf %199, %200 : vector<16x128xf32>
    %202 = vector.broadcast %7 : vector<1x128xf32> to vector<16x128xf32>
    %203 = arith.addf %201, %202 : vector<16x128xf32>
    %204 = vector.extract_strided_slice %203 {offsets = [0, 0], sizes = [16, 32], strides = [1, 1]} : vector<16x128xf32> to vector<16x32xf32>
    %205 = arith.negf %204 : vector<16x32xf32>
    %206 = math.exp %205 : vector<16x32xf32>
    %cst_58 = arith.constant 1.000000e+00 : f32
    %207 = vector.broadcast %cst_58 : f32 to vector<16x32xf32>
    %208 = arith.addf %207, %206 : vector<16x32xf32>
    %209 = arith.divf %207, %208 : vector<16x32xf32>
    %210 = vector.extract_strided_slice %203 {offsets = [0, 32], sizes = [16, 32], strides = [1, 1]} : vector<16x128xf32> to vector<16x32xf32>
    %211 = arith.negf %210 : vector<16x32xf32>
    %212 = math.exp %211 : vector<16x32xf32>
    %cst_59 = arith.constant 1.000000e+00 : f32
    %213 = vector.broadcast %cst_59 : f32 to vector<16x32xf32>
    %214 = arith.addf %213, %212 : vector<16x32xf32>
    %215 = arith.divf %213, %214 : vector<16x32xf32>
    %216 = vector.extract_strided_slice %203 {offsets = [0, 64], sizes = [16, 32], strides = [1, 1]} : vector<16x128xf32> to vector<16x32xf32>
    %217 = math.tanh %216 : vector<16x32xf32>
    %218 = vector.extract_strided_slice %203 {offsets = [0, 96], sizes = [16, 32], strides = [1, 1]} : vector<16x128xf32> to vector<16x32xf32>
    %219 = arith.negf %218 : vector<16x32xf32>
    %220 = math.exp %219 : vector<16x32xf32>
    %cst_60 = arith.constant 1.000000e+00 : f32
    %221 = vector.broadcast %cst_60 : f32 to vector<16x32xf32>
    %222 = arith.addf %221, %220 : vector<16x32xf32>
    %223 = arith.divf %221, %222 : vector<16x32xf32>
    %224 = arith.mulf %215, %155 : vector<16x32xf32>
    %225 = arith.mulf %209, %217 : vector<16x32xf32>
    %226 = arith.addf %224, %225 : vector<16x32xf32>
    %227 = math.tanh %226 : vector<16x32xf32>
    %228 = arith.mulf %223, %227 : vector<16x32xf32>
    %c3_i32 = arith.constant 3 : i32
    %229 = arith.truncf %228 : vector<16x32xf32> to vector<16x32xbf16>
    %cst_61 = arith.constant dense<0.000000e+00> : vector<20x32xf32>
    %230 = tpu.matmul %0, %229, %cst_61 {dimension_numbers = #tpu.dot_dimension_numbers<[0], [0], [1], [1], [0, 1, 1, 1], [], []>} : vector<16x20xbf16>, vector<16x32xbf16>, vector<20x32xf32> -> vector<20x32xf32>
    %231 = arith.truncf %230 : vector<20x32xf32> to vector<20x32xbf16>
    %cst_62 = arith.constant dense<0.000000e+00> : vector<20x128xf32>
    %232 = tpu.matmul %231, %1, %cst_62 {dimension_numbers = #tpu.dot_dimension_numbers<[1], [0], [0], [1], [0, 0, 1, 1], [], []>} : vector<20x32xbf16>, vector<32x128xbf16>, vector<20x128xf32> -> vector<20x128xf32>
    %233 = arith.truncf %191 : vector<20x32xf32> to vector<20x32xbf16>
    %cst_63 = arith.constant dense<0.000000e+00> : vector<20x128xf32>
    %234 = tpu.matmul %233, %2, %cst_63 {dimension_numbers = #tpu.dot_dimension_numbers<[1], [0], [0], [1], [0, 0, 1, 1], [], []>} : vector<20x32xbf16>, vector<32x128xbf16>, vector<20x128xf32> -> vector<20x128xf32>
    %235 = arith.addf %232, %234 : vector<20x128xf32>
    %236 = vector.broadcast %3 : vector<1x128xf32> to vector<20x128xf32>
    %237 = arith.addf %235, %236 : vector<20x128xf32>
    %238 = vector.extract_strided_slice %237 {offsets = [0, 0], sizes = [20, 32], strides = [1, 1]} : vector<20x128xf32> to vector<20x32xf32>
    %239 = arith.negf %238 : vector<20x32xf32>
    %240 = math.exp %239 : vector<20x32xf32>
    %cst_64 = arith.constant 1.000000e+00 : f32
    %241 = vector.broadcast %cst_64 : f32 to vector<20x32xf32>
    %242 = arith.addf %241, %240 : vector<20x32xf32>
    %243 = arith.divf %241, %242 : vector<20x32xf32>
    %244 = vector.extract_strided_slice %237 {offsets = [0, 32], sizes = [20, 32], strides = [1, 1]} : vector<20x128xf32> to vector<20x32xf32>
    %245 = arith.negf %244 : vector<20x32xf32>
    %246 = math.exp %245 : vector<20x32xf32>
    %cst_65 = arith.constant 1.000000e+00 : f32
    %247 = vector.broadcast %cst_65 : f32 to vector<20x32xf32>
    %248 = arith.addf %247, %246 : vector<20x32xf32>
    %249 = arith.divf %247, %248 : vector<20x32xf32>
    %250 = vector.extract_strided_slice %237 {offsets = [0, 64], sizes = [20, 32], strides = [1, 1]} : vector<20x128xf32> to vector<20x32xf32>
    %251 = math.tanh %250 : vector<20x32xf32>
    %252 = vector.extract_strided_slice %237 {offsets = [0, 96], sizes = [20, 32], strides = [1, 1]} : vector<20x128xf32> to vector<20x32xf32>
    %253 = arith.negf %252 : vector<20x32xf32>
    %254 = math.exp %253 : vector<20x32xf32>
    %cst_66 = arith.constant 1.000000e+00 : f32
    %255 = vector.broadcast %cst_66 : f32 to vector<20x32xf32>
    %256 = arith.addf %255, %254 : vector<20x32xf32>
    %257 = arith.divf %255, %256 : vector<20x32xf32>
    %258 = arith.mulf %249, %189 : vector<20x32xf32>
    %259 = arith.mulf %243, %251 : vector<20x32xf32>
    %260 = arith.addf %258, %259 : vector<20x32xf32>
    %261 = math.tanh %260 : vector<20x32xf32>
    %262 = arith.mulf %257, %261 : vector<20x32xf32>
    %263 = arith.truncf %262 : vector<20x32xf32> to vector<20x32xbf16>
    %cst_67 = arith.constant dense<0.000000e+00> : vector<16x32xf32>
    %264 = tpu.matmul %0, %263, %cst_67 {dimension_numbers = #tpu.dot_dimension_numbers<[1], [0], [0], [1], [0, 0, 1, 1], [], []>} : vector<16x20xbf16>, vector<20x32xbf16>, vector<16x32xf32> -> vector<16x32xf32>
    %c8_i32_68 = arith.constant 8 : i32
    %265 = tpu.dynamic_rotate %228 by %c8_i32_68 dim 0 : vector<16x32xf32>, i32 -> vector<16x32xf32>
    %266 = arith.truncf %265 : vector<16x32xf32> to vector<16x32xbf16>
    %267 = arith.truncf %264 : vector<16x32xf32> to vector<16x32xbf16>
    %cst_69 = arith.constant dense<0.000000e+00> : vector<16x128xf32>
    %268 = tpu.matmul %267, %4, %cst_69 {dimension_numbers = #tpu.dot_dimension_numbers<[1], [0], [0], [1], [0, 0, 1, 1], [], []>} : vector<16x32xbf16>, vector<32x128xbf16>, vector<16x128xf32> -> vector<16x128xf32>
    %cst_70 = arith.constant dense<0.000000e+00> : vector<16x128xf32>
    %269 = tpu.matmul %266, %5, %cst_70 {dimension_numbers = #tpu.dot_dimension_numbers<[1], [0], [0], [1], [0, 0, 1, 1], [], []>} : vector<16x32xbf16>, vector<32x128xbf16>, vector<16x128xf32> -> vector<16x128xf32>
    %270 = arith.addf %268, %269 : vector<16x128xf32>
    %cst_71 = arith.constant dense<0.000000e+00> : vector<16x128xf32>
    %271 = tpu.matmul %229, %6, %cst_71 {dimension_numbers = #tpu.dot_dimension_numbers<[1], [0], [0], [1], [0, 0, 1, 1], [], []>} : vector<16x32xbf16>, vector<32x128xbf16>, vector<16x128xf32> -> vector<16x128xf32>
    %272 = arith.addf %270, %271 : vector<16x128xf32>
    %273 = vector.broadcast %7 : vector<1x128xf32> to vector<16x128xf32>
    %274 = arith.addf %272, %273 : vector<16x128xf32>
    %275 = vector.extract_strided_slice %274 {offsets = [0, 0], sizes = [16, 32], strides = [1, 1]} : vector<16x128xf32> to vector<16x32xf32>
    %276 = arith.negf %275 : vector<16x32xf32>
    %277 = math.exp %276 : vector<16x32xf32>
    %cst_72 = arith.constant 1.000000e+00 : f32
    %278 = vector.broadcast %cst_72 : f32 to vector<16x32xf32>
    %279 = arith.addf %278, %277 : vector<16x32xf32>
    %280 = arith.divf %278, %279 : vector<16x32xf32>
    %281 = vector.extract_strided_slice %274 {offsets = [0, 32], sizes = [16, 32], strides = [1, 1]} : vector<16x128xf32> to vector<16x32xf32>
    %282 = arith.negf %281 : vector<16x32xf32>
    %283 = math.exp %282 : vector<16x32xf32>
    %cst_73 = arith.constant 1.000000e+00 : f32
    %284 = vector.broadcast %cst_73 : f32 to vector<16x32xf32>
    %285 = arith.addf %284, %283 : vector<16x32xf32>
    %286 = arith.divf %284, %285 : vector<16x32xf32>
    %287 = vector.extract_strided_slice %274 {offsets = [0, 64], sizes = [16, 32], strides = [1, 1]} : vector<16x128xf32> to vector<16x32xf32>
    %288 = math.tanh %287 : vector<16x32xf32>
    %289 = vector.extract_strided_slice %274 {offsets = [0, 96], sizes = [16, 32], strides = [1, 1]} : vector<16x128xf32> to vector<16x32xf32>
    %290 = arith.negf %289 : vector<16x32xf32>
    %291 = math.exp %290 : vector<16x32xf32>
    %cst_74 = arith.constant 1.000000e+00 : f32
    %292 = vector.broadcast %cst_74 : f32 to vector<16x32xf32>
    %293 = arith.addf %292, %291 : vector<16x32xf32>
    %294 = arith.divf %292, %293 : vector<16x32xf32>
    %295 = arith.mulf %286, %226 : vector<16x32xf32>
    %296 = arith.mulf %280, %288 : vector<16x32xf32>
    %297 = arith.addf %295, %296 : vector<16x32xf32>
    %298 = math.tanh %297 : vector<16x32xf32>
    %299 = arith.mulf %294, %298 : vector<16x32xf32>
    %300 = arith.truncf %299 : vector<16x32xf32> to vector<16x32xbf16>
    %c0_75 = arith.constant 0 : index
    %c0_76 = arith.constant 0 : index
    %301 = vector.load %arg10[%c0_75, %c0_76] : memref<32x32xbf16, #tpu.memory_space<vmem>>, vector<32x32xbf16>
    %cst_77 = arith.constant dense<0.000000e+00> : vector<16x32xf32>
    %302 = tpu.matmul %300, %301, %cst_77 {dimension_numbers = #tpu.dot_dimension_numbers<[1], [0], [0], [1], [0, 0, 1, 1], [], []>} : vector<16x32xbf16>, vector<32x32xbf16>, vector<16x32xf32> -> vector<16x32xf32>
    %c0_78 = arith.constant 0 : index
    %c0_79 = arith.constant 0 : index
    %303 = vector.load %arg11[%c0_78, %c0_79] : memref<1x32xf32, #tpu.memory_space<vmem>>, vector<1x32xf32>
    %304 = vector.broadcast %303 : vector<1x32xf32> to vector<16x32xf32>
    %305 = arith.addf %302, %304 : vector<16x32xf32>
    %cst_80 = arith.constant 0.000000e+00 : f32
    %306 = vector.broadcast %cst_80 : f32 to vector<16x32xf32>
    %307 = arith.maximumf %305, %306 : vector<16x32xf32>
    %308 = arith.truncf %307 : vector<16x32xf32> to vector<16x32xbf16>
    %c0_81 = arith.constant 0 : index
    %c0_82 = arith.constant 0 : index
    %309 = vector.load %arg12[%c0_81, %c0_82] : memref<32x32xbf16, #tpu.memory_space<vmem>>, vector<32x32xbf16>
    %cst_83 = arith.constant dense<0.000000e+00> : vector<16x32xf32>
    %310 = tpu.matmul %308, %309, %cst_83 {dimension_numbers = #tpu.dot_dimension_numbers<[1], [0], [0], [1], [0, 0, 1, 1], [], []>} : vector<16x32xbf16>, vector<32x32xbf16>, vector<16x32xf32> -> vector<16x32xf32>
    %c0_84 = arith.constant 0 : index
    %c0_85 = arith.constant 0 : index
    %311 = vector.load %arg13[%c0_84, %c0_85] : memref<1x32xf32, #tpu.memory_space<vmem>>, vector<1x32xf32>
    %312 = vector.broadcast %311 : vector<1x32xf32> to vector<16x32xf32>
    %313 = arith.addf %310, %312 : vector<16x32xf32>
    %cst_86 = arith.constant 0.000000e+00 : f32
    %314 = vector.broadcast %cst_86 : f32 to vector<16x32xf32>
    %315 = arith.maximumf %313, %314 : vector<16x32xf32>
    %c0_87 = arith.constant 0 : index
    %c0_88 = arith.constant 0 : index
    %316 = vector.load %arg14[%c0_87, %c0_88] : memref<1x32xf32, #tpu.memory_space<vmem>>, vector<1x32xf32>
    %317 = vector.broadcast %316 : vector<1x32xf32> to vector<16x32xf32>
    %318 = arith.mulf %315, %317 : vector<16x32xf32>
    %cst_89 = arith.constant dense<0.000000e+00> : vector<16xf32>
    %319 = vector.multi_reduction <add>, %318, %cst_89 [1] : vector<16x32xf32> to vector<16xf32>
    %320 = vector.shape_cast %319 : vector<16xf32> to vector<16x1xf32>
    %c0_90 = arith.constant 0 : index
    %c0_91 = arith.constant 0 : index
    %321 = vector.load %arg15[%c0_90, %c0_91] : memref<1x1xf32, #tpu.memory_space<vmem>>, vector<1x1xf32>
    %322 = vector.broadcast %321 : vector<1x1xf32> to vector<16x1xf32>
    %323 = arith.addf %320, %322 : vector<16x1xf32>
    %324 = vector.extract_strided_slice %323 {offsets = [0, 0], sizes = [8, 1], strides = [1, 1]} : vector<16x1xf32> to vector<8x1xf32>
    %325 = vector.extract_strided_slice %323 {offsets = [8, 0], sizes = [8, 1], strides = [1, 1]} : vector<16x1xf32> to vector<8x1xf32>
    %326 = arith.subf %324, %325 : vector<8x1xf32>
    %327 = arith.negf %326 : vector<8x1xf32>
    %328 = math.exp %327 : vector<8x1xf32>
    %cst_92 = arith.constant 1.000000e+00 : f32
    %329 = vector.broadcast %cst_92 : f32 to vector<8x1xf32>
    %330 = arith.addf %329, %328 : vector<8x1xf32>
    %331 = arith.divf %329, %330 : vector<8x1xf32>
    %c0_93 = arith.constant 0 : index
    %c0_94 = arith.constant 0 : index
    %332 = vector.load %arg18[%c0_93, %c0_94] : memref<8x1xf32, #tpu.memory_space<vmem>>, vector<8x1xf32>
    tpu.vector_store %arg18[%c0_93, %c0_94], %331 {strides = array<i32>} : memref<8x1xf32, #tpu.memory_space<vmem>>, vector<8x1xf32>,
    %c0_95 = arith.constant 0 : index
    %c0_96 = arith.constant 0 : index
    %333 = vector.load %arg16[%c0_95, %c0_96] : memref<1x32xf32, #tpu.memory_space<vmem>>, vector<1x32xf32>
    %334 = vector.broadcast %333 : vector<1x32xf32> to vector<20x32xf32>
    %335 = arith.mulf %262, %334 : vector<20x32xf32>
    %cst_97 = arith.constant dense<0.000000e+00> : vector<20xf32>
    %336 = vector.multi_reduction <add>, %335, %cst_97 [1] : vector<20x32xf32> to vector<20xf32>
    %337 = vector.shape_cast %336 : vector<20xf32> to vector<20x1xf32>
    %c0_98 = arith.constant 0 : index
    %c0_99 = arith.constant 0 : index
    %338 = vector.load %arg17[%c0_98, %c0_99] : memref<1x1xf32, #tpu.memory_space<vmem>>, vector<1x1xf32>
    %339 = vector.broadcast %338 : vector<1x1xf32> to vector<20x1xf32>
    %340 = arith.addf %337, %339 : vector<20x1xf32>
    %341 = arith.negf %340 : vector<20x1xf32>
    %342 = math.exp %341 : vector<20x1xf32>
    %cst_100 = arith.constant 1.000000e+00 : f32
    %343 = vector.broadcast %cst_100 : f32 to vector<20x1xf32>
    %344 = arith.addf %343, %342 : vector<20x1xf32>
    %345 = arith.divf %343, %344 : vector<20x1xf32>
    %346 = vector.shape_cast %345 : vector<20x1xf32> to vector<1x20x1xf32>
    %cst_101 = arith.constant dense<0.000000e+00> : vector<1xf32>
    %347 = vector.multi_reduction <add>, %346, %cst_101 [1, 2] : vector<1x20x1xf32> to vector<1xf32>
    %348 = vector.shape_cast %347 : vector<1xf32> to vector<1x1x1xf32>
    %349 = vector.extract %348[0, 0, 0] : f32 from vector<1x1x1xf32>
    %350 = vector.broadcast %349 : f32 to vector<1x1xf32>
    %cst_102 = arith.constant 2.000000e+01 : f32
    %351 = vector.broadcast %cst_102 : f32 to vector<1x1xf32>
    %352 = arith.divf %350, %351 : vector<1x1xf32>
    %c0_103 = arith.constant 0 : index
    %c0_104 = arith.constant 0 : index
    %353 = vector.load %arg19[%c0_103, %c0_104] : memref<1x1xf32, #tpu.memory_space<vmem>>, vector<1x1xf32>
    tpu.vector_store %arg19[%c0_103, %c0_104], %352 {strides = array<i32>} : memref<1x1xf32, #tpu.memory_space<vmem>>, vector<1x1xf32>,
    return
  }
}

</mosaic_0001>

<llo_original>
// kernel: tpu_custom_call.1
$region0: #{tpu_custom_call.1}
  #allocation0 [shape = 'u32[]', space=smem, size = 0x4, offset = 0x4, fixed_abs, tag = 'smem constant byte address 0x4 - core index']
  #allocation1 [shape = 'u32[144,128]{1,0:T(1,128)}', space=vmem, size = 0x12000, scoped, tag = 'internal scratch']
  #allocation2 [shape = 'f32[1,1]{1,0:T(1,128)S(1)}', space=vmem, size = 0x200, scoped, tag = 'scoped memory for tpu_custom_call.1']
  #allocation3 [shape = 'f32[1,1]{1,0:T(1,128)S(1)}', space=vmem, size = 0x200, scoped, tag = 'scoped memory for tpu_custom_call.1']
  %s0 = inlined_call_operand.hbm [shape: bf16[16,20], index: 0, kind: input, shape index: {}]
  %s1 = inlined_call_operand.vmem [shape: f32[1,32], index: 1, kind: input, shape index: {}]
  %s2 = inlined_call_operand.hbm [shape: f32[1,32], index: 2, kind: input, shape index: {}]
  %s3 = inlined_call_operand.vmem [shape: bf16[32,128], index: 3, kind: input, shape index: {}]
  %s4 = inlined_call_operand.hbm [shape: bf16[32,128], index: 4, kind: input, shape index: {}]
  %s5 = inlined_call_operand.hbm [shape: f32[1,128], index: 5, kind: input, shape index: {}]
  %s6 = inlined_call_operand.hbm [shape: bf16[32,128], index: 6, kind: input, shape index: {}]
  %s7 = inlined_call_operand.vmem [shape: bf16[32,128], index: 7, kind: input, shape index: {}]
  %s8 = inlined_call_operand.hbm [shape: bf16[32,128], index: 8, kind: input, shape index: {}]
  %s9 = inlined_call_operand.hbm [shape: f32[1,128], index: 9, kind: input, shape index: {}]
  %s10 = inlined_call_operand.hbm [shape: bf16[32,32], index: 10, kind: input, shape index: {}]
  %s11 = inlined_call_operand.hbm [shape: f32[1,32], index: 11, kind: input, shape index: {}]
  %s12 = inlined_call_operand.vmem [shape: bf16[32,32], index: 12, kind: input, shape index: {}]
  %s13 = inlined_call_operand.vmem [shape: f32[1,32], index: 13, kind: input, shape index: {}]
  %s14 = inlined_call_operand.vmem [shape: f32[1,32], index: 14, kind: input, shape index: {}]
  %s15 = inlined_call_operand.<no memory space> [shape: f32[1,1], index: 15, kind: input, shape index: {}]
  %s16 = inlined_call_operand.vmem [shape: f32[1,32], index: 16, kind: input, shape index: {}]
  %s17 = inlined_call_operand.<no memory space> [shape: f32[1,1], index: 17, kind: input, shape index: {}]
  %s18 = inlined_call_operand.vmem [shape: f32[8,1], index: 18, kind: output, shape index: {0}]
  %s19 = inlined_call_operand.hbm [shape: f32[1,1], index: 19, kind: output, shape index: {1}]
  %20 = xla_tuple %s18, %s19
  %s21 = sld [smem:[#allocation0]]
  $region126: #{tpu_custom_call.1} parent=0
    _
  %s23 = ssub.s32 1, %s21
  %s24 = scalar_select 0, %s23, %s21
  %v25 = vstv %s15
  %26 = vst [vmem:[#allocation2] sm:$0x1] %v25
  %v27 = vstv %s17
  %28 = vst [vmem:[#allocation3] sm:$0x1] %v27
  $region1: #{tpu_custom_call.1} parent=0
    #allocation4 [shape = 'u8[4096]{0}', space=vmem, size = 0x1000, scoped, tag = 'input window, operand 0, single buffered']
    #allocation5 [shape = 's32[1]{0}', space=sflag, size = 0x4, scoped, tag = 'scoped memory for tpu_custom_call.1']
    #allocation6 [shape = 's32[1]{0}', space=sflag, size = 0x4, scoped, tag = 'scoped memory for tpu_custom_call.1']
    #allocation7 [shape = 'u8[512]{0}', space=vmem, size = 0x400, scoped, tag = 'input window, operand 2, single buffered']
    #allocation8 [shape = 's32[1]{0}', space=sflag, size = 0x4, scoped, tag = 'scoped memory for tpu_custom_call.1']
    #allocation9 [shape = 'u8[8192]{0}', space=vmem, size = 0x2000, scoped, tag = 'input window, operand 4, single buffered']
    #allocation10 [shape = 'u8[512]{0}', space=vmem, size = 0x400, scoped, tag = 'input window, operand 5, single buffered']
    #allocation11 [shape = 's32[1]{0}', space=sflag, size = 0x4, scoped, tag = 'scoped memory for tpu_custom_call.1']
    #allocation12 [shape = 'u8[8192]{0}', space=vmem, size = 0x2000, scoped, tag = 'input window, operand 6, single buffered']
    #allocation13 [shape = 'u8[8192]{0}', space=vmem, size = 0x2000, scoped, tag = 'input window, operand 8, single buffered']
    #allocation14 [shape = 's32[1]{0}', space=sflag, size = 0x4, scoped, tag = 'scoped memory for tpu_custom_call.1']
    #allocation15 [shape = 'u8[512]{0}', space=vmem, size = 0x400, scoped, tag = 'input window, operand 9, single buffered']
    #allocation16 [shape = 'u8[8192]{0}', space=vmem, size = 0x2000, scoped, tag = 'input window, operand 10, single buffered']
    #allocation17 [shape = 's32[1]{0}', space=sflag, size = 0x4, scoped, tag = 'scoped memory for tpu_custom_call.1']
    #allocation18 [shape = 'u8[512]{0}', space=vmem, size = 0x400, scoped, tag = 'input window, operand 11, single buffered']
    #allocation19 [shape = 'u8[512]{0}', space=vmem, size = 0x400, scoped, tag = 'output window, operand 1, single buffered']
    %29 = vsyncpa [#allocation5], 0
    %30 = vsyncpa [#allocation8], 0
    %31 = vsyncpa [#allocation11], 0
    %32 = vsyncpa [#allocation14], 0
    %33 = vsyncpa [#allocation17], 0
    %34 = vsyncpa [#allocation6], 0
    // Predicated region
    $region2: #{tpu_custom_call.1} parent=1 // pred_check
      _
    $region3: #{tpu_custom_call.1} parent=1 // pred_check_branch
      %36 = sbr.rel (0) target = $region5
    $region4: #{tpu_custom_call.1} parent=1 // pred_region
      %s38 = ssub.s32 128, 128
      %39 = vsyncadd [#allocation5], %s38
      %s40 = sshll.u32 [#allocation4], 4
      %s41 = int_to_ptr.vmem [resolvable:$true] %s40
      %46 = dma.hbm_to_vmem [thread:$0]  %s0, 128, %s41, [#allocation5], 64, 64, 4
    $region5: #{tpu_custom_call.1} parent=1 // pred_fallthru
      _
    // Predicated region
    $region6: #{tpu_custom_call.1} parent=1 // pred_check
      _
    $region7: #{tpu_custom_call.1} parent=1 // pred_check_branch
      %48 = sbr.rel (0) target = $region9
    $region8: #{tpu_custom_call.1} parent=1 // pred_region
      _
    $region9: #{tpu_custom_call.1} parent=1 // pred_fallthru
      _
    // Predicated region
    $region10: #{tpu_custom_call.1} parent=1 // pred_check
      _
    $region11: #{tpu_custom_call.1} parent=1 // pred_check_branch
      %50 = sbr.rel (0) target = $region13
    $region12: #{tpu_custom_call.1} parent=1 // pred_region
      %s52 = ssub.s32 16, 16
      %53 = vsyncadd [#allocation8], %s52
      %s55 = sshll.u32 [#allocation7], 4
      %s56 = int_to_ptr.vmem [resolvable:$true] %s55
      %58 = dma.hbm_to_vmem [thread:$0]  %s2, 16, %s56, [#allocation8]
    $region13: #{tpu_custom_call.1} parent=1 // pred_fallthru
      _
    // Predicated region
    $region14: #{tpu_custom_call.1} parent=1 // pred_check
      _
    $region15: #{tpu_custom_call.1} parent=1 // pred_check_branch
      %60 = sbr.rel (0) target = $region17
    $region16: #{tpu_custom_call.1} parent=1 // pred_region
      _
    $region17: #{tpu_custom_call.1} parent=1 // pred_fallthru
      _
    // Predicated region
    $region18: #{tpu_custom_call.1} parent=1 // pred_check
      _
    $region19: #{tpu_custom_call.1} parent=1 // pred_check_branch
      %62 = sbr.rel (0) target = $region21
    $region20: #{tpu_custom_call.1} parent=1 // pred_region
      %s64 = ssub.s32 256, 256
      %65 = vsyncadd [#allocation8], %s64
      %s66 = sshll.u32 [#allocation9], 4
      %s67 = int_to_ptr.vmem [resolvable:$true] %s66
      %72 = dma.hbm_to_vmem [thread:$0]  %s4, 256, %s67, [#allocation8], 64, 64, 4
    $region21: #{tpu_custom_call.1} parent=1 // pred_fallthru
      _
    // Predicated region
    $region22: #{tpu_custom_call.1} parent=1 // pred_check
      _
    $region23: #{tpu_custom_call.1} parent=1 // pred_check_branch
      %74 = sbr.rel (0) target = $region25
    $region24: #{tpu_custom_call.1} parent=1 // pred_region
      %s76 = ssub.s32 16, 16
      %77 = vsyncadd [#allocation11], %s76
      %s79 = sshll.u32 [#allocation10], 4
      %s80 = int_to_ptr.vmem [resolvable:$true] %s79
      %82 = dma.hbm_to_vmem [thread:$0]  %s5, 16, %s80, [#allocation11]
    $region25: #{tpu_custom_call.1} parent=1 // pred_fallthru
      _
    // Predicated region
    $region26: #{tpu_custom_call.1} parent=1 // pred_check
      _
    $region27: #{tpu_custom_call.1} parent=1 // pred_check_branch
      %84 = sbr.rel (0) target = $region29
    $region28: #{tpu_custom_call.1} parent=1 // pred_region
      %s86 = ssub.s32 256, 256
      %87 = vsyncadd [#allocation11], %s86
      %s88 = sshll.u32 [#allocation12], 4
      %s89 = int_to_ptr.vmem [resolvable:$true] %s88
      %94 = dma.hbm_to_vmem [thread:$0]  %s6, 256, %s89, [#allocation11], 64, 64, 4
    $region29: #{tpu_custom_call.1} parent=1 // pred_fallthru
      _
    // Predicated region
    $region30: #{tpu_custom_call.1} parent=1 // pred_check
      _
    $region31: #{tpu_custom_call.1} parent=1 // pred_check_branch
      %96 = sbr.rel (0) target = $region33
    $region32: #{tpu_custom_call.1} parent=1 // pred_region
      _
    $region33: #{tpu_custom_call.1} parent=1 // pred_fallthru
      _
    // Predicated region
    $region34: #{tpu_custom_call.1} parent=1 // pred_check
      _
    $region35: #{tpu_custom_call.1} parent=1 // pred_check_branch
      %98 = sbr.rel (0) target = $region37
    $region36: #{tpu_custom_call.1} parent=1 // pred_region
      %s100 = ssub.s32 256, 256
      %101 = vsyncadd [#allocation14], %s100
      %s102 = sshll.u32 [#allocation13], 4
      %s103 = int_to_ptr.vmem [resolvable:$true] %s102
      %108 = dma.hbm_to_vmem [thread:$0]  %s8, 256, %s103, [#allocation14], 64, 64, 4
    $region37: #{tpu_custom_call.1} parent=1 // pred_fallthru
      _
    // Predicated region
    $region38: #{tpu_custom_call.1} parent=1 // pred_check
      _
    $region39: #{tpu_custom_call.1} parent=1 // pred_check_branch
      %110 = sbr.rel (0) target = $region41
    $region40: #{tpu_custom_call.1} parent=1 // pred_region
      %s112 = ssub.s32 16, 16
      %113 = vsyncadd [#allocation14], %s112
      %s115 = sshll.u32 [#allocation15], 4
      %s116 = int_to_ptr.vmem [resolvable:$true] %s115
      %118 = dma.hbm_to_vmem [thread:$0]  %s9, 16, %s116, [#allocation14]
    $region41: #{tpu_custom_call.1} parent=1 // pred_fallthru
      _
    // Predicated region
    $region42: #{tpu_custom_call.1} parent=1 // pred_check
      _
    $region43: #{tpu_custom_call.1} parent=1 // pred_check_branch
      %120 = sbr.rel (0) target = $region45
    $region44: #{tpu_custom_call.1} parent=1 // pred_region
      %s122 = ssub.s32 256, 256
      %123 = vsyncadd [#allocation17], %s122
      %s124 = sshll.u32 [#allocation16], 4
      %s125 = int_to_ptr.vmem [resolvable:$true] %s124
      %130 = dma.hbm_to_vmem [thread:$0]  %s10, 256, %s125, [#allocation17], 64, 64, 4
    $region45: #{tpu_custom_call.1} parent=1 // pred_fallthru
      _
    // Predicated region
    $region46: #{tpu_custom_call.1} parent=1 // pred_check
      _
    $region47: #{tpu_custom_call.1} parent=1 // pred_check_branch
      %132 = sbr.rel (0) target = $region49
    $region48: #{tpu_custom_call.1} parent=1 // pred_region
      %s134 = ssub.s32 16, 16
      %135 = vsyncadd [#allocation17], %s134
      %s137 = sshll.u32 [#allocation18], 4
      %s138 = int_to_ptr.vmem [resolvable:$true] %s137
      %140 = dma.hbm_to_vmem [thread:$0]  %s11, 16, %s138, [#allocation17]
    $region49: #{tpu_custom_call.1} parent=1 // pred_fallthru
      _
    // Predicated region
    $region50: #{tpu_custom_call.1} parent=1 // pred_check
      _
    $region51: #{tpu_custom_call.1} parent=1 // pred_check_branch
      %142 = sbr.rel (0) target = $region53
    $region52: #{tpu_custom_call.1} parent=1 // pred_region
      _
    $region53: #{tpu_custom_call.1} parent=1 // pred_fallthru
      _
    // Predicated region
    $region54: #{tpu_custom_call.1} parent=1 // pred_check
      _
    $region55: #{tpu_custom_call.1} parent=1 // pred_check_branch
      %144 = sbr.rel (0) target = $region57
    $region56: #{tpu_custom_call.1} parent=1 // pred_region
      _
    $region57: #{tpu_custom_call.1} parent=1 // pred_fallthru
      _
    // Predicated region
    $region58: #{tpu_custom_call.1} parent=1 // pred_check
      _
    $region59: #{tpu_custom_call.1} parent=1 // pred_check_branch
      %146 = sbr.rel (0) target = $region61
    $region60: #{tpu_custom_call.1} parent=1 // pred_region
      _
    $region61: #{tpu_custom_call.1} parent=1 // pred_fallthru
      _
    // Predicated region
    $region62: #{tpu_custom_call.1} parent=1 // pred_check
      _
    $region63: #{tpu_custom_call.1} parent=1 // pred_check_branch
      %148 = sbr.rel (0) target = $region65
    $region64: #{tpu_custom_call.1} parent=1 // pred_region
      _
    $region65: #{tpu_custom_call.1} parent=1 // pred_fallthru
      _
    // Predicated region
    $region66: #{tpu_custom_call.1} parent=1 // pred_check
      _
    $region67: #{tpu_custom_call.1} parent=1 // pred_check_branch
      %150 = sbr.rel (0) target = $region69
    $region68: #{tpu_custom_call.1} parent=1 // pred_region
      _
    $region69: #{tpu_custom_call.1} parent=1 // pred_fallthru
      _
    // Predicated region
    $region70: #{tpu_custom_call.1} parent=1 // pred_check
      _
    $region71: #{tpu_custom_call.1} parent=1 // pred_check_branch
      %152 = sbr.rel (0) target = $region73
    $region72: #{tpu_custom_call.1} parent=1 // pred_region
      _
    $region73: #{tpu_custom_call.1} parent=1 // pred_fallthru
      _
    // Predicated region
    $region74: #{tpu_custom_call.1} parent=1 // pred_check
      _
    $region75: #{tpu_custom_call.1} parent=1 // pred_check_branch
      %154 = sbr.rel (0) target = $region77
    $region76: #{tpu_custom_call.1} parent=1 // pred_region
      %155 = dma.done [#allocation5], 128
    $region77: #{tpu_custom_call.1} parent=1 // pred_fallthru
      _
    // Predicated region
    $region78: #{tpu_custom_call.1} parent=1 // pred_check
      _
    $region79: #{tpu_custom_call.1} parent=1 // pred_check_branch
      %157 = sbr.rel (0) target = $region81
    $region80: #{tpu_custom_call.1} parent=1 // pred_region
      %158 = dma.done [#allocation8], 16
    $region81: #{tpu_custom_call.1} parent=1 // pred_fallthru
      _
    // Predicated region
    $region82: #{tpu_custom_call.1} parent=1 // pred_check
      _
    $region83: #{tpu_custom_call.1} parent=1 // pred_check_branch
      %160 = sbr.rel (0) target = $region85
    $region84: #{tpu_custom_call.1} parent=1 // pred_region
      %161 = dma.done [#allocation8], 256
    $region85: #{tpu_custom_call.1} parent=1 // pred_fallthru
      _
    // Predicated region
    $region86: #{tpu_custom_call.1} parent=1 // pred_check
      _
    $region87: #{tpu_custom_call.1} parent=1 // pred_check_branch
      %163 = sbr.rel (0) target = $region89
    $region88: #{tpu_custom_call.1} parent=1 // pred_region
      %164 = dma.done [#allocation11], 16
    $region89: #{tpu_custom_call.1} parent=1 // pred_fallthru
      _
    // Predicated region
    $region90: #{tpu_custom_call.1} parent=1 // pred_check
      _
    $region91: #{tpu_custom_call.1} parent=1 // pred_check_branch
      %166 = sbr.rel (0) target = $region93
    $region92: #{tpu_custom_call.1} parent=1 // pred_region
      %167 = dma.done [#allocation11], 256
    $region93: #{tpu_custom_call.1} parent=1 // pred_fallthru
      _
    // Predicated region
    $region94: #{tpu_custom_call.1} parent=1 // pred_check
      _
    $region95: #{tpu_custom_call.1} parent=1 // pred_check_branch
      %169 = sbr.rel (0) target = $region97
    $region96: #{tpu_custom_call.1} parent=1 // pred_region
      %170 = dma.done [#allocation14], 256
    $region97: #{tpu_custom_call.1} parent=1 // pred_fallthru
      _
    // Predicated region
    $region98: #{tpu_custom_call.1} parent=1 // pred_check
      _
    $region99: #{tpu_custom_call.1} parent=1 // pred_check_branch
      %172 = sbr.rel (0) target = $region101
    $region100: #{tpu_custom_call.1} parent=1 // pred_region
      %173 = dma.done [#allocation14], 16
    $region101: #{tpu_custom_call.1} parent=1 // pred_fallthru
      _
    // Predicated region
    $region102: #{tpu_custom_call.1} parent=1 // pred_check
      _
    $region103: #{tpu_custom_call.1} parent=1 // pred_check_branch
      %175 = sbr.rel (0) target = $region105
    $region104: #{tpu_custom_call.1} parent=1 // pred_region
      %176 = dma.done [#allocation17], 256
    $region105: #{tpu_custom_call.1} parent=1 // pred_fallthru
      _
    // Predicated region
    $region106: #{tpu_custom_call.1} parent=1 // pred_check
      _
    $region107: #{tpu_custom_call.1} parent=1 // pred_check_branch
      %178 = sbr.rel (0) target = $region109
    $region108: #{tpu_custom_call.1} parent=1 // pred_region
      %179 = dma.done [#allocation17], 16
    $region109: #{tpu_custom_call.1} parent=1 // pred_fallthru
      _
    %v181 = vld [vmem:[#allocation4] sm:$0xf]
    %v182 = vld [vmem:[#allocation4 + $0x4] sm:$0xf]
    %v183 = vld [vmem:[%s3] sm:$0xf]
    %v184 = vld [vmem:[%s3 + $0x4] sm:$0xf]
    %v185 = vld [vmem:[%s3 + $0x8] sm:$0xf]
    %v186 = vld [vmem:[%s3 + $0xc] sm:$0xf]
    %v187 = vld [vmem:[#allocation9] sm:$0xf]
    %v188 = vld [vmem:[#allocation9 + $0x4] sm:$0xf]
    %v189 = vld [vmem:[#allocation9 + $0x8] sm:$0xf]
    %v190 = vld [vmem:[#allocation9 + $0xc] sm:$0xf]
    %v191 = vld [vmem:[#allocation10] sm:$0x1]
    %v192 = vld [vmem:[#allocation12] sm:$0xf]
    %v193 = vld [vmem:[#allocation12 + $0x4] sm:$0xf]
    %v194 = vld [vmem:[#allocation12 + $0x8] sm:$0xf]
    %v195 = vld [vmem:[#allocation12 + $0xc] sm:$0xf]
    %v196 = vld [vmem:[%s7] sm:$0xf]
    %v197 = vld [vmem:[%s7 + $0x4] sm:$0xf]
    %v198 = vld [vmem:[%s7 + $0x8] sm:$0xf]
    %v199 = vld [vmem:[%s7 + $0xc] sm:$0xf]
    %v200 = vld [vmem:[#allocation13] sm:$0xf]
    %v201 = vld [vmem:[#allocation13 + $0x4] sm:$0xf]
    %v202 = vld [vmem:[#allocation13 + $0x8] sm:$0xf]
    %v203 = vld [vmem:[#allocation13 + $0xc] sm:$0xf]
    %v204 = vld [vmem:[#allocation15] sm:$0x1]
    %v205 = vld [vmem:[%s1] sm:$0x1]
    %v207 = vlaneseq
    %v208 = vshrl.u32 %v207, 7
    %v209 = vsub.s32 0, %v208
    %v210 = vrot.slane %v205, %v209
    %v212 = vld [vmem:[#allocation7] sm:$0x1]
    %v214 = vlaneseq
    %v215 = vshrl.u32 %v214, 7
    %v216 = vsub.s32 0, %v215
    %v217 = vrot.slane %v212, %v216
    %v219 = vpack.c.bf16 %v210, %v210
    %v222 = vunpack.c.l.b16 %v181
    %v223 = vunpack.c.l.b16 %v182
    %v224 = vpack.c.b16 %v223, %v222
    %226 = vxpose.xlu0.c.b16.start [1/8] %v224, 128
    %227 = vxpose.xlu0.c.b16.cont [2/8] 0, 128
    %228 = vxpose.xlu0.c.b16.cont [3/8] 0, 128
    %229 = vxpose.xlu0.c.b16.cont [4/8] 0, 128
    %230 = vxpose.xlu0.c.b16.cont [5/8] 0, 128
    %231 = vxpose.xlu0.c.b16.cont [6/8] 0, 128
    %232 = vxpose.xlu0.c.b16.cont [7/8] 0, 128
    %233 = vxpose.xlu0.c.b16.end [8/8] 0, 128
    %v234 = vpop.trf.xlu0
    %v235 = vpop.trf.xlu0
    %v236 = vpop.trf.xlu0
    %v237 = vpop.trf.xlu0
    %v238 = vpop.trf.xlu0
    %v239 = vpop.trf.xlu0
    %v240 = vpop.trf.xlu0
    %v241 = vpop.trf.xlu0
    %vm242 = vcmask 130048
    %v244 = vsel %vm242, %v234, 0
    %v247 = vsel %vm242, %v235, 0
    %249 = vmatprep.subr.bf16.mxu0 0
    %250 = vmatpush1.bf16.msra.mxu0 %v219
    %251 = vmatprep.subr.bf16.mxu0 0
    %252 = vmatpush1.bf16.msra.mxu0 0
    %253 = vmatprep.subr.bf16.mxu0 0
    %254 = vmatpush1.bf16.msra.mxu0 0
    %255 = vmatprep.subr.bf16.mxu0 0
    %256 = vmatpush1.bf16.msra.mxu0 0
    %257 = vmatprep.subr.bf16.mxu0 0
    %258 = vmatpush1.bf16.msra.mxu0 0
    %259 = vmatprep.subr.bf16.mxu0 0
    %260 = vmatpush1.bf16.msra.mxu0 0
    %261 = vmatprep.subr.bf16.mxu0 0
    %262 = vmatpush1.bf16.msra.mxu0 0
    %263 = vmatprep.subr.bf16.mxu0 0
    %264 = vmatpush1.bf16.msra.mxu0 0
    %265 = vmatprep.subr.bf16.mxu0 0
    %266 = vmatpush1.bf16.msra.mxu0 0
    %267 = vmatprep.subr.bf16.mxu0 0
    %268 = vmatpush1.bf16.msra.mxu0 0
    %269 = vmatprep.subr.bf16.mxu0 0
    %270 = vmatpush1.bf16.msra.mxu0 0
    %271 = vmatprep.subr.bf16.mxu0 0
    %272 = vmatpush1.bf16.msra.mxu0 0
    %273 = vmatprep.subr.bf16.mxu0 0
    %274 = vmatpush1.bf16.msra.mxu0 0
    %275 = vmatprep.subr.bf16.mxu0 0
    %276 = vmatpush1.bf16.msra.mxu0 0
    %277 = vmatprep.subr.bf16.mxu0 0
    %278 = vmatpush1.bf16.msra.mxu0 0
    %279 = vmatprep.subr.bf16.mxu0 0
    %280 = vmatpush1.bf16.msra.mxu0 0
    %281 = vmatprep.mubr.bf16.mxu0 0
    %282 = vmatmul.mubr.bf16.gmra.mrb[0].mxu0 %v244
    %v283 = vpop.f32.mrb[0].mxu0
    %v284 = vadd.f32 0.0, %v283
    %v285 = vpop.f32.mrb[0].mxu0
    %v286 = vpop.f32.mrb[0].mxu0
    %v287 = vadd.f32 0.0, %v286
    %v288 = vpop.f32.mrb[0].mxu0
    %289 = vmatprep.mubr.bf16.mxu0 0
    %290 = vmatmul.mubr.bf16.gmra.mrb[0].mxu0 %v247
    %v291 = vpop.f32.mrb[0].mxu0
    %v292 = vadd.f32 0.0, %v291
    %v293 = vpop.f32.mrb[0].mxu0
    %v294 = vpop.f32.mrb[0].mxu0
    %v295 = vpop.f32.mrb[0].mxu0
    %296 = vdwg.mxu0
    %v297 = vpack.c.bf16 %v287, %v284
    %v298 = vpack.c.bf16 %v292, %v292
    %v299 = vpack.c.bf16 %v217, %v217
    %v304 = vunpack.c.l.b16 %v187
    %v305 = vunpack.c.l.b16 %v188
    %v306 = vunpack.c.l.b16 %v189
    %v307 = vunpack.c.l.b16 %v190
    %v308 = vpack.c.b16 %v305, %v304
    %v309 = vpack.c.b16 %v307, %v306
    %vm312 = vcmask 261120
    %v314 = vsel %vm312, %v299, 0
    %316 = vmatprep.subr.bf16.mxu0 0
    %317 = vmatpush1.bf16.msra.mxu0 %v308
    %318 = vmatprep.subr.bf16.mxu0 0
    %319 = vmatpush1.bf16.msra.mxu0 %v309
    %320 = vmatprep.subr.bf16.mxu0 0
    %321 = vmatpush1.bf16.msra.mxu0 0
    %322 = vmatprep.subr.bf16.mxu0 0
    %323 = vmatpush1.bf16.msra.mxu0 0
    %324 = vmatprep.subr.bf16.mxu0 0
    %325 = vmatpush1.bf16.msra.mxu0 0
    %326 = vmatprep.subr.bf16.mxu0 0
    %327 = vmatpush1.bf16.msra.mxu0 0
    %328 = vmatprep.subr.bf16.mxu0 0
    %329 = vmatpush1.bf16.msra.mxu0 0
    %330 = vmatprep.subr.bf16.mxu0 0
    %331 = vmatpush1.bf16.msra.mxu0 0
    %332 = vmatprep.subr.bf16.mxu0 0
    %333 = vmatpush1.bf16.msra.mxu0 0
    %334 = vmatprep.subr.bf16.mxu0 0
    %335 = vmatpush1.bf16.msra.mxu0 0
    %336 = vmatprep.subr.bf16.mxu0 0
    %337 = vmatpush1.bf16.msra.mxu0 0
    %338 = vmatprep.subr.bf16.mxu0 0
    %339 = vmatpush1.bf16.msra.mxu0 0
    %340 = vmatprep.subr.bf16.mxu0 0
    %341 = vmatpush1.bf16.msra.mxu0 0
    %342 = vmatprep.subr.bf16.mxu0 0
    %343 = vmatpush1.bf16.msra.mxu0 0
    %344 = vmatprep.subr.bf16.mxu0 0
    %345 = vmatpush1.bf16.msra.mxu0 0
    %346 = vmatprep.subr.bf16.mxu0 0
    %347 = vmatpush1.bf16.msra.mxu0 0
    %348 = vmatprep.mubr.bf16.mxu0 0
    %349 = vmatmul.mubr.bf16.gmra.mrb[0].mxu0 %v314
    %v350 = vpop.f32.mrb[0].mxu0
    %v351 = vadd.f32 0.0, %v350
    %v352 = vpop.f32.mrb[0].mxu0
    %v353 = vpop.f32.mrb[0].mxu0
    %v354 = vadd.f32 0.0, %v353
    %v355 = vpop.f32.mrb[0].mxu0
    %356 = vmatprep.mubr.bf16.mxu0 0
    %357 = vmatmul.mubr.bf16.gmra.mrb[0].mxu0 %v314
    %v358 = vpop.f32.mrb[0].mxu0
    %v359 = vadd.f32 0.0, %v358
    %v360 = vpop.f32.mrb[0].mxu0
    %v361 = vpop.f32.mrb[0].mxu0
    %v362 = vpop.f32.mrb[0].mxu0
    %363 = vdwg.mxu0
    %v368 = vunpack.c.l.b16 %v183
    %v369 = vunpack.c.l.b16 %v184
    %v370 = vunpack.c.l.b16 %v185
    %v371 = vunpack.c.l.b16 %v186
    %v372 = vpack.c.b16 %v369, %v368
    %v373 = vpack.c.b16 %v371, %v370
    %v377 = vsel %vm312, %v297, 0
    %v380 = vsel %vm312, %v298, 0
    %382 = vmatprep.subr.bf16.mxu0 0
    %383 = vmatpush1.bf16.msra.mxu0 %v372
    %384 = vmatprep.subr.bf16.mxu0 0
    %385 = vmatpush1.bf16.msra.mxu0 %v373
    %386 = vmatprep.subr.bf16.mxu0 0
    %387 = vmatpush1.bf16.msra.mxu0 0
    %388 = vmatprep.subr.bf16.mxu0 0
    %389 = vmatpush1.bf16.msra.mxu0 0
    %390 = vmatprep.subr.bf16.mxu0 0
    %391 = vmatpush1.bf16.msra.mxu0 0
    %392 = vmatprep.subr.bf16.mxu0 0
    %393 = vmatpush1.bf16.msra.mxu0 0
    %394 = vmatprep.subr.bf16.mxu0 0
    %395 = vmatpush1.bf16.msra.mxu0 0
    %396 = vmatprep.subr.bf16.mxu0 0
    %397 = vmatpush1.bf16.msra.mxu0 0
    %398 = vmatprep.subr.bf16.mxu0 0
    %399 = vmatpush1.bf16.msra.mxu0 0
    %400 = vmatprep.subr.bf16.mxu0 0
    %401 = vmatpush1.bf16.msra.mxu0 0
    %402 = vmatprep.subr.bf16.mxu0 0
    %403 = vmatpush1.bf16.msra.mxu0 0
    %404 = vmatprep.subr.bf16.mxu0 0
    %405 = vmatpush1.bf16.msra.mxu0 0
    %406 = vmatprep.subr.bf16.mxu0 0
    %407 = vmatpush1.bf16.msra.mxu0 0
    %408 = vmatprep.subr.bf16.mxu0 0
    %409 = vmatpush1.bf16.msra.mxu0 0
    %410 = vmatprep.subr.bf16.mxu0 0
    %411 = vmatpush1.bf16.msra.mxu0 0
    %412 = vmatprep.subr.bf16.mxu0 0
    %413 = vmatpush1.bf16.msra.mxu0 0
    %414 = vmatprep.mubr.bf16.mxu0 0
    %415 = vmatmul.mubr.bf16.gmra.mrb[0].mxu0 %v377
    %v416 = vpop.f32.mrb[0].mxu0
    %v417 = vadd.f32 %v351, %v416
    %v418 = vpop.f32.mrb[0].mxu0
    %v419 = vpop.f32.mrb[0].mxu0
    %v420 = vadd.f32 %v354, %v419
    %v421 = vpop.f32.mrb[0].mxu0
    %422 = vmatprep.mubr.bf16.mxu0 0
    %423 = vmatmul.mubr.bf16.gmra.mrb[0].mxu0 %v380
    %v424 = vpop.f32.mrb[0].mxu0
    %v425 = vadd.f32 %v359, %v424
    %v426 = vpop.f32.mrb[0].mxu0
    %v427 = vpop.f32.mrb[0].mxu0
    %v428 = vpop.f32.mrb[0].mxu0
    %429 = vdwg.mxu0
    %v431 = vlaneseq
    %v432 = vshrl.u32 %v431, 7
    %v433 = vsub.s32 0, %v432
    %v434 = vrot.slane %v191, %v433
    %v436 = vadd.f32 %v417, %v434
    %v437 = vadd.f32 %v420, %v434
    %v438 = vadd.f32 %v425, %v434
    %v439 = vxor.u32 %v436, 2147483648
    %v440 = vxor.u32 %v437, 2147483648
    %v441 = vxor.u32 %v438, 2147483648
    %v442 = vmul.f32 %v439, 1.442695
    %v443 = vpow.pop %v442
    %v444 = vmul.f32 %v440, 1.442695
    %v445 = vpow.pop %v444
    %v446 = vmul.f32 %v441, 1.442695
    %v447 = vpow.pop %v446
    %v448 = vadd.f32 %v443, 1.0
    %v449 = vadd.f32 %v445, 1.0
    %v450 = vadd.f32 %v447, 1.0
    %v451 = vrcp.pop %v448
    %v452 = vmul.f32 1.0, %v451
    %v453 = vrcp.pop %v449
    %v454 = vmul.f32 1.0, %v453
    %v455 = vrcp.pop %v450
    %v456 = vmul.f32 1.0, %v455
    %v457 = vtanh.pop %v436
    %v458 = vtanh.pop %v437
    %v459 = vtanh.pop %v438
    %v460 = vmul.f32 %v452, 0.0
    %v461 = vmul.f32 %v454, 0.0
    %v462 = vmul.f32 %v456, 0.0
    %466 = vrot.lane.b32.xlu0 %v457, 64
    %v467 = vpop.permute.xlu0 %466
    %468 = vrot.lane.b32.xlu0 %v458, 64
    %v469 = vpop.permute.xlu0 %468
    %470 = vrot.lane.b32.xlu0 %v459, 64
    %v471 = vpop.permute.xlu0 %470
    %v475 = vmul.f32 %v452, %v467
    %v476 = vmul.f32 %v454, %v469
    %v477 = vmul.f32 %v456, %v471
    %481 = vrot.lane.b32.xlu0 %v475, 32
    %v482 = vpop.permute.xlu0 %481
    %483 = vrot.lane.b32.xlu0 %v476, 32
    %v484 = vpop.permute.xlu0 %483
    %485 = vrot.lane.b32.xlu0 %v477, 32
    %v486 = vpop.permute.xlu0 %485
    %v490 = vadd.f32 %v460, %v482
    %v491 = vadd.f32 %v461, %v484
    %v492 = vadd.f32 %v462, %v486
    %v493 = vtanh.pop %v490
    %v494 = vtanh.pop %v491
    %v495 = vtanh.pop %v492
    %499 = vrot.lane.b32.xlu0 %v493, 64
    %v500 = vpop.permute.xlu0 %499
    %501 = vrot.lane.b32.xlu0 %v494, 64
    %v502 = vpop.permute.xlu0 %501
    %503 = vrot.lane.b32.xlu0 %v495, 64
    %v504 = vpop.permute.xlu0 %503
    %v508 = vmul.f32 %v452, %v500
    %v509 = vmul.f32 %v454, %v502
    %v510 = vmul.f32 %v456, %v504
    %v511 = vpack.c.bf16 %v509, %v508
    %v512 = vpack.c.bf16 %v510, %v510
    %515 = vrot.lane.b32.xlu0 %v511, 32
    %v516 = vpop.permute.xlu0 %515
    %517 = vrot.lane.b32.xlu0 %v512, 32
    %v518 = vpop.permute.xlu0 %517
    %vm520 = vcmask 162816
    %v522 = vsel %vm520, %v224, 0
    %vm524 = vcmask 1041408
    %v526 = vsel %vm524, %v518, 0
    %528 = vmatprep.subr.bf16.mxu0 0
    %529 = vmatpush1.bf16.msra.mxu0 %v516
    %530 = vmatprep.subr.bf16.mxu0 0
    %531 = vmatpush1.bf16.msra.mxu0 %v526
    %532 = vmatprep.subr.bf16.mxu0 0
    %533 = vmatpush1.bf16.msra.mxu0 0
    %534 = vmatprep.subr.bf16.mxu0 0
    %535 = vmatpush1.bf16.msra.mxu0 0
    %536 = vmatprep.subr.bf16.mxu0 0
    %537 = vmatpush1.bf16.msra.mxu0 0
    %538 = vmatprep.subr.bf16.mxu0 0
    %539 = vmatpush1.bf16.msra.mxu0 0
    %540 = vmatprep.subr.bf16.mxu0 0
    %541 = vmatpush1.bf16.msra.mxu0 0
    %542 = vmatprep.subr.bf16.mxu0 0
    %543 = vmatpush1.bf16.msra.mxu0 0
    %544 = vmatprep.subr.bf16.mxu0 0
    %545 = vmatpush1.bf16.msra.mxu0 0
    %546 = vmatprep.subr.bf16.mxu0 0
    %547 = vmatpush1.bf16.msra.mxu0 0
    %548 = vmatprep.subr.bf16.mxu0 0
    %549 = vmatpush1.bf16.msra.mxu0 0
    %550 = vmatprep.subr.bf16.mxu0 0
    %551 = vmatpush1.bf16.msra.mxu0 0
    %552 = vmatprep.subr.bf16.mxu0 0
    %553 = vmatpush1.bf16.msra.mxu0 0
    %554 = vmatprep.subr.bf16.mxu0 0
    %555 = vmatpush1.bf16.msra.mxu0 0
    %556 = vmatprep.subr.bf16.mxu0 0
    %557 = vmatpush1.bf16.msra.mxu0 0
    %558 = vmatprep.subr.bf16.mxu0 0
    %559 = vmatpush1.bf16.msra.mxu0 0
    %560 = vmatprep.mubr.bf16.mxu0 0
    %561 = vmatmul.mubr.bf16.gmra.mrb[0].mxu0 %v522
    %v562 = vpop.f32.mrb[0].mxu0
    %v563 = vadd.f32 0.0, %v562
    %v564 = vpop.f32.mrb[0].mxu0
    %v565 = vpop.f32.mrb[0].mxu0
    %v566 = vadd.f32 0.0, %v565
    %v567 = vpop.f32.mrb[0].mxu0
    %568 = vdwg.mxu0
    %v569 = vpack.c.bf16 %v566, %v563
    %v574 = vunpack.c.l.b16 %v196
    %v575 = vunpack.c.l.b16 %v197
    %v576 = vunpack.c.l.b16 %v198
    %v577 = vunpack.c.l.b16 %v199
    %v578 = vpack.c.b16 %v575, %v574
    %v579 = vpack.c.b16 %v577, %v576
    %v583 = vsel %vm312, %v219, 0
    %585 = vmatprep.subr.bf16.mxu0 0
    %586 = vmatpush1.bf16.msra.mxu0 %v578
    %587 = vmatprep.subr.bf16.mxu0 0
    %588 = vmatpush1.bf16.msra.mxu0 %v579
    %589 = vmatprep.subr.bf16.mxu0 0
    %590 = vmatpush1.bf16.msra.mxu0 0
    %591 = vmatprep.subr.bf16.mxu0 0
    %592 = vmatpush1.bf16.msra.mxu0 0
    %593 = vmatprep.subr.bf16.mxu0 0
    %594 = vmatpush1.bf16.msra.mxu0 0
    %595 = vmatprep.subr.bf16.mxu0 0
    %596 = vmatpush1.bf16.msra.mxu0 0
    %597 = vmatprep.subr.bf16.mxu0 0
    %598 = vmatpush1.bf16.msra.mxu0 0
    %599 = vmatprep.subr.bf16.mxu0 0
    %600 = vmatpush1.bf16.msra.mxu0 0
    %601 = vmatprep.subr.bf16.mxu0 0
    %602 = vmatpush1.bf16.msra.mxu0 0
    %603 = vmatprep.subr.bf16.mxu0 0
    %604 = vmatpush1.bf16.msra.mxu0 0
    %605 = vmatprep.subr.bf16.mxu0 0
    %606 = vmatpush1.bf16.msra.mxu0 0
    %607 = vmatprep.subr.bf16.mxu0 0
    %608 = vmatpush1.bf16.msra.mxu0 0
    %609 = vmatprep.subr.bf16.mxu0 0
    %610 = vmatpush1.bf16.msra.mxu0 0
    %611 = vmatprep.subr.bf16.mxu0 0
    %612 = vmatpush1.bf16.msra.mxu0 0
    %613 = vmatprep.subr.bf16.mxu0 0
    %614 = vmatpush1.bf16.msra.mxu0 0
    %615 = vmatprep.subr.bf16.mxu0 0
    %616 = vmatpush1.bf16.msra.mxu0 0
    %617 = vmatprep.mubr.bf16.mxu0 0
    %618 = vmatmul.mubr.bf16.gmra.mrb[0].mxu0 %v583
    %v619 = vpop.f32.mrb[0].mxu0
    %v620 = vadd.f32 0.0, %v619
    %v621 = vpop.f32.mrb[0].mxu0
    %v622 = vpop.f32.mrb[0].mxu0
    %v623 = vadd.f32 0.0, %v622
    %v624 = vpop.f32.mrb[0].mxu0
    %625 = vdwg.mxu0
    %v630 = vunpack.c.l.b16 %v192
    %v631 = vunpack.c.l.b16 %v193
    %v632 = vunpack.c.l.b16 %v194
    %v633 = vunpack.c.l.b16 %v195
    %v634 = vpack.c.b16 %v631, %v630
    %v635 = vpack.c.b16 %v633, %v632
    %v639 = vsel %vm312, %v569, 0
    %641 = vmatprep.subr.bf16.mxu0 0
    %642 = vmatpush1.bf16.msra.mxu0 %v634
    %643 = vmatprep.subr.bf16.mxu0 0
    %644 = vmatpush1.bf16.msra.mxu0 %v635
    %645 = vmatprep.subr.bf16.mxu0 0
    %646 = vmatpush1.bf16.msra.mxu0 0
    %647 = vmatprep.subr.bf16.mxu0 0
    %648 = vmatpush1.bf16.msra.mxu0 0
    %649 = vmatprep.subr.bf16.mxu0 0
    %650 = vmatpush1.bf16.msra.mxu0 0
    %651 = vmatprep.subr.bf16.mxu0 0
    %652 = vmatpush1.bf16.msra.mxu0 0
    %653 = vmatprep.subr.bf16.mxu0 0
    %654 = vmatpush1.bf16.msra.mxu0 0
    %655 = vmatprep.subr.bf16.mxu0 0
    %656 = vmatpush1.bf16.msra.mxu0 0
    %657 = vmatprep.subr.bf16.mxu0 0
    %658 = vmatpush1.bf16.msra.mxu0 0
    %659 = vmatprep.subr.bf16.mxu0 0
    %660 = vmatpush1.bf16.msra.mxu0 0
    %661 = vmatprep.subr.bf16.mxu0 0
    %662 = vmatpush1.bf16.msra.mxu0 0
    %663 = vmatprep.subr.bf16.mxu0 0
    %664 = vmatpush1.bf16.msra.mxu0 0
    %665 = vmatprep.subr.bf16.mxu0 0
    %666 = vmatpush1.bf16.msra.mxu0 0
    %667 = vmatprep.subr.bf16.mxu0 0
    %668 = vmatpush1.bf16.msra.mxu0 0
    %669 = vmatprep.subr.bf16.mxu0 0
    %670 = vmatpush1.bf16.msra.mxu0 0
    %671 = vmatprep.subr.bf16.mxu0 0
    %672 = vmatpush1.bf16.msra.mxu0 0
    %673 = vmatprep.mubr.bf16.mxu0 0
    %674 = vmatmul.mubr.bf16.gmra.mrb[0].mxu0 %v639
    %v675 = vpop.f32.mrb[0].mxu0
    %v676 = vadd.f32 %v620, %v675
    %v677 = vpop.f32.mrb[0].mxu0
    %v678 = vpop.f32.mrb[0].mxu0
    %v679 = vadd.f32 %v623, %v678
    %v680 = vpop.f32.mrb[0].mxu0
    %681 = vdwg.mxu0
    %v686 = vunpack.c.l.b16 %v200
    %v687 = vunpack.c.l.b16 %v201
    %v688 = vunpack.c.l.b16 %v202
    %v689 = vunpack.c.l.b16 %v203
    %v690 = vpack.c.b16 %v687, %v686
    %v691 = vpack.c.b16 %v689, %v688
    %694 = vmatprep.subr.bf16.mxu0 0
    %695 = vmatpush1.bf16.msra.mxu0 %v690
    %696 = vmatprep.subr.bf16.mxu0 0
    %697 = vmatpush1.bf16.msra.mxu0 %v691
    %698 = vmatprep.subr.bf16.mxu0 0
    %699 = vmatpush1.bf16.msra.mxu0 0
    %700 = vmatprep.subr.bf16.mxu0 0
    %701 = vmatpush1.bf16.msra.mxu0 0
    %702 = vmatprep.subr.bf16.mxu0 0
    %703 = vmatpush1.bf16.msra.mxu0 0
    %704 = vmatprep.subr.bf16.mxu0 0
    %705 = vmatpush1.bf16.msra.mxu0 0
    %706 = vmatprep.subr.bf16.mxu0 0
    %707 = vmatpush1.bf16.msra.mxu0 0
    %708 = vmatprep.subr.bf16.mxu0 0
    %709 = vmatpush1.bf16.msra.mxu0 0
    %710 = vmatprep.subr.bf16.mxu0 0
    %711 = vmatpush1.bf16.msra.mxu0 0
    %712 = vmatprep.subr.bf16.mxu0 0
    %713 = vmatpush1.bf16.msra.mxu0 0
    %714 = vmatprep.subr.bf16.mxu0 0
    %715 = vmatpush1.bf16.msra.mxu0 0
    %716 = vmatprep.subr.bf16.mxu0 0
    %717 = vmatpush1.bf16.msra.mxu0 0
    %718 = vmatprep.subr.bf16.mxu0 0
    %719 = vmatpush1.bf16.msra.mxu0 0
    %720 = vmatprep.subr.bf16.mxu0 0
    %721 = vmatpush1.bf16.msra.mxu0 0
    %722 = vmatprep.subr.bf16.mxu0 0
    %723 = vmatpush1.bf16.msra.mxu0 0
    %724 = vmatprep.subr.bf16.mxu0 0
    %725 = vmatpush1.bf16.msra.mxu0 0
    %726 = vmatprep.mubr.bf16.mxu0 0
    %727 = vmatmul.mubr.bf16.gmra.mrb[0].mxu0 %v583
    %v728 = vpop.f32.mrb[0].mxu0
    %v729 = vadd.f32 0.0, %v728
    %v730 = vpop.f32.mrb[0].mxu0
    %v731 = vpop.f32.mrb[0].mxu0
    %v732 = vadd.f32 0.0, %v731
    %v733 = vpop.f32.mrb[0].mxu0
    %734 = vdwg.mxu0
    %v735 = vadd.f32 %v676, %v729
    %v736 = vadd.f32 %v679, %v732
    %v738 = vlaneseq
    %v739 = vshrl.u32 %v738, 7
    %v740 = vsub.s32 0, %v739
    %v741 = vrot.slane %v204, %v740
    %v743 = vadd.f32 %v735, %v741
    %v744 = vadd.f32 %v736, %v741
    %v745 = vxor.u32 %v743, 2147483648
    %v746 = vxor.u32 %v744, 2147483648
    %v747 = vmul.f32 %v745, 1.442695
    %v748 = vpow.pop %v747
    %v749 = vmul.f32 %v746, 1.442695
    %v750 = vpow.pop %v749
    %v751 = vadd.f32 %v748, 1.0
    %v752 = vadd.f32 %v750, 1.0
    %v753 = vrcp.pop %v751
    %v754 = vmul.f32 1.0, %v753
    %v755 = vrcp.pop %v752
    %v756 = vmul.f32 1.0, %v755
    %v757 = vtanh.pop %v743
    %v758 = vtanh.pop %v744
    %v759 = vmul.f32 %v754, 0.0
    %v760 = vmul.f32 %v756, 0.0
    %763 = vrot.lane.b32.xlu0 %v757, 64
    %v764 = vpop.permute.xlu0 %763
    %765 = vrot.lane.b32.xlu0 %v758, 64
    %v766 = vpop.permute.xlu0 %765
    %v769 = vmul.f32 %v754, %v764
    %v770 = vmul.f32 %v756, %v766
    %773 = vrot.lane.b32.xlu0 %v769, 32
    %v774 = vpop.permute.xlu0 %773
    %775 = vrot.lane.b32.xlu0 %v770, 32
    %v776 = vpop.permute.xlu0 %775
    %v779 = vadd.f32 %v759, %v774
    %v780 = vadd.f32 %v760, %v776
    %v781 = vtanh.pop %v779
    %v782 = vtanh.pop %v780
    %785 = vrot.lane.b32.xlu0 %v781, 64
    %v786 = vpop.permute.xlu0 %785
    %787 = vrot.lane.b32.xlu0 %v782, 64
    %v788 = vpop.permute.xlu0 %787
    %v791 = vmul.f32 %v754, %v786
    %v792 = vmul.f32 %v756, %v788
    %v793 = vpack.c.bf16 %v792, %v791
    %795 = vrot.lane.b32.xlu0 %v793, 32
    %v796 = vpop.permute.xlu0 %795
    %798 = vmatprep.subr.bf16.mxu0 0
    %799 = vmatpush1.bf16.msra.mxu0 %v796
    %800 = vmatprep.subr.bf16.mxu0 0
    %801 = vmatpush1.bf16.msra.mxu0 0
    %802 = vmatprep.subr.bf16.mxu0 0
    %803 = vmatpush1.bf16.msra.mxu0 0
    %804 = vmatprep.subr.bf16.mxu0 0
    %805 = vmatpush1.bf16.msra.mxu0 0
    %806 = vmatprep.subr.bf16.mxu0 0
    %807 = vmatpush1.bf16.msra.mxu0 0
    %808 = vmatprep.subr.bf16.mxu0 0
    %809 = vmatpush1.bf16.msra.mxu0 0
    %810 = vmatprep.subr.bf16.mxu0 0
    %811 = vmatpush1.bf16.msra.mxu0 0
    %812 = vmatprep.subr.bf16.mxu0 0
    %813 = vmatpush1.bf16.msra.mxu0 0
    %814 = vmatprep.subr.bf16.mxu0 0
    %815 = vmatpush1.bf16.msra.mxu0 0
    %816 = vmatprep.subr.bf16.mxu0 0
    %817 = vmatpush1.bf16.msra.mxu0 0
    %818 = vmatprep.subr.bf16.mxu0 0
    %819 = vmatpush1.bf16.msra.mxu0 0
    %820 = vmatprep.subr.bf16.mxu0 0
    %821 = vmatpush1.bf16.msra.mxu0 0
    %822 = vmatprep.subr.bf16.mxu0 0
    %823 = vmatpush1.bf16.msra.mxu0 0
    %824 = vmatprep.subr.bf16.mxu0 0
    %825 = vmatpush1.bf16.msra.mxu0 0
    %826 = vmatprep.subr.bf16.mxu0 0
    %827 = vmatpush1.bf16.msra.mxu0 0
    %828 = vmatprep.subr.bf16.mxu0 0
    %829 = vmatpush1.bf16.msra.mxu0 0
    %830 = vmatprep.mubr.bf16.mxu0 0
    %831 = vmatmul.mubr.bf16.gmra.mrb[0].mxu0 %v244
    %v832 = vpop.f32.mrb[0].mxu0
    %v833 = vadd.f32 0.0, %v832
    %v834 = vpop.f32.mrb[0].mxu0
    %v835 = vpop.f32.mrb[0].mxu0
    %v836 = vadd.f32 0.0, %v835
    %v837 = vpop.f32.mrb[0].mxu0
    %838 = vmatprep.mubr.bf16.mxu0 0
    %839 = vmatmul.mubr.bf16.gmra.mrb[0].mxu0 %v247
    %v840 = vpop.f32.mrb[0].mxu0
    %v841 = vadd.f32 0.0, %v840
    %v842 = vpop.f32.mrb[0].mxu0
    %v843 = vpop.f32.mrb[0].mxu0
    %v844 = vpop.f32.mrb[0].mxu0
    %845 = vdwg.mxu0
    %v846 = vpack.c.bf16 %v836, %v833
    %v847 = vpack.c.bf16 %v841, %v841
    %v849 = vsel %vm312, %v516, 0
    %v851 = vsel %vm312, %v518, 0
    %853 = vmatprep.subr.bf16.mxu0 0
    %854 = vmatpush1.bf16.msra.mxu0 %v308
    %855 = vmatprep.subr.bf16.mxu0 0
    %856 = vmatpush1.bf16.msra.mxu0 %v309
    %857 = vmatprep.subr.bf16.mxu0 0
    %858 = vmatpush1.bf16.msra.mxu0 0
    %859 = vmatprep.subr.bf16.mxu0 0
    %860 = vmatpush1.bf16.msra.mxu0 0
    %861 = vmatprep.subr.bf16.mxu0 0
    %862 = vmatpush1.bf16.msra.mxu0 0
    %863 = vmatprep.subr.bf16.mxu0 0
    %864 = vmatpush1.bf16.msra.mxu0 0
    %865 = vmatprep.subr.bf16.mxu0 0
    %866 = vmatpush1.bf16.msra.mxu0 0
    %867 = vmatprep.subr.bf16.mxu0 0
    %868 = vmatpush1.bf16.msra.mxu0 0
    %869 = vmatprep.subr.bf16.mxu0 0
    %870 = vmatpush1.bf16.msra.mxu0 0
    %871 = vmatprep.subr.bf16.mxu0 0
    %872 = vmatpush1.bf16.msra.mxu0 0
    %873 = vmatprep.subr.bf16.mxu0 0
    %874 = vmatpush1.bf16.msra.mxu0 0
    %875 = vmatprep.subr.bf16.mxu0 0
    %876 = vmatpush1.bf16.msra.mxu0 0
    %877 = vmatprep.subr.bf16.mxu0 0
    %878 = vmatpush1.bf16.msra.mxu0 0
    %879 = vmatprep.subr.bf16.mxu0 0
    %880 = vmatpush1.bf16.msra.mxu0 0
    %881 = vmatprep.subr.bf16.mxu0 0
    %882 = vmatpush1.bf16.msra.mxu0 0
    %883 = vmatprep.subr.bf16.mxu0 0
    %884 = vmatpush1.bf16.msra.mxu0 0
    %885 = vmatprep.mubr.bf16.mxu0 0
    %886 = vmatmul.mubr.bf16.gmra.mrb[0].mxu0 %v849
    %v887 = vpop.f32.mrb[0].mxu0
    %v888 = vadd.f32 0.0, %v887
    %v889 = vpop.f32.mrb[0].mxu0
    %v890 = vpop.f32.mrb[0].mxu0
    %v891 = vadd.f32 0.0, %v890
    %v892 = vpop.f32.mrb[0].mxu0
    %893 = vmatprep.mubr.bf16.mxu0 0
    %894 = vmatmul.mubr.bf16.gmra.mrb[0].mxu0 %v851
    %v895 = vpop.f32.mrb[0].mxu0
    %v896 = vadd.f32 0.0, %v895
    %v897 = vpop.f32.mrb[0].mxu0
    %v898 = vpop.f32.mrb[0].mxu0
    %v899 = vpop.f32.mrb[0].mxu0
    %900 = vdwg.mxu0
    %v902 = vsel %vm312, %v846, 0
    %v905 = vsel %vm312, %v847, 0
    %907 = vmatprep.subr.bf16.mxu0 0
    %908 = vmatpush1.bf16.msra.mxu0 %v372
    %909 = vmatprep.subr.bf16.mxu0 0
    %910 = vmatpush1.bf16.msra.mxu0 %v373
    %911 = vmatprep.subr.bf16.mxu0 0
    %912 = vmatpush1.bf16.msra.mxu0 0
    %913 = vmatprep.subr.bf16.mxu0 0
    %914 = vmatpush1.bf16.msra.mxu0 0
    %915 = vmatprep.subr.bf16.mxu0 0
    %916 = vmatpush1.bf16.msra.mxu0 0
    %917 = vmatprep.subr.bf16.mxu0 0
    %918 = vmatpush1.bf16.msra.mxu0 0
    %919 = vmatprep.subr.bf16.mxu0 0
    %920 = vmatpush1.bf16.msra.mxu0 0
    %921 = vmatprep.subr.bf16.mxu0 0
    %922 = vmatpush1.bf16.msra.mxu0 0
    %923 = vmatprep.subr.bf16.mxu0 0
    %924 = vmatpush1.bf16.msra.mxu0 0
    %925 = vmatprep.subr.bf16.mxu0 0
    %926 = vmatpush1.bf16.msra.mxu0 0
    %927 = vmatprep.subr.bf16.mxu0 0
    %928 = vmatpush1.bf16.msra.mxu0 0
    %929 = vmatprep.subr.bf16.mxu0 0
    %930 = vmatpush1.bf16.msra.mxu0 0
    %931 = vmatprep.subr.bf16.mxu0 0
    %932 = vmatpush1.bf16.msra.mxu0 0
    %933 = vmatprep.subr.bf16.mxu0 0
    %934 = vmatpush1.bf16.msra.mxu0 0
    %935 = vmatprep.subr.bf16.mxu0 0
    %936 = vmatpush1.bf16.msra.mxu0 0
    %937 = vmatprep.subr.bf16.mxu0 0
    %938 = vmatpush1.bf16.msra.mxu0 0
    %939 = vmatprep.mubr.bf16.mxu0 0
    %940 = vmatmul.mubr.bf16.gmra.mrb[0].mxu0 %v902
    %v941 = vpop.f32.mrb[0].mxu0
    %v942 = vadd.f32 %v888, %v941
    %v943 = vpop.f32.mrb[0].mxu0
    %v944 = vpop.f32.mrb[0].mxu0
    %v945 = vadd.f32 %v891, %v944
    %v946 = vpop.f32.mrb[0].mxu0
    %947 = vmatprep.mubr.bf16.mxu0 0
    %948 = vmatmul.mubr.bf16.gmra.mrb[0].mxu0 %v905
    %v949 = vpop.f32.mrb[0].mxu0
    %v950 = vadd.f32 %v896, %v949
    %v951 = vpop.f32.mrb[0].mxu0
    %v952 = vpop.f32.mrb[0].mxu0
    %v953 = vpop.f32.mrb[0].mxu0
    %954 = vdwg.mxu0
    %v955 = vadd.f32 %v942, %v434
    %v956 = vadd.f32 %v945, %v434
    %v957 = vadd.f32 %v950, %v434
    %v958 = vxor.u32 %v955, 2147483648
    %v959 = vxor.u32 %v956, 2147483648
    %v960 = vxor.u32 %v957, 2147483648
    %v961 = vmul.f32 %v958, 1.442695
    %v962 = vpow.pop %v961
    %v963 = vmul.f32 %v959, 1.442695
    %v964 = vpow.pop %v963
    %v965 = vmul.f32 %v960, 1.442695
    %v966 = vpow.pop %v965
    %v967 = vadd.f32 %v962, 1.0
    %v968 = vadd.f32 %v964, 1.0
    %v969 = vadd.f32 %v966, 1.0
    %v970 = vrcp.pop %v967
    %v971 = vmul.f32 1.0, %v970
    %v972 = vrcp.pop %v968
    %v973 = vmul.f32 1.0, %v972
    %v974 = vrcp.pop %v969
    %v975 = vmul.f32 1.0, %v974
    %v976 = vtanh.pop %v955
    %v977 = vtanh.pop %v956
    %v978 = vtanh.pop %v957
    %v979 = vmul.f32 %v971, %v490
    %v980 = vmul.f32 %v973, %v491
    %v981 = vmul.f32 %v975, %v492
    %985 = vrot.lane.b32.xlu0 %v976, 64
    %v986 = vpop.permute.xlu0 %985
    %987 = vrot.lane.b32.xlu0 %v977, 64
    %v988 = vpop.permute.xlu0 %987
    %989 = vrot.lane.b32.xlu0 %v978, 64
    %v990 = vpop.permute.xlu0 %989
    %v994 = vmul.f32 %v971, %v986
    %v995 = vmul.f32 %v973, %v988
    %v996 = vmul.f32 %v975, %v990
    %1000 = vrot.lane.b32.xlu0 %v994, 32
    %v1001 = vpop.permute.xlu0 %1000
    %1002 = vrot.lane.b32.xlu0 %v995, 32
    %v1003 = vpop.permute.xlu0 %1002
    %1004 = vrot.lane.b32.xlu0 %v996, 32
    %v1005 = vpop.permute.xlu0 %1004
    %v1009 = vadd.f32 %v979, %v1001
    %v1010 = vadd.f32 %v980, %v1003
    %v1011 = vadd.f32 %v981, %v1005
    %v1012 = vtanh.pop %v1009
    %v1013 = vtanh.pop %v1010
    %v1014 = vtanh.pop %v1011
    %1018 = vrot.lane.b32.xlu0 %v1012, 64
    %v1019 = vpop.permute.xlu0 %1018
    %1020 = vrot.lane.b32.xlu0 %v1013, 64
    %v1021 = vpop.permute.xlu0 %1020
    %1022 = vrot.lane.b32.xlu0 %v1014, 64
    %v1023 = vpop.permute.xlu0 %1022
    %v1027 = vmul.f32 %v971, %v1019
    %v1028 = vmul.f32 %v973, %v1021
    %v1029 = vmul.f32 %v975, %v1023
    %v1030 = vpack.c.bf16 %v1028, %v1027
    %v1031 = vpack.c.bf16 %v1029, %v1029
    %1034 = vrot.lane.b32.xlu0 %v1030, 32
    %v1035 = vpop.permute.xlu0 %1034
    %1036 = vrot.lane.b32.xlu0 %v1031, 32
    %v1037 = vpop.permute.xlu0 %1036
    %v1040 = vsel %vm524, %v1037, 0
    %1042 = vmatprep.subr.bf16.mxu0 0
    %1043 = vmatpush1.bf16.msra.mxu0 %v1035
    %1044 = vmatprep.subr.bf16.mxu0 0
    %1045 = vmatpush1.bf16.msra.mxu0 %v1040
    %1046 = vmatprep.subr.bf16.mxu0 0
    %1047 = vmatpush1.bf16.msra.mxu0 0
    %1048 = vmatprep.subr.bf16.mxu0 0
    %1049 = vmatpush1.bf16.msra.mxu0 0
    %1050 = vmatprep.subr.bf16.mxu0 0
    %1051 = vmatpush1.bf16.msra.mxu0 0
    %1052 = vmatprep.subr.bf16.mxu0 0
    %1053 = vmatpush1.bf16.msra.mxu0 0
    %1054 = vmatprep.subr.bf16.mxu0 0
    %1055 = vmatpush1.bf16.msra.mxu0 0
    %1056 = vmatprep.subr.bf16.mxu0 0
    %1057 = vmatpush1.bf16.msra.mxu0 0
    %1058 = vmatprep.subr.bf16.mxu0 0
    %1059 = vmatpush1.bf16.msra.mxu0 0
    %1060 = vmatprep.subr.bf16.mxu0 0
    %1061 = vmatpush1.bf16.msra.mxu0 0
    %1062 = vmatprep.subr.bf16.mxu0 0
    %1063 = vmatpush1.bf16.msra.mxu0 0
    %1064 = vmatprep.subr.bf16.mxu0 0
    %1065 = vmatpush1.bf16.msra.mxu0 0
    %1066 = vmatprep.subr.bf16.mxu0 0
    %1067 = vmatpush1.bf16.msra.mxu0 0
    %1068 = vmatprep.subr.bf16.mxu0 0
    %1069 = vmatpush1.bf16.msra.mxu0 0
    %1070 = vmatprep.subr.bf16.mxu0 0
    %1071 = vmatpush1.bf16.msra.mxu0 0
    %1072 = vmatprep.subr.bf16.mxu0 0
    %1073 = vmatpush1.bf16.msra.mxu0 0
    %1074 = vmatprep.mubr.bf16.mxu0 0
    %1075 = vmatmul.mubr.bf16.gmra.mrb[0].mxu0 %v522
    %v1076 = vpop.f32.mrb[0].mxu0
    %v1077 = vadd.f32 0.0, %v1076
    %v1078 = vpop.f32.mrb[0].mxu0
    %v1079 = vpop.f32.mrb[0].mxu0
    %v1080 = vadd.f32 0.0, %v1079
    %v1081 = vpop.f32.mrb[0].mxu0
    %1082 = vdwg.mxu0
    %1085 = vrot.lane.b32.xlu0 %v791, 32
    %v1086 = vpop.permute.xlu0 %1085
    %1087 = vrot.lane.b32.xlu0 %v792, 32
    %v1088 = vpop.permute.xlu0 %1087
    %v1091 = vpack.c.bf16 %v1086, %v1088
    %v1092 = vpack.c.bf16 %v1080, %v1077
    %v1094 = vsel %vm312, %v1091, 0
    %1096 = vmatprep.subr.bf16.mxu0 0
    %1097 = vmatpush1.bf16.msra.mxu0 %v578
    %1098 = vmatprep.subr.bf16.mxu0 0
    %1099 = vmatpush1.bf16.msra.mxu0 %v579
    %1100 = vmatprep.subr.bf16.mxu0 0
    %1101 = vmatpush1.bf16.msra.mxu0 0
    %1102 = vmatprep.subr.bf16.mxu0 0
    %1103 = vmatpush1.bf16.msra.mxu0 0
    %1104 = vmatprep.subr.bf16.mxu0 0
    %1105 = vmatpush1.bf16.msra.mxu0 0
    %1106 = vmatprep.subr.bf16.mxu0 0
    %1107 = vmatpush1.bf16.msra.mxu0 0
    %1108 = vmatprep.subr.bf16.mxu0 0
    %1109 = vmatpush1.bf16.msra.mxu0 0
    %1110 = vmatprep.subr.bf16.mxu0 0
    %1111 = vmatpush1.bf16.msra.mxu0 0
    %1112 = vmatprep.subr.bf16.mxu0 0
    %1113 = vmatpush1.bf16.msra.mxu0 0
    %1114 = vmatprep.subr.bf16.mxu0 0
    %1115 = vmatpush1.bf16.msra.mxu0 0
    %1116 = vmatprep.subr.bf16.mxu0 0
    %1117 = vmatpush1.bf16.msra.mxu0 0
    %1118 = vmatprep.subr.bf16.mxu0 0
    %1119 = vmatpush1.bf16.msra.mxu0 0
    %1120 = vmatprep.subr.bf16.mxu0 0
    %1121 = vmatpush1.bf16.msra.mxu0 0
    %1122 = vmatprep.subr.bf16.mxu0 0
    %1123 = vmatpush1.bf16.msra.mxu0 0
    %1124 = vmatprep.subr.bf16.mxu0 0
    %1125 = vmatpush1.bf16.msra.mxu0 0
    %1126 = vmatprep.subr.bf16.mxu0 0
    %1127 = vmatpush1.bf16.msra.mxu0 0
    %1128 = vmatprep.mubr.bf16.mxu0 0
    %1129 = vmatmul.mubr.bf16.gmra.mrb[0].mxu0 %v1094
    %v1130 = vpop.f32.mrb[0].mxu0
    %v1131 = vadd.f32 0.0, %v1130
    %v1132 = vpop.f32.mrb[0].mxu0
    %v1133 = vpop.f32.mrb[0].mxu0
    %v1134 = vadd.f32 0.0, %v1133
    %v1135 = vpop.f32.mrb[0].mxu0
    %1136 = vdwg.mxu0
    %v1138 = vsel %vm312, %v1092, 0
    %1140 = vmatprep.subr.bf16.mxu0 0
    %1141 = vmatpush1.bf16.msra.mxu0 %v634
    %1142 = vmatprep.subr.bf16.mxu0 0
    %1143 = vmatpush1.bf16.msra.mxu0 %v635
    %1144 = vmatprep.subr.bf16.mxu0 0
    %1145 = vmatpush1.bf16.msra.mxu0 0
    %1146 = vmatprep.subr.bf16.mxu0 0
    %1147 = vmatpush1.bf16.msra.mxu0 0
    %1148 = vmatprep.subr.bf16.mxu0 0
    %1149 = vmatpush1.bf16.msra.mxu0 0
    %1150 = vmatprep.subr.bf16.mxu0 0
    %1151 = vmatpush1.bf16.msra.mxu0 0
    %1152 = vmatprep.subr.bf16.mxu0 0
    %1153 = vmatpush1.bf16.msra.mxu0 0
    %1154 = vmatprep.subr.bf16.mxu0 0
    %1155 = vmatpush1.bf16.msra.mxu0 0
    %1156 = vmatprep.subr.bf16.mxu0 0
    %1157 = vmatpush1.bf16.msra.mxu0 0
    %1158 = vmatprep.subr.bf16.mxu0 0
    %1159 = vmatpush1.bf16.msra.mxu0 0
    %1160 = vmatprep.subr.bf16.mxu0 0
    %1161 = vmatpush1.bf16.msra.mxu0 0
    %1162 = vmatprep.subr.bf16.mxu0 0
    %1163 = vmatpush1.bf16.msra.mxu0 0
    %1164 = vmatprep.subr.bf16.mxu0 0
    %1165 = vmatpush1.bf16.msra.mxu0 0
    %1166 = vmatprep.subr.bf16.mxu0 0
    %1167 = vmatpush1.bf16.msra.mxu0 0
    %1168 = vmatprep.subr.bf16.mxu0 0
    %1169 = vmatpush1.bf16.msra.mxu0 0
    %1170 = vmatprep.subr.bf16.mxu0 0
    %1171 = vmatpush1.bf16.msra.mxu0 0
    %1172 = vmatprep.mubr.bf16.mxu0 0
    %1173 = vmatmul.mubr.bf16.gmra.mrb[0].mxu0 %v1138
    %v1174 = vpop.f32.mrb[0].mxu0
    %v1175 = vadd.f32 %v1131, %v1174
    %v1176 = vpop.f32.mrb[0].mxu0
    %v1177 = vpop.f32.mrb[0].mxu0
    %v1178 = vadd.f32 %v1134, %v1177
    %v1179 = vpop.f32.mrb[0].mxu0
    %1180 = vdwg.mxu0
    %v1182 = vsel %vm312, %v796, 0
    %1184 = vmatprep.subr.bf16.mxu0 0
    %1185 = vmatpush1.bf16.msra.mxu0 %v690
    %1186 = vmatprep.subr.bf16.mxu0 0
    %1187 = vmatpush1.bf16.msra.mxu0 %v691
    %1188 = vmatprep.subr.bf16.mxu0 0
    %1189 = vmatpush1.bf16.msra.mxu0 0
    %1190 = vmatprep.subr.bf16.mxu0 0
    %1191 = vmatpush1.bf16.msra.mxu0 0
    %1192 = vmatprep.subr.bf16.mxu0 0
    %1193 = vmatpush1.bf16.msra.mxu0 0
    %1194 = vmatprep.subr.bf16.mxu0 0
    %1195 = vmatpush1.bf16.msra.mxu0 0
    %1196 = vmatprep.subr.bf16.mxu0 0
    %1197 = vmatpush1.bf16.msra.mxu0 0
    %1198 = vmatprep.subr.bf16.mxu0 0
    %1199 = vmatpush1.bf16.msra.mxu0 0
    %1200 = vmatprep.subr.bf16.mxu0 0
    %1201 = vmatpush1.bf16.msra.mxu0 0
    %1202 = vmatprep.subr.bf16.mxu0 0
    %1203 = vmatpush1.bf16.msra.mxu0 0
    %1204 = vmatprep.subr.bf16.mxu0 0
    %1205 = vmatpush1.bf16.msra.mxu0 0
    %1206 = vmatprep.subr.bf16.mxu0 0
    %1207 = vmatpush1.bf16.msra.mxu0 0
    %1208 = vmatprep.subr.bf16.mxu0 0
    %1209 = vmatpush1.bf16.msra.mxu0 0
    %1210 = vmatprep.subr.bf16.mxu0 0
    %1211 = vmatpush1.bf16.msra.mxu0 0
    %1212 = vmatprep.subr.bf16.mxu0 0
    %1213 = vmatpush1.bf16.msra.mxu0 0
    %1214 = vmatprep.subr.bf16.mxu0 0
    %1215 = vmatpush1.bf16.msra.mxu0 0
    %1216 = vmatprep.mubr.bf16.mxu0 0
    %1217 = vmatmul.mubr.bf16.gmra.mrb[0].mxu0 %v1182
    %v1218 = vpop.f32.mrb[0].mxu0
    %v1219 = vadd.f32 0.0, %v1218
    %v1220 = vpop.f32.mrb[0].mxu0
    %v1221 = vpop.f32.mrb[0].mxu0
    %v1222 = vadd.f32 0.0, %v1221
    %v1223 = vpop.f32.mrb[0].mxu0
    %1224 = vdwg.mxu0
    %v1225 = vadd.f32 %v1175, %v1219
    %v1226 = vadd.f32 %v1178, %v1222
    %v1227 = vadd.f32 %v1225, %v741
    %v1228 = vadd.f32 %v1226, %v741
    %v1229 = vxor.u32 %v1227, 2147483648
    %v1230 = vxor.u32 %v1228, 2147483648
    %v1231 = vmul.f32 %v1229, 1.442695
    %v1232 = vpow.pop %v1231
    %v1233 = vmul.f32 %v1230, 1.442695
    %v1234 = vpow.pop %v1233
    %v1235 = vadd.f32 %v1232, 1.0
    %v1236 = vadd.f32 %v1234, 1.0
    %v1237 = vrcp.pop %v1235
    %v1238 = vmul.f32 1.0, %v1237
    %v1239 = vrcp.pop %v1236
    %v1240 = vmul.f32 1.0, %v1239
    %v1241 = vtanh.pop %v1227
    %v1242 = vtanh.pop %v1228
    %v1243 = vmul.f32 %v1238, %v779
    %v1244 = vmul.f32 %v1240, %v780
    %1247 = vrot.lane.b32.xlu0 %v1241, 64
    %v1248 = vpop.permute.xlu0 %1247
    %1249 = vrot.lane.b32.xlu0 %v1242, 64
    %v1250 = vpop.permute.xlu0 %1249
    %v1253 = vmul.f32 %v1238, %v1248
    %v1254 = vmul.f32 %v1240, %v1250
    %1257 = vrot.lane.b32.xlu0 %v1253, 32
    %v1258 = vpop.permute.xlu0 %1257
    %1259 = vrot.lane.b32.xlu0 %v1254, 32
    %v1260 = vpop.permute.xlu0 %1259
    %v1263 = vadd.f32 %v1243, %v1258
    %v1264 = vadd.f32 %v1244, %v1260
    %v1265 = vtanh.pop %v1263
    %v1266 = vtanh.pop %v1264
    %1269 = vrot.lane.b32.xlu0 %v1265, 64
    %v1270 = vpop.permute.xlu0 %1269
    %1271 = vrot.lane.b32.xlu0 %v1266, 64
    %v1272 = vpop.permute.xlu0 %1271
    %v1275 = vmul.f32 %v1238, %v1270
    %v1276 = vmul.f32 %v1240, %v1272
    %v1277 = vpack.c.bf16 %v1276, %v1275
    %1279 = vrot.lane.b32.xlu0 %v1277, 32
    %v1280 = vpop.permute.xlu0 %1279
    %1282 = vmatprep.subr.bf16.mxu0 0
    %1283 = vmatpush1.bf16.msra.mxu0 %v1280
    %1284 = vmatprep.subr.bf16.mxu0 0
    %1285 = vmatpush1.bf16.msra.mxu0 0
    %1286 = vmatprep.subr.bf16.mxu0 0
    %1287 = vmatpush1.bf16.msra.mxu0 0
    %1288 = vmatprep.subr.bf16.mxu0 0
    %1289 = vmatpush1.bf16.msra.mxu0 0
    %1290 = vmatprep.subr.bf16.mxu0 0
    %1291 = vmatpush1.bf16.msra.mxu0 0
    %1292 = vmatprep.subr.bf16.mxu0 0
    %1293 = vmatpush1.bf16.msra.mxu0 0
    %1294 = vmatprep.subr.bf16.mxu0 0
    %1295 = vmatpush1.bf16.msra.mxu0 0
    %1296 = vmatprep.subr.bf16.mxu0 0
    %1297 = vmatpush1.bf16.msra.mxu0 0
    %1298 = vmatprep.subr.bf16.mxu0 0
    %1299 = vmatpush1.bf16.msra.mxu0 0
    %1300 = vmatprep.subr.bf16.mxu0 0
    %1301 = vmatpush1.bf16.msra.mxu0 0
    %1302 = vmatprep.subr.bf16.mxu0 0
    %1303 = vmatpush1.bf16.msra.mxu0 0
    %1304 = vmatprep.subr.bf16.mxu0 0
    %1305 = vmatpush1.bf16.msra.mxu0 0
    %1306 = vmatprep.subr.bf16.mxu0 0
    %1307 = vmatpush1.bf16.msra.mxu0 0
    %1308 = vmatprep.subr.bf16.mxu0 0
    %1309 = vmatpush1.bf16.msra.mxu0 0
    %1310 = vmatprep.subr.bf16.mxu0 0
    %1311 = vmatpush1.bf16.msra.mxu0 0
    %1312 = vmatprep.subr.bf16.mxu0 0
    %1313 = vmatpush1.bf16.msra.mxu0 0
    %1314 = vmatprep.mubr.bf16.mxu0 0
    %1315 = vmatmul.mubr.bf16.gmra.mrb[0].mxu0 %v244
    %v1316 = vpop.f32.mrb[0].mxu0
    %v1317 = vadd.f32 0.0, %v1316
    %v1318 = vpop.f32.mrb[0].mxu0
    %v1319 = vpop.f32.mrb[0].mxu0
    %v1320 = vadd.f32 0.0, %v1319
    %v1321 = vpop.f32.mrb[0].mxu0
    %1322 = vmatprep.mubr.bf16.mxu0 0
    %1323 = vmatmul.mubr.bf16.gmra.mrb[0].mxu0 %v247
    %v1324 = vpop.f32.mrb[0].mxu0
    %v1325 = vadd.f32 0.0, %v1324
    %v1326 = vpop.f32.mrb[0].mxu0
    %v1327 = vpop.f32.mrb[0].mxu0
    %v1328 = vpop.f32.mrb[0].mxu0
    %1329 = vdwg.mxu0
    %v1330 = vpack.c.bf16 %v1320, %v1317
    %v1331 = vpack.c.bf16 %v1325, %v1325
    %v1333 = vsel %vm312, %v1035, 0
    %v1335 = vsel %vm312, %v1037, 0
    %1337 = vmatprep.subr.bf16.mxu0 0
    %1338 = vmatpush1.bf16.msra.mxu0 %v308
    %1339 = vmatprep.subr.bf16.mxu0 0
    %1340 = vmatpush1.bf16.msra.mxu0 %v309
    %1341 = vmatprep.subr.bf16.mxu0 0
    %1342 = vmatpush1.bf16.msra.mxu0 0
    %1343 = vmatprep.subr.bf16.mxu0 0
    %1344 = vmatpush1.bf16.msra.mxu0 0
    %1345 = vmatprep.subr.bf16.mxu0 0
    %1346 = vmatpush1.bf16.msra.mxu0 0
    %1347 = vmatprep.subr.bf16.mxu0 0
    %1348 = vmatpush1.bf16.msra.mxu0 0
    %1349 = vmatprep.subr.bf16.mxu0 0
    %1350 = vmatpush1.bf16.msra.mxu0 0
    %1351 = vmatprep.subr.bf16.mxu0 0
    %1352 = vmatpush1.bf16.msra.mxu0 0
    %1353 = vmatprep.subr.bf16.mxu0 0
    %1354 = vmatpush1.bf16.msra.mxu0 0
    %1355 = vmatprep.subr.bf16.mxu0 0
    %1356 = vmatpush1.bf16.msra.mxu0 0
    %1357 = vmatprep.subr.bf16.mxu0 0
    %1358 = vmatpush1.bf16.msra.mxu0 0
    %1359 = vmatprep.subr.bf16.mxu0 0
    %1360 = vmatpush1.bf16.msra.mxu0 0
    %1361 = vmatprep.subr.bf16.mxu0 0
    %1362 = vmatpush1.bf16.msra.mxu0 0
    %1363 = vmatprep.subr.bf16.mxu0 0
    %1364 = vmatpush1.bf16.msra.mxu0 0
    %1365 = vmatprep.subr.bf16.mxu0 0
    %1366 = vmatpush1.bf16.msra.mxu0 0
    %1367 = vmatprep.subr.bf16.mxu0 0
    %1368 = vmatpush1.bf16.msra.mxu0 0
    %1369 = vmatprep.mubr.bf16.mxu0 0
    %1370 = vmatmul.mubr.bf16.gmra.mrb[0].mxu0 %v1333
    %v1371 = vpop.f32.mrb[0].mxu0
    %v1372 = vadd.f32 0.0, %v1371
    %v1373 = vpop.f32.mrb[0].mxu0
    %v1374 = vpop.f32.mrb[0].mxu0
    %v1375 = vadd.f32 0.0, %v1374
    %v1376 = vpop.f32.mrb[0].mxu0
    %1377 = vmatprep.mubr.bf16.mxu0 0
    %1378 = vmatmul.mubr.bf16.gmra.mrb[0].mxu0 %v1335
    %v1379 = vpop.f32.mrb[0].mxu0
    %v1380 = vadd.f32 0.0, %v1379
    %v1381 = vpop.f32.mrb[0].mxu0
    %v1382 = vpop.f32.mrb[0].mxu0
    %v1383 = vpop.f32.mrb[0].mxu0
    %1384 = vdwg.mxu0
    %v1386 = vsel %vm312, %v1330, 0
    %v1389 = vsel %vm312, %v1331, 0
    %1391 = vmatprep.subr.bf16.mxu0 0
    %1392 = vmatpush1.bf16.msra.mxu0 %v372
    %1393 = vmatprep.subr.bf16.mxu0 0
    %1394 = vmatpush1.bf16.msra.mxu0 %v373
    %1395 = vmatprep.subr.bf16.mxu0 0
    %1396 = vmatpush1.bf16.msra.mxu0 0
    %1397 = vmatprep.subr.bf16.mxu0 0
    %1398 = vmatpush1.bf16.msra.mxu0 0
    %1399 = vmatprep.subr.bf16.mxu0 0
    %1400 = vmatpush1.bf16.msra.mxu0 0
    %1401 = vmatprep.subr.bf16.mxu0 0
    %1402 = vmatpush1.bf16.msra.mxu0 0
    %1403 = vmatprep.subr.bf16.mxu0 0
    %1404 = vmatpush1.bf16.msra.mxu0 0
    %1405 = vmatprep.subr.bf16.mxu0 0
    %1406 = vmatpush1.bf16.msra.mxu0 0
    %1407 = vmatprep.subr.bf16.mxu0 0
    %1408 = vmatpush1.bf16.msra.mxu0 0
    %1409 = vmatprep.subr.bf16.mxu0 0
    %1410 = vmatpush1.bf16.msra.mxu0 0
    %1411 = vmatprep.subr.bf16.mxu0 0
    %1412 = vmatpush1.bf16.msra.mxu0 0
    %1413 = vmatprep.subr.bf16.mxu0 0
    %1414 = vmatpush1.bf16.msra.mxu0 0
    %1415 = vmatprep.subr.bf16.mxu0 0
    %1416 = vmatpush1.bf16.msra.mxu0 0
    %1417 = vmatprep.subr.bf16.mxu0 0
    %1418 = vmatpush1.bf16.msra.mxu0 0
    %1419 = vmatprep.subr.bf16.mxu0 0
    %1420 = vmatpush1.bf16.msra.mxu0 0
    %1421 = vmatprep.subr.bf16.mxu0 0
    %1422 = vmatpush1.bf16.msra.mxu0 0
    %1423 = vmatprep.mubr.bf16.mxu0 0
    %1424 = vmatmul.mubr.bf16.gmra.mrb[0].mxu0 %v1386
    %v1425 = vpop.f32.mrb[0].mxu0
    %v1426 = vadd.f32 %v1372, %v1425
    %v1427 = vpop.f32.mrb[0].mxu0
    %v1428 = vpop.f32.mrb[0].mxu0
    %v1429 = vadd.f32 %v1375, %v1428
    %v1430 = vpop.f32.mrb[0].mxu0
    %1431 = vmatprep.mubr.bf16.mxu0 0
    %1432 = vmatmul.mubr.bf16.gmra.mrb[0].mxu0 %v1389
    %v1433 = vpop.f32.mrb[0].mxu0
    %v1434 = vadd.f32 %v1380, %v1433
    %v1435 = vpop.f32.mrb[0].mxu0
    %v1436 = vpop.f32.mrb[0].mxu0
    %v1437 = vpop.f32.mrb[0].mxu0
    %1438 = vdwg.mxu0
    %v1439 = vadd.f32 %v1426, %v434
    %v1440 = vadd.f32 %v1429, %v434
    %v1441 = vadd.f32 %v1434, %v434
    %v1442 = vxor.u32 %v1439, 2147483648
    %v1443 = vxor.u32 %v1440, 2147483648
    %v1444 = vxor.u32 %v1441, 2147483648
    %v1445 = vmul.f32 %v1442, 1.442695
    %v1446 = vpow.pop %v1445
    %v1447 = vmul.f32 %v1443, 1.442695
    %v1448 = vpow.pop %v1447
    %v1449 = vmul.f32 %v1444, 1.442695
    %v1450 = vpow.pop %v1449
    %v1451 = vadd.f32 %v1446, 1.0
    %v1452 = vadd.f32 %v1448, 1.0
    %v1453 = vadd.f32 %v1450, 1.0
    %v1454 = vrcp.pop %v1451
    %v1455 = vmul.f32 1.0, %v1454
    %v1456 = vrcp.pop %v1452
    %v1457 = vmul.f32 1.0, %v1456
    %v1458 = vrcp.pop %v1453
    %v1459 = vmul.f32 1.0, %v1458
    %v1460 = vtanh.pop %v1439
    %v1461 = vtanh.pop %v1440
    %v1462 = vtanh.pop %v1441
    %v1463 = vmul.f32 %v1455, %v1009
    %v1464 = vmul.f32 %v1457, %v1010
    %v1465 = vmul.f32 %v1459, %v1011
    %1469 = vrot.lane.b32.xlu0 %v1460, 64
    %v1470 = vpop.permute.xlu0 %1469
    %1471 = vrot.lane.b32.xlu0 %v1461, 64
    %v1472 = vpop.permute.xlu0 %1471
    %1473 = vrot.lane.b32.xlu0 %v1462, 64
    %v1474 = vpop.permute.xlu0 %1473
    %v1478 = vmul.f32 %v1455, %v1470
    %v1479 = vmul.f32 %v1457, %v1472
    %v1480 = vmul.f32 %v1459, %v1474
    %1484 = vrot.lane.b32.xlu0 %v1478, 32
    %v1485 = vpop.permute.xlu0 %1484
    %1486 = vrot.lane.b32.xlu0 %v1479, 32
    %v1487 = vpop.permute.xlu0 %1486
    %1488 = vrot.lane.b32.xlu0 %v1480, 32
    %v1489 = vpop.permute.xlu0 %1488
    %v1493 = vadd.f32 %v1463, %v1485
    %v1494 = vadd.f32 %v1464, %v1487
    %v1495 = vadd.f32 %v1465, %v1489
    %v1496 = vtanh.pop %v1493
    %v1497 = vtanh.pop %v1494
    %v1498 = vtanh.pop %v1495
    %1502 = vrot.lane.b32.xlu0 %v1496, 64
    %v1503 = vpop.permute.xlu0 %1502
    %1504 = vrot.lane.b32.xlu0 %v1497, 64
    %v1505 = vpop.permute.xlu0 %1504
    %1506 = vrot.lane.b32.xlu0 %v1498, 64
    %v1507 = vpop.permute.xlu0 %1506
    %v1511 = vmul.f32 %v1455, %v1503
    %v1512 = vmul.f32 %v1457, %v1505
    %v1513 = vmul.f32 %v1459, %v1507
    %v1514 = vpack.c.bf16 %v1512, %v1511
    %v1515 = vpack.c.bf16 %v1513, %v1513
    %1518 = vrot.lane.b32.xlu0 %v1514, 32
    %v1519 = vpop.permute.xlu0 %1518
    %1520 = vrot.lane.b32.xlu0 %v1515, 32
    %v1521 = vpop.permute.xlu0 %1520
    %v1524 = vsel %vm524, %v1521, 0
    %1526 = vmatprep.subr.bf16.mxu0 0
    %1527 = vmatpush1.bf16.msra.mxu0 %v1519
    %1528 = vmatprep.subr.bf16.mxu0 0
    %1529 = vmatpush1.bf16.msra.mxu0 %v1524
    %1530 = vmatprep.subr.bf16.mxu0 0
    %1531 = vmatpush1.bf16.msra.mxu0 0
    %1532 = vmatprep.subr.bf16.mxu0 0
    %1533 = vmatpush1.bf16.msra.mxu0 0
    %1534 = vmatprep.subr.bf16.mxu0 0
    %1535 = vmatpush1.bf16.msra.mxu0 0
    %1536 = vmatprep.subr.bf16.mxu0 0
    %1537 = vmatpush1.bf16.msra.mxu0 0
    %1538 = vmatprep.subr.bf16.mxu0 0
    %1539 = vmatpush1.bf16.msra.mxu0 0
    %1540 = vmatprep.subr.bf16.mxu0 0
    %1541 = vmatpush1.bf16.msra.mxu0 0
    %1542 = vmatprep.subr.bf16.mxu0 0
    %1543 = vmatpush1.bf16.msra.mxu0 0
    %1544 = vmatprep.subr.bf16.mxu0 0
    %1545 = vmatpush1.bf16.msra.mxu0 0
    %1546 = vmatprep.subr.bf16.mxu0 0
    %1547 = vmatpush1.bf16.msra.mxu0 0
    %1548 = vmatprep.subr.bf16.mxu0 0
    %1549 = vmatpush1.bf16.msra.mxu0 0
    %1550 = vmatprep.subr.bf16.mxu0 0
    %1551 = vmatpush1.bf16.msra.mxu0 0
    %1552 = vmatprep.subr.bf16.mxu0 0
    %1553 = vmatpush1.bf16.msra.mxu0 0
    %1554 = vmatprep.subr.bf16.mxu0 0
    %1555 = vmatpush1.bf16.msra.mxu0 0
    %1556 = vmatprep.subr.bf16.mxu0 0
    %1557 = vmatpush1.bf16.msra.mxu0 0
    %1558 = vmatprep.mubr.bf16.mxu0 0
    %1559 = vmatmul.mubr.bf16.gmra.mrb[0].mxu0 %v522
    %v1560 = vpop.f32.mrb[0].mxu0
    %v1561 = vadd.f32 0.0, %v1560
    %v1562 = vpop.f32.mrb[0].mxu0
    %v1563 = vpop.f32.mrb[0].mxu0
    %v1564 = vadd.f32 0.0, %v1563
    %v1565 = vpop.f32.mrb[0].mxu0
    %1566 = vdwg.mxu0
    %1569 = vrot.lane.b32.xlu0 %v1275, 32
    %v1570 = vpop.permute.xlu0 %1569
    %1571 = vrot.lane.b32.xlu0 %v1276, 32
    %v1572 = vpop.permute.xlu0 %1571
    %v1575 = vpack.c.bf16 %v1570, %v1572
    %v1576 = vpack.c.bf16 %v1564, %v1561
    %v1578 = vsel %vm312, %v1575, 0
    %1580 = vmatprep.subr.bf16.mxu0 0
    %1581 = vmatpush1.bf16.msra.mxu0 %v578
    %1582 = vmatprep.subr.bf16.mxu0 0
    %1583 = vmatpush1.bf16.msra.mxu0 %v579
    %1584 = vmatprep.subr.bf16.mxu0 0
    %1585 = vmatpush1.bf16.msra.mxu0 0
    %1586 = vmatprep.subr.bf16.mxu0 0
    %1587 = vmatpush1.bf16.msra.mxu0 0
    %1588 = vmatprep.subr.bf16.mxu0 0
    %1589 = vmatpush1.bf16.msra.mxu0 0
    %1590 = vmatprep.subr.bf16.mxu0 0
    %1591 = vmatpush1.bf16.msra.mxu0 0
    %1592 = vmatprep.subr.bf16.mxu0 0
    %1593 = vmatpush1.bf16.msra.mxu0 0
    %1594 = vmatprep.subr.bf16.mxu0 0
    %1595 = vmatpush1.bf16.msra.mxu0 0
    %1596 = vmatprep.subr.bf16.mxu0 0
    %1597 = vmatpush1.bf16.msra.mxu0 0
    %1598 = vmatprep.subr.bf16.mxu0 0
    %1599 = vmatpush1.bf16.msra.mxu0 0
    %1600 = vmatprep.subr.bf16.mxu0 0
    %1601 = vmatpush1.bf16.msra.mxu0 0
    %1602 = vmatprep.subr.bf16.mxu0 0
    %1603 = vmatpush1.bf16.msra.mxu0 0
    %1604 = vmatprep.subr.bf16.mxu0 0
    %1605 = vmatpush1.bf16.msra.mxu0 0
    %1606 = vmatprep.subr.bf16.mxu0 0
    %1607 = vmatpush1.bf16.msra.mxu0 0
    %1608 = vmatprep.subr.bf16.mxu0 0
    %1609 = vmatpush1.bf16.msra.mxu0 0
    %1610 = vmatprep.subr.bf16.mxu0 0
    %1611 = vmatpush1.bf16.msra.mxu0 0
    %1612 = vmatprep.mubr.bf16.mxu0 0
    %1613 = vmatmul.mubr.bf16.gmra.mrb[0].mxu0 %v1578
    %v1614 = vpop.f32.mrb[0].mxu0
    %v1615 = vadd.f32 0.0, %v1614
    %v1616 = vpop.f32.mrb[0].mxu0
    %v1617 = vpop.f32.mrb[0].mxu0
    %v1618 = vadd.f32 0.0, %v1617
    %v1619 = vpop.f32.mrb[0].mxu0
    %1620 = vdwg.mxu0
    %v1622 = vsel %vm312, %v1576, 0
    %1624 = vmatprep.subr.bf16.mxu0 0
    %1625 = vmatpush1.bf16.msra.mxu0 %v634
    %1626 = vmatprep.subr.bf16.mxu0 0
    %1627 = vmatpush1.bf16.msra.mxu0 %v635
    %1628 = vmatprep.subr.bf16.mxu0 0
    %1629 = vmatpush1.bf16.msra.mxu0 0
    %1630 = vmatprep.subr.bf16.mxu0 0
    %1631 = vmatpush1.bf16.msra.mxu0 0
    %1632 = vmatprep.subr.bf16.mxu0 0
    %1633 = vmatpush1.bf16.msra.mxu0 0
    %1634 = vmatprep.subr.bf16.mxu0 0
    %1635 = vmatpush1.bf16.msra.mxu0 0
    %1636 = vmatprep.subr.bf16.mxu0 0
    %1637 = vmatpush1.bf16.msra.mxu0 0
    %1638 = vmatprep.subr.bf16.mxu0 0
    %1639 = vmatpush1.bf16.msra.mxu0 0
    %1640 = vmatprep.subr.bf16.mxu0 0
    %1641 = vmatpush1.bf16.msra.mxu0 0
    %1642 = vmatprep.subr.bf16.mxu0 0
    %1643 = vmatpush1.bf16.msra.mxu0 0
    %1644 = vmatprep.subr.bf16.mxu0 0
    %1645 = vmatpush1.bf16.msra.mxu0 0
    %1646 = vmatprep.subr.bf16.mxu0 0
    %1647 = vmatpush1.bf16.msra.mxu0 0
    %1648 = vmatprep.subr.bf16.mxu0 0
    %1649 = vmatpush1.bf16.msra.mxu0 0
    %1650 = vmatprep.subr.bf16.mxu0 0
    %1651 = vmatpush1.bf16.msra.mxu0 0
    %1652 = vmatprep.subr.bf16.mxu0 0
    %1653 = vmatpush1.bf16.msra.mxu0 0
    %1654 = vmatprep.subr.bf16.mxu0 0
    %1655 = vmatpush1.bf16.msra.mxu0 0
    %1656 = vmatprep.mubr.bf16.mxu0 0
    %1657 = vmatmul.mubr.bf16.gmra.mrb[0].mxu0 %v1622
    %v1658 = vpop.f32.mrb[0].mxu0
    %v1659 = vadd.f32 %v1615, %v1658
    %v1660 = vpop.f32.mrb[0].mxu0
    %v1661 = vpop.f32.mrb[0].mxu0
    %v1662 = vadd.f32 %v1618, %v1661
    %v1663 = vpop.f32.mrb[0].mxu0
    %1664 = vdwg.mxu0
    %v1666 = vsel %vm312, %v1280, 0
    %1668 = vmatprep.subr.bf16.mxu0 0
    %1669 = vmatpush1.bf16.msra.mxu0 %v690
    %1670 = vmatprep.subr.bf16.mxu0 0
    %1671 = vmatpush1.bf16.msra.mxu0 %v691
    %1672 = vmatprep.subr.bf16.mxu0 0
    %1673 = vmatpush1.bf16.msra.mxu0 0
    %1674 = vmatprep.subr.bf16.mxu0 0
    %1675 = vmatpush1.bf16.msra.mxu0 0
    %1676 = vmatprep.subr.bf16.mxu0 0
    %1677 = vmatpush1.bf16.msra.mxu0 0
    %1678 = vmatprep.subr.bf16.mxu0 0
    %1679 = vmatpush1.bf16.msra.mxu0 0
    %1680 = vmatprep.subr.bf16.mxu0 0
    %1681 = vmatpush1.bf16.msra.mxu0 0
    %1682 = vmatprep.subr.bf16.mxu0 0
    %1683 = vmatpush1.bf16.msra.mxu0 0
    %1684 = vmatprep.subr.bf16.mxu0 0
    %1685 = vmatpush1.bf16.msra.mxu0 0
    %1686 = vmatprep.subr.bf16.mxu0 0
    %1687 = vmatpush1.bf16.msra.mxu0 0
    %1688 = vmatprep.subr.bf16.mxu0 0
    %1689 = vmatpush1.bf16.msra.mxu0 0
    %1690 = vmatprep.subr.bf16.mxu0 0
    %1691 = vmatpush1.bf16.msra.mxu0 0
    %1692 = vmatprep.subr.bf16.mxu0 0
    %1693 = vmatpush1.bf16.msra.mxu0 0
    %1694 = vmatprep.subr.bf16.mxu0 0
    %1695 = vmatpush1.bf16.msra.mxu0 0
    %1696 = vmatprep.subr.bf16.mxu0 0
    %1697 = vmatpush1.bf16.msra.mxu0 0
    %1698 = vmatprep.subr.bf16.mxu0 0
    %1699 = vmatpush1.bf16.msra.mxu0 0
    %1700 = vmatprep.mubr.bf16.mxu0 0
    %1701 = vmatmul.mubr.bf16.gmra.mrb[0].mxu0 %v1666
    %v1702 = vpop.f32.mrb[0].mxu0
    %v1703 = vadd.f32 0.0, %v1702
    %v1704 = vpop.f32.mrb[0].mxu0
    %v1705 = vpop.f32.mrb[0].mxu0
    %v1706 = vadd.f32 0.0, %v1705
    %v1707 = vpop.f32.mrb[0].mxu0
    %1708 = vdwg.mxu0
    %v1709 = vadd.f32 %v1659, %v1703
    %v1710 = vadd.f32 %v1662, %v1706
    %v1711 = vadd.f32 %v1709, %v741
    %v1712 = vadd.f32 %v1710, %v741
    %v1713 = vxor.u32 %v1711, 2147483648
    %v1714 = vxor.u32 %v1712, 2147483648
    %v1715 = vmul.f32 %v1713, 1.442695
    %v1716 = vpow.pop %v1715
    %v1717 = vmul.f32 %v1714, 1.442695
    %v1718 = vpow.pop %v1717
    %v1719 = vadd.f32 %v1716, 1.0
    %v1720 = vadd.f32 %v1718, 1.0
    %v1721 = vrcp.pop %v1719
    %v1722 = vmul.f32 1.0, %v1721
    %v1723 = vrcp.pop %v1720
    %v1724 = vmul.f32 1.0, %v1723
    %v1725 = vtanh.pop %v1711
    %v1726 = vtanh.pop %v1712
    %v1727 = vmul.f32 %v1722, %v1263
    %v1728 = vmul.f32 %v1724, %v1264
    %1731 = vrot.lane.b32.xlu0 %v1725, 64
    %v1732 = vpop.permute.xlu0 %1731
    %1733 = vrot.lane.b32.xlu0 %v1726, 64
    %v1734 = vpop.permute.xlu0 %1733
    %v1737 = vmul.f32 %v1722, %v1732
    %v1738 = vmul.f32 %v1724, %v1734
    %1741 = vrot.lane.b32.xlu0 %v1737, 32
    %v1742 = vpop.permute.xlu0 %1741
    %1743 = vrot.lane.b32.xlu0 %v1738, 32
    %v1744 = vpop.permute.xlu0 %1743
    %v1747 = vadd.f32 %v1727, %v1742
    %v1748 = vadd.f32 %v1728, %v1744
    %v1749 = vtanh.pop %v1747
    %v1750 = vtanh.pop %v1748
    %1753 = vrot.lane.b32.xlu0 %v1749, 64
    %v1754 = vpop.permute.xlu0 %1753
    %1755 = vrot.lane.b32.xlu0 %v1750, 64
    %v1756 = vpop.permute.xlu0 %1755
    %v1759 = vmul.f32 %v1722, %v1754
    %v1760 = vmul.f32 %v1724, %v1756
    %v1761 = vpack.c.bf16 %v1760, %v1759
    %1763 = vrot.lane.b32.xlu0 %v1761, 32
    %v1764 = vpop.permute.xlu0 %1763
    %1766 = vmatprep.subr.bf16.mxu0 0
    %1767 = vmatpush1.bf16.msra.mxu0 %v1764
    %1768 = vmatprep.subr.bf16.mxu0 0
    %1769 = vmatpush1.bf16.msra.mxu0 0
    %1770 = vmatprep.subr.bf16.mxu0 0
    %1771 = vmatpush1.bf16.msra.mxu0 0
    %1772 = vmatprep.subr.bf16.mxu0 0
    %1773 = vmatpush1.bf16.msra.mxu0 0
    %1774 = vmatprep.subr.bf16.mxu0 0
    %1775 = vmatpush1.bf16.msra.mxu0 0
    %1776 = vmatprep.subr.bf16.mxu0 0
    %1777 = vmatpush1.bf16.msra.mxu0 0
    %1778 = vmatprep.subr.bf16.mxu0 0
    %1779 = vmatpush1.bf16.msra.mxu0 0
    %1780 = vmatprep.subr.bf16.mxu0 0
    %1781 = vmatpush1.bf16.msra.mxu0 0
    %1782 = vmatprep.subr.bf16.mxu0 0
    %1783 = vmatpush1.bf16.msra.mxu0 0
    %1784 = vmatprep.subr.bf16.mxu0 0
    %1785 = vmatpush1.bf16.msra.mxu0 0
    %1786 = vmatprep.subr.bf16.mxu0 0
    %1787 = vmatpush1.bf16.msra.mxu0 0
    %1788 = vmatprep.subr.bf16.mxu0 0
    %1789 = vmatpush1.bf16.msra.mxu0 0
    %1790 = vmatprep.subr.bf16.mxu0 0
    %1791 = vmatpush1.bf16.msra.mxu0 0
    %1792 = vmatprep.subr.bf16.mxu0 0
    %1793 = vmatpush1.bf16.msra.mxu0 0
    %1794 = vmatprep.subr.bf16.mxu0 0
    %1795 = vmatpush1.bf16.msra.mxu0 0
    %1796 = vmatprep.subr.bf16.mxu0 0
    %1797 = vmatpush1.bf16.msra.mxu0 0
    %1798 = vmatprep.mubr.bf16.mxu0 0
    %1799 = vmatmul.mubr.bf16.gmra.mrb[0].mxu0 %v244
    %v1800 = vpop.f32.mrb[0].mxu0
    %v1801 = vadd.f32 0.0, %v1800
    %v1802 = vpop.f32.mrb[0].mxu0
    %v1803 = vpop.f32.mrb[0].mxu0
    %v1804 = vadd.f32 0.0, %v1803
    %v1805 = vpop.f32.mrb[0].mxu0
    %1806 = vmatprep.mubr.bf16.mxu0 0
    %1807 = vmatmul.mubr.bf16.gmra.mrb[0].mxu0 %v247
    %v1808 = vpop.f32.mrb[0].mxu0
    %v1809 = vadd.f32 0.0, %v1808
    %v1810 = vpop.f32.mrb[0].mxu0
    %v1811 = vpop.f32.mrb[0].mxu0
    %v1812 = vpop.f32.mrb[0].mxu0
    %1813 = vdwg.mxu0
    %v1814 = vpack.c.bf16 %v1804, %v1801
    %v1815 = vpack.c.bf16 %v1809, %v1809
    %v1817 = vsel %vm312, %v1519, 0
    %v1819 = vsel %vm312, %v1521, 0
    %1821 = vmatprep.subr.bf16.mxu0 0
    %1822 = vmatpush1.bf16.msra.mxu0 %v308
    %1823 = vmatprep.subr.bf16.mxu0 0
    %1824 = vmatpush1.bf16.msra.mxu0 %v309
    %1825 = vmatprep.subr.bf16.mxu0 0
    %1826 = vmatpush1.bf16.msra.mxu0 0
    %1827 = vmatprep.subr.bf16.mxu0 0
    %1828 = vmatpush1.bf16.msra.mxu0 0
    %1829 = vmatprep.subr.bf16.mxu0 0
    %1830 = vmatpush1.bf16.msra.mxu0 0
    %1831 = vmatprep.subr.bf16.mxu0 0
    %1832 = vmatpush1.bf16.msra.mxu0 0
    %1833 = vmatprep.subr.bf16.mxu0 0
    %1834 = vmatpush1.bf16.msra.mxu0 0
    %1835 = vmatprep.subr.bf16.mxu0 0
    %1836 = vmatpush1.bf16.msra.mxu0 0
    %1837 = vmatprep.subr.bf16.mxu0 0
    %1838 = vmatpush1.bf16.msra.mxu0 0
    %1839 = vmatprep.subr.bf16.mxu0 0
    %1840 = vmatpush1.bf16.msra.mxu0 0
    %1841 = vmatprep.subr.bf16.mxu0 0
    %1842 = vmatpush1.bf16.msra.mxu0 0
    %1843 = vmatprep.subr.bf16.mxu0 0
    %1844 = vmatpush1.bf16.msra.mxu0 0
    %1845 = vmatprep.subr.bf16.mxu0 0
    %1846 = vmatpush1.bf16.msra.mxu0 0
    %1847 = vmatprep.subr.bf16.mxu0 0
    %1848 = vmatpush1.bf16.msra.mxu0 0
    %1849 = vmatprep.subr.bf16.mxu0 0
    %1850 = vmatpush1.bf16.msra.mxu0 0
    %1851 = vmatprep.subr.bf16.mxu0 0
    %1852 = vmatpush1.bf16.msra.mxu0 0
    %1853 = vmatprep.mubr.bf16.mxu0 0
    %1854 = vmatmul.mubr.bf16.gmra.mrb[0].mxu0 %v1817
    %v1855 = vpop.f32.mrb[0].mxu0
    %v1856 = vadd.f32 0.0, %v1855
    %v1857 = vpop.f32.mrb[0].mxu0
    %v1858 = vpop.f32.mrb[0].mxu0
    %v1859 = vadd.f32 0.0, %v1858
    %v1860 = vpop.f32.mrb[0].mxu0
    %1861 = vmatprep.mubr.bf16.mxu0 0
    %1862 = vmatmul.mubr.bf16.gmra.mrb[0].mxu0 %v1819
    %v1863 = vpop.f32.mrb[0].mxu0
    %v1864 = vadd.f32 0.0, %v1863
    %v1865 = vpop.f32.mrb[0].mxu0
    %v1866 = vpop.f32.mrb[0].mxu0
    %v1867 = vpop.f32.mrb[0].mxu0
    %1868 = vdwg.mxu0
    %v1870 = vsel %vm312, %v1814, 0
    %v1873 = vsel %vm312, %v1815, 0
    %1875 = vmatprep.subr.bf16.mxu0 0
    %1876 = vmatpush1.bf16.msra.mxu0 %v372
    %1877 = vmatprep.subr.bf16.mxu0 0
    %1878 = vmatpush1.bf16.msra.mxu0 %v373
    %1879 = vmatprep.subr.bf16.mxu0 0
    %1880 = vmatpush1.bf16.msra.mxu0 0
    %1881 = vmatprep.subr.bf16.mxu0 0
    %1882 = vmatpush1.bf16.msra.mxu0 0
    %1883 = vmatprep.subr.bf16.mxu0 0
    %1884 = vmatpush1.bf16.msra.mxu0 0
    %1885 = vmatprep.subr.bf16.mxu0 0
    %1886 = vmatpush1.bf16.msra.mxu0 0
    %1887 = vmatprep.subr.bf16.mxu0 0
    %1888 = vmatpush1.bf16.msra.mxu0 0
    %1889 = vmatprep.subr.bf16.mxu0 0
    %1890 = vmatpush1.bf16.msra.mxu0 0
    %1891 = vmatprep.subr.bf16.mxu0 0
    %1892 = vmatpush1.bf16.msra.mxu0 0
    %1893 = vmatprep.subr.bf16.mxu0 0
    %1894 = vmatpush1.bf16.msra.mxu0 0
    %1895 = vmatprep.subr.bf16.mxu0 0
    %1896 = vmatpush1.bf16.msra.mxu0 0
    %1897 = vmatprep.subr.bf16.mxu0 0
    %1898 = vmatpush1.bf16.msra.mxu0 0
    %1899 = vmatprep.subr.bf16.mxu0 0
    %1900 = vmatpush1.bf16.msra.mxu0 0
    %1901 = vmatprep.subr.bf16.mxu0 0
    %1902 = vmatpush1.bf16.msra.mxu0 0
    %1903 = vmatprep.subr.bf16.mxu0 0
    %1904 = vmatpush1.bf16.msra.mxu0 0
    %1905 = vmatprep.subr.bf16.mxu0 0
    %1906 = vmatpush1.bf16.msra.mxu0 0
    %1907 = vmatprep.mubr.bf16.mxu0 0
    %1908 = vmatmul.mubr.bf16.gmra.mrb[0].mxu0 %v1870
    %v1909 = vpop.f32.mrb[0].mxu0
    %v1910 = vadd.f32 %v1856, %v1909
    %v1911 = vpop.f32.mrb[0].mxu0
    %v1912 = vpop.f32.mrb[0].mxu0
    %v1913 = vadd.f32 %v1859, %v1912
    %v1914 = vpop.f32.mrb[0].mxu0
    %1915 = vmatprep.mubr.bf16.mxu0 0
    %1916 = vmatmul.mubr.bf16.gmra.mrb[0].mxu0 %v1873
    %v1917 = vpop.f32.mrb[0].mxu0
    %v1918 = vadd.f32 %v1864, %v1917
    %v1919 = vpop.f32.mrb[0].mxu0
    %v1920 = vpop.f32.mrb[0].mxu0
    %v1921 = vpop.f32.mrb[0].mxu0
    %1922 = vdwg.mxu0
    %v1923 = vadd.f32 %v1910, %v434
    %v1924 = vadd.f32 %v1913, %v434
    %v1925 = vadd.f32 %v1918, %v434
    %v1926 = vxor.u32 %v1923, 2147483648
    %v1927 = vxor.u32 %v1924, 2147483648
    %v1928 = vxor.u32 %v1925, 2147483648
    %v1929 = vmul.f32 %v1926, 1.442695
    %v1930 = vpow.pop %v1929
    %v1931 = vmul.f32 %v1927, 1.442695
    %v1932 = vpow.pop %v1931
    %v1933 = vmul.f32 %v1928, 1.442695
    %v1934 = vpow.pop %v1933
    %v1935 = vadd.f32 %v1930, 1.0
    %v1936 = vadd.f32 %v1932, 1.0
    %v1937 = vadd.f32 %v1934, 1.0
    %v1938 = vrcp.pop %v1935
    %v1939 = vmul.f32 1.0, %v1938
    %v1940 = vrcp.pop %v1936
    %v1941 = vmul.f32 1.0, %v1940
    %v1942 = vrcp.pop %v1937
    %v1943 = vmul.f32 1.0, %v1942
    %v1944 = vtanh.pop %v1923
    %v1945 = vtanh.pop %v1924
    %v1946 = vtanh.pop %v1925
    %v1947 = vmul.f32 %v1939, %v1493
    %v1948 = vmul.f32 %v1941, %v1494
    %v1949 = vmul.f32 %v1943, %v1495
    %1953 = vrot.lane.b32.xlu0 %v1944, 64
    %v1954 = vpop.permute.xlu0 %1953
    %1955 = vrot.lane.b32.xlu0 %v1945, 64
    %v1956 = vpop.permute.xlu0 %1955
    %1957 = vrot.lane.b32.xlu0 %v1946, 64
    %v1958 = vpop.permute.xlu0 %1957
    %v1962 = vmul.f32 %v1939, %v1954
    %v1963 = vmul.f32 %v1941, %v1956
    %v1964 = vmul.f32 %v1943, %v1958
    %1968 = vrot.lane.b32.xlu0 %v1962, 32
    %v1969 = vpop.permute.xlu0 %1968
    %1970 = vrot.lane.b32.xlu0 %v1963, 32
    %v1971 = vpop.permute.xlu0 %1970
    %1972 = vrot.lane.b32.xlu0 %v1964, 32
    %v1973 = vpop.permute.xlu0 %1972
    %v1977 = vadd.f32 %v1947, %v1969
    %v1978 = vadd.f32 %v1948, %v1971
    %v1979 = vadd.f32 %v1949, %v1973
    %v1980 = vtanh.pop %v1977
    %v1981 = vtanh.pop %v1978
    %v1982 = vtanh.pop %v1979
    %1986 = vrot.lane.b32.xlu0 %v1980, 64
    %v1987 = vpop.permute.xlu0 %1986
    %1988 = vrot.lane.b32.xlu0 %v1981, 64
    %v1989 = vpop.permute.xlu0 %1988
    %1990 = vrot.lane.b32.xlu0 %v1982, 64
    %v1991 = vpop.permute.xlu0 %1990
    %v1995 = vmul.f32 %v1939, %v1987
    %v1996 = vmul.f32 %v1941, %v1989
    %v1997 = vmul.f32 %v1943, %v1991
    %v1998 = vpack.c.bf16 %v1996, %v1995
    %v1999 = vpack.c.bf16 %v1997, %v1997
    %2002 = vrot.lane.b32.xlu0 %v1998, 32
    %v2003 = vpop.permute.xlu0 %2002
    %2004 = vrot.lane.b32.xlu0 %v1999, 32
    %v2005 = vpop.permute.xlu0 %2004
    %v2008 = vsel %vm524, %v2005, 0
    %2010 = vmatprep.subr.bf16.mxu0 0
    %2011 = vmatpush1.bf16.msra.mxu0 %v2003
    %2012 = vmatprep.subr.bf16.mxu0 0
    %2013 = vmatpush1.bf16.msra.mxu0 %v2008
    %2014 = vmatprep.subr.bf16.mxu0 0
    %2015 = vmatpush1.bf16.msra.mxu0 0
    %2016 = vmatprep.subr.bf16.mxu0 0
    %2017 = vmatpush1.bf16.msra.mxu0 0
    %2018 = vmatprep.subr.bf16.mxu0 0
    %2019 = vmatpush1.bf16.msra.mxu0 0
    %2020 = vmatprep.subr.bf16.mxu0 0
    %2021 = vmatpush1.bf16.msra.mxu0 0
    %2022 = vmatprep.subr.bf16.mxu0 0
    %2023 = vmatpush1.bf16.msra.mxu0 0
    %2024 = vmatprep.subr.bf16.mxu0 0
    %2025 = vmatpush1.bf16.msra.mxu0 0
    %2026 = vmatprep.subr.bf16.mxu0 0
    %2027 = vmatpush1.bf16.msra.mxu0 0
    %2028 = vmatprep.subr.bf16.mxu0 0
    %2029 = vmatpush1.bf16.msra.mxu0 0
    %2030 = vmatprep.subr.bf16.mxu0 0
    %2031 = vmatpush1.bf16.msra.mxu0 0
    %2032 = vmatprep.subr.bf16.mxu0 0
    %2033 = vmatpush1.bf16.msra.mxu0 0
    %2034 = vmatprep.subr.bf16.mxu0 0
    %2035 = vmatpush1.bf16.msra.mxu0 0
    %2036 = vmatprep.subr.bf16.mxu0 0
    %2037 = vmatpush1.bf16.msra.mxu0 0
    %2038 = vmatprep.subr.bf16.mxu0 0
    %2039 = vmatpush1.bf16.msra.mxu0 0
    %2040 = vmatprep.subr.bf16.mxu0 0
    %2041 = vmatpush1.bf16.msra.mxu0 0
    %2042 = vmatprep.mubr.bf16.mxu0 0
    %2043 = vmatmul.mubr.bf16.gmra.mrb[0].mxu0 %v522
    %v2044 = vpop.f32.mrb[0].mxu0
    %v2045 = vadd.f32 0.0, %v2044
    %v2046 = vpop.f32.mrb[0].mxu0
    %v2047 = vpop.f32.mrb[0].mxu0
    %v2048 = vadd.f32 0.0, %v2047
    %v2049 = vpop.f32.mrb[0].mxu0
    %2050 = vdwg.mxu0
    %2053 = vrot.lane.b32.xlu0 %v1759, 32
    %v2054 = vpop.permute.xlu0 %2053
    %2055 = vrot.lane.b32.xlu0 %v1760, 32
    %v2056 = vpop.permute.xlu0 %2055
    %v2059 = vpack.c.bf16 %v2054, %v2056
    %v2060 = vpack.c.bf16 %v2048, %v2045
    %v2062 = vsel %vm312, %v2059, 0
    %2064 = vmatprep.subr.bf16.mxu0 0
    %2065 = vmatpush1.bf16.msra.mxu0 %v578
    %2066 = vmatprep.subr.bf16.mxu0 0
    %2067 = vmatpush1.bf16.msra.mxu0 %v579
    %2068 = vmatprep.subr.bf16.mxu0 0
    %2069 = vmatpush1.bf16.msra.mxu0 0
    %2070 = vmatprep.subr.bf16.mxu0 0
    %2071 = vmatpush1.bf16.msra.mxu0 0
    %2072 = vmatprep.subr.bf16.mxu0 0
    %2073 = vmatpush1.bf16.msra.mxu0 0
    %2074 = vmatprep.subr.bf16.mxu0 0
    %2075 = vmatpush1.bf16.msra.mxu0 0
    %2076 = vmatprep.subr.bf16.mxu0 0
    %2077 = vmatpush1.bf16.msra.mxu0 0
    %2078 = vmatprep.subr.bf16.mxu0 0
    %2079 = vmatpush1.bf16.msra.mxu0 0
    %2080 = vmatprep.subr.bf16.mxu0 0
    %2081 = vmatpush1.bf16.msra.mxu0 0
    %2082 = vmatprep.subr.bf16.mxu0 0
    %2083 = vmatpush1.bf16.msra.mxu0 0
    %2084 = vmatprep.subr.bf16.mxu0 0
    %2085 = vmatpush1.bf16.msra.mxu0 0
    %2086 = vmatprep.subr.bf16.mxu0 0
    %2087 = vmatpush1.bf16.msra.mxu0 0
    %2088 = vmatprep.subr.bf16.mxu0 0
    %2089 = vmatpush1.bf16.msra.mxu0 0
    %2090 = vmatprep.subr.bf16.mxu0 0
    %2091 = vmatpush1.bf16.msra.mxu0 0
    %2092 = vmatprep.subr.bf16.mxu0 0
    %2093 = vmatpush1.bf16.msra.mxu0 0
    %2094 = vmatprep.subr.bf16.mxu0 0
    %2095 = vmatpush1.bf16.msra.mxu0 0
    %2096 = vmatprep.mubr.bf16.mxu0 0
    %2097 = vmatmul.mubr.bf16.gmra.mrb[0].mxu0 %v2062
    %v2098 = vpop.f32.mrb[0].mxu0
    %v2099 = vadd.f32 0.0, %v2098
    %v2100 = vpop.f32.mrb[0].mxu0
    %v2101 = vpop.f32.mrb[0].mxu0
    %v2102 = vadd.f32 0.0, %v2101
    %v2103 = vpop.f32.mrb[0].mxu0
    %2104 = vdwg.mxu0
    %v2106 = vsel %vm312, %v2060, 0
    %2108 = vmatprep.subr.bf16.mxu0 0
    %2109 = vmatpush1.bf16.msra.mxu0 %v634
    %2110 = vmatprep.subr.bf16.mxu0 0
    %2111 = vmatpush1.bf16.msra.mxu0 %v635
    %2112 = vmatprep.subr.bf16.mxu0 0
    %2113 = vmatpush1.bf16.msra.mxu0 0
    %2114 = vmatprep.subr.bf16.mxu0 0
    %2115 = vmatpush1.bf16.msra.mxu0 0
    %2116 = vmatprep.subr.bf16.mxu0 0
    %2117 = vmatpush1.bf16.msra.mxu0 0
    %2118 = vmatprep.subr.bf16.mxu0 0
    %2119 = vmatpush1.bf16.msra.mxu0 0
    %2120 = vmatprep.subr.bf16.mxu0 0
    %2121 = vmatpush1.bf16.msra.mxu0 0
    %2122 = vmatprep.subr.bf16.mxu0 0
    %2123 = vmatpush1.bf16.msra.mxu0 0
    %2124 = vmatprep.subr.bf16.mxu0 0
    %2125 = vmatpush1.bf16.msra.mxu0 0
    %2126 = vmatprep.subr.bf16.mxu0 0
    %2127 = vmatpush1.bf16.msra.mxu0 0
    %2128 = vmatprep.subr.bf16.mxu0 0
    %2129 = vmatpush1.bf16.msra.mxu0 0
    %2130 = vmatprep.subr.bf16.mxu0 0
    %2131 = vmatpush1.bf16.msra.mxu0 0
    %2132 = vmatprep.subr.bf16.mxu0 0
    %2133 = vmatpush1.bf16.msra.mxu0 0
    %2134 = vmatprep.subr.bf16.mxu0 0
    %2135 = vmatpush1.bf16.msra.mxu0 0
    %2136 = vmatprep.subr.bf16.mxu0 0
    %2137 = vmatpush1.bf16.msra.mxu0 0
    %2138 = vmatprep.subr.bf16.mxu0 0
    %2139 = vmatpush1.bf16.msra.mxu0 0
    %2140 = vmatprep.mubr.bf16.mxu0 0
    %2141 = vmatmul.mubr.bf16.gmra.mrb[0].mxu0 %v2106
    %v2142 = vpop.f32.mrb[0].mxu0
    %v2143 = vadd.f32 %v2099, %v2142
    %v2144 = vpop.f32.mrb[0].mxu0
    %v2145 = vpop.f32.mrb[0].mxu0
    %v2146 = vadd.f32 %v2102, %v2145
    %v2147 = vpop.f32.mrb[0].mxu0
    %2148 = vdwg.mxu0
    %v2150 = vsel %vm312, %v1764, 0
    %2152 = vmatprep.subr.bf16.mxu0 0
    %2153 = vmatpush1.bf16.msra.mxu0 %v690
    %2154 = vmatprep.subr.bf16.mxu0 0
    %2155 = vmatpush1.bf16.msra.mxu0 %v691
    %2156 = vmatprep.subr.bf16.mxu0 0
    %2157 = vmatpush1.bf16.msra.mxu0 0
    %2158 = vmatprep.subr.bf16.mxu0 0
    %2159 = vmatpush1.bf16.msra.mxu0 0
    %2160 = vmatprep.subr.bf16.mxu0 0
    %2161 = vmatpush1.bf16.msra.mxu0 0
    %2162 = vmatprep.subr.bf16.mxu0 0
    %2163 = vmatpush1.bf16.msra.mxu0 0
    %2164 = vmatprep.subr.bf16.mxu0 0
    %2165 = vmatpush1.bf16.msra.mxu0 0
    %2166 = vmatprep.subr.bf16.mxu0 0
    %2167 = vmatpush1.bf16.msra.mxu0 0
    %2168 = vmatprep.subr.bf16.mxu0 0
    %2169 = vmatpush1.bf16.msra.mxu0 0
    %2170 = vmatprep.subr.bf16.mxu0 0
    %2171 = vmatpush1.bf16.msra.mxu0 0
    %2172 = vmatprep.subr.bf16.mxu0 0
    %2173 = vmatpush1.bf16.msra.mxu0 0
    %2174 = vmatprep.subr.bf16.mxu0 0
    %2175 = vmatpush1.bf16.msra.mxu0 0
    %2176 = vmatprep.subr.bf16.mxu0 0
    %2177 = vmatpush1.bf16.msra.mxu0 0
    %2178 = vmatprep.subr.bf16.mxu0 0
    %2179 = vmatpush1.bf16.msra.mxu0 0
    %2180 = vmatprep.subr.bf16.mxu0 0
    %2181 = vmatpush1.bf16.msra.mxu0 0
    %2182 = vmatprep.subr.bf16.mxu0 0
    %2183 = vmatpush1.bf16.msra.mxu0 0
    %2184 = vmatprep.mubr.bf16.mxu0 0
    %2185 = vmatmul.mubr.bf16.gmra.mrb[0].mxu0 %v2150
    %v2186 = vpop.f32.mrb[0].mxu0
    %v2187 = vadd.f32 0.0, %v2186
    %v2188 = vpop.f32.mrb[0].mxu0
    %v2189 = vpop.f32.mrb[0].mxu0
    %v2190 = vadd.f32 0.0, %v2189
    %v2191 = vpop.f32.mrb[0].mxu0
    %2192 = vdwg.mxu0
    %v2193 = vadd.f32 %v2143, %v2187
    %v2194 = vadd.f32 %v2146, %v2190
    %v2195 = vadd.f32 %v2193, %v741
    %v2196 = vadd.f32 %v2194, %v741
    %v2197 = vxor.u32 %v2195, 2147483648
    %v2198 = vxor.u32 %v2196, 2147483648
    %v2199 = vmul.f32 %v2197, 1.442695
    %v2200 = vpow.pop %v2199
    %v2201 = vmul.f32 %v2198, 1.442695
    %v2202 = vpow.pop %v2201
    %v2203 = vadd.f32 %v2200, 1.0
    %v2204 = vadd.f32 %v2202, 1.0
    %v2205 = vrcp.pop %v2203
    %v2206 = vmul.f32 1.0, %v2205
    %v2207 = vrcp.pop %v2204
    %v2208 = vmul.f32 1.0, %v2207
    %v2209 = vtanh.pop %v2195
    %v2210 = vtanh.pop %v2196
    %v2211 = vmul.f32 %v2206, %v1747
    %v2212 = vmul.f32 %v2208, %v1748
    %2215 = vrot.lane.b32.xlu0 %v2209, 64
    %v2216 = vpop.permute.xlu0 %2215
    %2217 = vrot.lane.b32.xlu0 %v2210, 64
    %v2218 = vpop.permute.xlu0 %2217
    %v2221 = vmul.f32 %v2206, %v2216
    %v2222 = vmul.f32 %v2208, %v2218
    %2225 = vrot.lane.b32.xlu0 %v2221, 32
    %v2226 = vpop.permute.xlu0 %2225
    %2227 = vrot.lane.b32.xlu0 %v2222, 32
    %v2228 = vpop.permute.xlu0 %2227
    %v2231 = vadd.f32 %v2211, %v2226
    %v2232 = vadd.f32 %v2212, %v2228
    %v2233 = vtanh.pop %v2231
    %v2234 = vtanh.pop %v2232
    %2237 = vrot.lane.b32.xlu0 %v2233, 64
    %v2238 = vpop.permute.xlu0 %2237
    %2239 = vrot.lane.b32.xlu0 %v2234, 64
    %v2240 = vpop.permute.xlu0 %2239
    %v2243 = vmul.f32 %v2206, %v2238
    %v2244 = vmul.f32 %v2208, %v2240
    %v2245 = vpack.c.bf16 %v2244, %v2243
    %v2246 = vld [vmem:[#allocation16] sm:$0xf]
    %v2247 = vld [vmem:[#allocation16 + $0x4] sm:$0xf]
    %v2248 = vld [vmem:[#allocation16 + $0x8] sm:$0xf]
    %v2249 = vld [vmem:[#allocation16 + $0xc] sm:$0xf]
    %v2250 = vld [vmem:[#allocation18] sm:$0x1]
    %v2252 = vlaneseq
    %v2253 = vshrl.u32 %v2252, 7
    %v2254 = vsub.s32 0, %v2253
    %v2255 = vrot.slane %v2250, %v2254
    %2258 = vrot.lane.b32.xlu0 %v2245, 32
    %v2259 = vpop.permute.xlu0 %2258
    %v2264 = vunpack.c.l.b16 %v2246
    %v2265 = vunpack.c.l.b16 %v2247
    %v2266 = vunpack.c.l.b16 %v2248
    %v2267 = vunpack.c.l.b16 %v2249
    %v2268 = vpack.c.b16 %v2265, %v2264
    %v2269 = vpack.c.b16 %v2267, %v2266
    %v2273 = vsel %vm312, %v2259, 0
    %2275 = vmatprep.subr.bf16.mxu0 0
    %2276 = vmatpush1.bf16.msra.mxu0 %v2268
    %2277 = vmatprep.subr.bf16.mxu0 0
    %2278 = vmatpush1.bf16.msra.mxu0 %v2269
    %2279 = vmatprep.subr.bf16.mxu0 0
    %2280 = vmatpush1.bf16.msra.mxu0 0
    %2281 = vmatprep.subr.bf16.mxu0 0
    %2282 = vmatpush1.bf16.msra.mxu0 0
    %2283 = vmatprep.subr.bf16.mxu0 0
    %2284 = vmatpush1.bf16.msra.mxu0 0
    %2285 = vmatprep.subr.bf16.mxu0 0
    %2286 = vmatpush1.bf16.msra.mxu0 0
    %2287 = vmatprep.subr.bf16.mxu0 0
    %2288 = vmatpush1.bf16.msra.mxu0 0
    %2289 = vmatprep.subr.bf16.mxu0 0
    %2290 = vmatpush1.bf16.msra.mxu0 0
    %2291 = vmatprep.subr.bf16.mxu0 0
    %2292 = vmatpush1.bf16.msra.mxu0 0
    %2293 = vmatprep.subr.bf16.mxu0 0
    %2294 = vmatpush1.bf16.msra.mxu0 0
    %2295 = vmatprep.subr.bf16.mxu0 0
    %2296 = vmatpush1.bf16.msra.mxu0 0
    %2297 = vmatprep.subr.bf16.mxu0 0
    %2298 = vmatpush1.bf16.msra.mxu0 0
    %2299 = vmatprep.subr.bf16.mxu0 0
    %2300 = vmatpush1.bf16.msra.mxu0 0
    %2301 = vmatprep.subr.bf16.mxu0 0
    %2302 = vmatpush1.bf16.msra.mxu0 0
    %2303 = vmatprep.subr.bf16.mxu0 0
    %2304 = vmatpush1.bf16.msra.mxu0 0
    %2305 = vmatprep.subr.bf16.mxu0 0
    %2306 = vmatpush1.bf16.msra.mxu0 0
    %2307 = vmatprep.mubr.bf16.mxu0 0
    %2308 = vmatmul.mubr.bf16.gmra.mrb[0].mxu0 %v2273
    %v2309 = vpop.f32.mrb[0].mxu0
    %v2310 = vadd.f32 %v2255, %v2309
    %v2311 = vpop.f32.mrb[0].mxu0
    %v2312 = vpop.f32.mrb[0].mxu0
    %v2313 = vadd.f32 %v2255, %v2312
    %v2314 = vpop.f32.mrb[0].mxu0
    %2315 = vdwg.mxu0
    %v2316 = vmax.f32 %v2310, 0.0
    %v2317 = vmax.f32 %v2313, 0.0
    %v2318 = vpack.c.bf16 %v2317, %v2316
    %v2319 = vld [vmem:[%s12] sm:$0xf]
    %v2320 = vld [vmem:[%s12 + $0x4] sm:$0xf]
    %v2321 = vld [vmem:[%s12 + $0x8] sm:$0xf]
    %v2322 = vld [vmem:[%s12 + $0xc] sm:$0xf]
    %v2323 = vld [vmem:[%s13] sm:$0x1]
    %v2325 = vlaneseq
    %v2326 = vshrl.u32 %v2325, 7
    %v2327 = vsub.s32 0, %v2326
    %v2328 = vrot.slane %v2323, %v2327
    %v2334 = vunpack.c.l.b16 %v2319
    %v2335 = vunpack.c.l.b16 %v2320
    %v2336 = vunpack.c.l.b16 %v2321
    %v2337 = vunpack.c.l.b16 %v2322
    %v2338 = vpack.c.b16 %v2335, %v2334
    %v2339 = vpack.c.b16 %v2337, %v2336
    %v2343 = vsel %vm312, %v2318, 0
    %2345 = vmatprep.subr.bf16.mxu0 0
    %2346 = vmatpush1.bf16.msra.mxu0 %v2338
    %2347 = vmatprep.subr.bf16.mxu0 0
    %2348 = vmatpush1.bf16.msra.mxu0 %v2339
    %2349 = vmatprep.subr.bf16.mxu0 0
    %2350 = vmatpush1.bf16.msra.mxu0 0
    %2351 = vmatprep.subr.bf16.mxu0 0
    %2352 = vmatpush1.bf16.msra.mxu0 0
    %2353 = vmatprep.subr.bf16.mxu0 0
    %2354 = vmatpush1.bf16.msra.mxu0 0
    %2355 = vmatprep.subr.bf16.mxu0 0
    %2356 = vmatpush1.bf16.msra.mxu0 0
    %2357 = vmatprep.subr.bf16.mxu0 0
    %2358 = vmatpush1.bf16.msra.mxu0 0
    %2359 = vmatprep.subr.bf16.mxu0 0
    %2360 = vmatpush1.bf16.msra.mxu0 0
    %2361 = vmatprep.subr.bf16.mxu0 0
    %2362 = vmatpush1.bf16.msra.mxu0 0
    %2363 = vmatprep.subr.bf16.mxu0 0
    %2364 = vmatpush1.bf16.msra.mxu0 0
    %2365 = vmatprep.subr.bf16.mxu0 0
    %2366 = vmatpush1.bf16.msra.mxu0 0
    %2367 = vmatprep.subr.bf16.mxu0 0
    %2368 = vmatpush1.bf16.msra.mxu0 0
    %2369 = vmatprep.subr.bf16.mxu0 0
    %2370 = vmatpush1.bf16.msra.mxu0 0
    %2371 = vmatprep.subr.bf16.mxu0 0
    %2372 = vmatpush1.bf16.msra.mxu0 0
    %2373 = vmatprep.subr.bf16.mxu0 0
    %2374 = vmatpush1.bf16.msra.mxu0 0
    %2375 = vmatprep.subr.bf16.mxu0 0
    %2376 = vmatpush1.bf16.msra.mxu0 0
    %2377 = vmatprep.mubr.bf16.mxu0 0
    %2378 = vmatmul.mubr.bf16.gmra.mrb[0].mxu0 %v2343
    %v2379 = vpop.f32.mrb[0].mxu0
    %v2380 = vadd.f32 %v2328, %v2379
    %v2381 = vpop.f32.mrb[0].mxu0
    %v2382 = vpop.f32.mrb[0].mxu0
    %v2383 = vadd.f32 %v2328, %v2382
    %v2384 = vpop.f32.mrb[0].mxu0
    %2385 = vdwg.mxu0
    %v2386 = vmax.f32 %v2380, 0.0
    %v2387 = vmax.f32 %v2383, 0.0
    %v2388 = vld [vmem:[%s14] sm:$0x1]
    %v2390 = vlaneseq
    %v2391 = vshrl.u32 %v2390, 7
    %v2392 = vsub.s32 0, %v2391
    %v2393 = vrot.slane %v2388, %v2392
    %v2395 = vmul.f32 %v2386, %v2393
    %v2396 = vmul.f32 %v2387, %v2393
    %v2397 = vsel %vm312, %v2395, 0.0
    %2398 = vadd.xlane.f32.xlu0 %v2397
    %v2399 = vpop.xlane.xlu0 %2398
    %v2400 = vsel %vm312, %v2396, 0.0
    %2401 = vadd.xlane.f32.xlu0 %v2400
    %v2402 = vpop.xlane.xlu0 %2401
    %v2403 = vld [vmem:[#allocation2] sm:$0x1]
    %v2405 = vlaneseq
    %v2406 = vshrl.u32 %v2405, 7
    %v2407 = vsub.s32 0, %v2406
    %v2408 = vrot.slane %v2403, %v2407
    %v2410 = vadd.f32 %v2399, %v2408
    %v2411 = vadd.f32 %v2402, %v2408
    %v2412 = vsub.f32 %v2410, %v2411
    %v2413 = vxor.u32 %v2412, 2147483648
    %v2414 = vmul.f32 %v2413, 1.442695
    %v2415 = vpow.pop %v2414
    %v2416 = vadd.f32 %v2415, 1.0
    %v2417 = vrcp.pop %v2416
    %v2418 = vmul.f32 1.0, %v2417
    %vm2419 = vcmask 7168
    %2420 = vst.msk [vmem:[%s18] sm:$0xff] %vm2419, %v2418
    %v2421 = vld [vmem:[%s16] sm:$0x1]
    %v2423 = vlaneseq
    %v2424 = vshrl.u32 %v2423, 7
    %v2425 = vsub.s32 0, %v2424
    %v2426 = vrot.slane %v2421, %v2425
    %2427 = vrot.lane.b32.xlu0 %v2426, 96
    %v2428 = vpop.permute.xlu0 %2427
    %v2430 = vmul.f32 %v1995, %v2428
    %v2431 = vmul.f32 %v1996, %v2428
    %v2432 = vmul.f32 %v1997, %v2428
    %2436 = vrot.lane.b32.xlu0 %v2430, 32
    %v2437 = vpop.permute.xlu0 %2436
    %2438 = vrot.lane.b32.xlu0 %v2431, 32
    %v2439 = vpop.permute.xlu0 %2438
    %2440 = vrot.lane.b32.xlu0 %v2432, 32
    %v2441 = vpop.permute.xlu0 %2440
    %v2445 = vsel %vm312, %v2437, 0.0
    %2446 = vadd.xlane.f32.xlu0 %v2445
    %v2447 = vpop.xlane.xlu0 %2446
    %v2448 = vsel %vm312, %v2439, 0.0
    %2449 = vadd.xlane.f32.xlu0 %v2448
    %v2450 = vpop.xlane.xlu0 %2449
    %vm2451 = vcmask 257024
    %v2452 = vsel %vm2451, %v2441, 0.0
    %2453 = vadd.xlane.f32.xlu0 %v2452
    %v2454 = vpop.xlane.xlu0 %2453
    %v2455 = vld [vmem:[#allocation3] sm:$0x1]
    %v2457 = vlaneseq
    %v2458 = vshrl.u32 %v2457, 7
    %v2459 = vsub.s32 0, %v2458
    %v2460 = vrot.slane %v2455, %v2459
    %v2462 = vadd.f32 %v2447, %v2460
    %v2463 = vadd.f32 %v2450, %v2460
    %v2464 = vadd.f32 %v2454, %v2460
    %v2465 = vxor.u32 %v2462, 2147483648
    %v2466 = vxor.u32 %v2463, 2147483648
    %v2467 = vxor.u32 %v2464, 2147483648
    %v2468 = vmul.f32 %v2465, 1.442695
    %v2469 = vpow.pop %v2468
    %v2470 = vmul.f32 %v2466, 1.442695
    %v2471 = vpow.pop %v2470
    %v2472 = vmul.f32 %v2467, 1.442695
    %v2473 = vpow.pop %v2472
    %v2474 = vadd.f32 %v2469, 1.0
    %v2475 = vadd.f32 %v2471, 1.0
    %v2476 = vadd.f32 %v2473, 1.0
    %v2477 = vrcp.pop %v2474
    %v2478 = vmul.f32 1.0, %v2477
    %v2479 = vrcp.pop %v2475
    %v2480 = vmul.f32 1.0, %v2479
    %v2481 = vrcp.pop %v2476
    %v2482 = vmul.f32 1.0, %v2481
    %v2483 = vsel %vm2419, %v2478, 0.0
    %v2484 = vsel %vm2419, %v2480, 0.0
    %v2485 = vadd.f32 %v2483, %v2484
    %vm2486 = vcmask 3072
    %v2487 = vsel %vm2486, %v2482, 0.0
    %v2488 = vadd.f32 %v2485, %v2487
    %2489 = vadd.xlane.f32.xlu0 %v2488
    %v2490 = vpop.xlane.xlu0 %2489
    %v2491 = vrot.slane %v2490, 4
    %v2492 = vadd.f32 %v2490, %v2491
    %v2493 = vrot.slane %v2492, 2
    %v2494 = vadd.f32 %v2492, %v2493
    %v2495 = vrot.slane %v2494, 1
    %v2496 = vadd.f32 %v2494, %v2495
    %s2497 = vtos %v2496
    %v2498 = vstv %s2497
    %v2499 = vrcp.pop 20.0
    %v2500 = vmul.f32 %v2498, %v2499
    %vm2501 = vcmask 0
    %2502 = vst.msk [vmem:[#allocation19] sm:$0x1] %vm2501, %v2500
    // Predicated region
    $region110: #{tpu_custom_call.1} parent=1 // pred_check
      _
    $region111: #{tpu_custom_call.1} parent=1 // pred_check_branch
      %2504 = sbr.rel (0) target = $region113
    $region112: #{tpu_custom_call.1} parent=1 // pred_region
      _
    $region113: #{tpu_custom_call.1} parent=1 // pred_fallthru
      _
    // Predicated region
    $region114: #{tpu_custom_call.1} parent=1 // pred_check
      _
    $region115: #{tpu_custom_call.1} parent=1 // pred_check_branch
      %2506 = sbr.rel (0) target = $region117
    $region116: #{tpu_custom_call.1} parent=1 // pred_region
      %s2508 = ssub.s32 16, 16
      %2509 = vsyncadd [#allocation6], %s2508
      %s2511 = sshll.u32 [#allocation19], 4
      %s2512 = int_to_ptr.vmem [resolvable:$true] %s2511
      %2514 = dma.vmem_to_hbm [thread:$0]  %s2512, 16, %s19, [#allocation6]
    $region117: #{tpu_custom_call.1} parent=1 // pred_fallthru
      _
    // Predicated region
    $region118: #{tpu_custom_call.1} parent=1 // pred_check
      _
    $region119: #{tpu_custom_call.1} parent=1 // pred_check_branch
      %2516 = sbr.rel (0) target = $region121
    $region120: #{tpu_custom_call.1} parent=1 // pred_region
      _
    $region121: #{tpu_custom_call.1} parent=1 // pred_fallthru
      _
    // Predicated region
    $region122: #{tpu_custom_call.1} parent=1 // pred_check
      _
    $region123: #{tpu_custom_call.1} parent=1 // pred_check_branch
      %2518 = sbr.rel (0) target = $region125
    $region124: #{tpu_custom_call.1} parent=1 // pred_region
      %2519 = dma.done [#allocation6], 16
    $region125: #{tpu_custom_call.1} parent=1 // pred_fallthru
      _
    %2520 = vsyncpa [#allocation5], 1
    %2521 = vsyncpa [#allocation8], 1
    %2522 = vsyncpa [#allocation11], 1
    %2523 = vsyncpa [#allocation14], 1
    %2524 = vsyncpa [#allocation17], 1
    %2525 = vsyncpa [#allocation6], 1

</llo_original>
